<compile_context>
chip_gen: v6e
topology: v6e:2x2x1
jax: 0.10.0
libtpu: 0.0.40
codegen_flags: <defaults>
</compile_context>

<pallas_src>
import jax
import jax.numpy as jnp
import numpy as np
from jax.experimental import pallas as pl
from jax.experimental.pallas import tpu as pltpu

_TM_MAX = 512                      # spatial (lane) tile when the full map doesn't fit
_SELU_ALPHA = 1.6732632423543772
_SELU_SCALE = 1.0507009873554805
_EPS = 1e-5                        # InstanceNorm2d default eps
_VMEM_LIMIT = 32 * 1024 * 1024     # explicit, portable across v5e/v6e/v7x


# ----------------------------------------------------------------------------
# Fused conv (matmul) + bias + InstanceNorm + activation (+ residual) kernel
# ----------------------------------------------------------------------------
def _make_fused_conv_kernel(*, n_m, tm, m_valid, m_pad, r_rows, apply_norm, act,
                            add_residual, phase_groups):
    """kernel(w_ref, b_ref, p_ref, [r_ref], o_ref)

    w: [R, K] bf16 (resident), b: [R, 1] f32, p: [1, K, tm] bf16 tile,
    r (optional residual): [1, R, m_pad] f32 (resident), o: [1, R, m_pad] f32 (resident).
    """
    need_mask = apply_norm and (m_valid != m_pad)

    def epilogue(x, r_ref):
        x = x.astype(jnp.float32)
        if apply_norm:
            if need_mask:
                lane = jax.lax.broadcasted_iota(jnp.int32, x.shape, 1)
                mask = (lane < m_valid).astype(jnp.float32)
            count = float(m_valid * phase_groups)

            def group_reduce(v):  # v: [R, 1] per-row sums -> group totals per row
                if phase_groups == 1:
                    return v
                c = r_rows // phase_groups
                tot = v[0:c]
                for g in range(1, phase_groups):
                    tot = tot + v[g * c:(g + 1) * c]
                return jnp.concatenate([tot] * phase_groups, axis=0)

            xs = x * mask if need_mask else x
            mean = group_reduce(jnp.sum(xs, axis=-1, keepdims=True)) / count
            d = x - mean
            ds = d * mask if need_mask else d
            var = group_reduce(jnp.sum(ds * ds, axis=-1, keepdims=True)) / count
            x = d * jax.lax.rsqrt(var + _EPS)
        if act == "relu":
            x = jnp.maximum(x, 0.0)
        elif act == "selu":
            x = _SELU_SCALE * jnp.where(x > 0, x, _SELU_ALPHA * (jnp.exp(x) - 1.0))
        elif act == "tanh":
            x = jnp.tanh(x)
        if add_residual:
            x = x + r_ref[0].astype(jnp.float32)
        return x

    def kernel(w_ref, b_ref, p_ref, *rest):
        if add_residual:
            r_ref, o_ref = rest
        else:
            r_ref = None
            (o_ref,) = rest

        # conv tile as matmul: lane-dense output [R rows, tm lanes], f32 accumulate
        y = jnp.dot(w_ref[...], p_ref[0], preferred_element_type=jnp.float32)
        y = y + b_ref[...]

        if n_m == 1:
            o_ref[0] = epilogue(y, r_ref).astype(o_ref.dtype)
        else:
            m = pl.program_id(1)
            off = pl.multiple_of(m * tm, tm)
            o_ref[0, :, pl.ds(off, tm)] = y.astype(o_ref.dtype)

            @pl.when(m == n_m - 1)
            def _():
                full = o_ref[0]            # VMEM-resident conv result for this sample
                o_ref[0] = epilogue(full, r_ref).astype(o_ref.dtype)

    return kernel


def _fused_conv_norm_act(patches, w2, bias, *, apply_norm, act, residual=None,
                         phase_groups=1):
    """patches: [N, K, M] bf16, w2: [R, K] bf16, bias: [R, 1] f32,
    residual: [N, R, M] f32 or None. Returns conv+bias(+norm+act+res) as [N, R, M] f32."""
    n, k, m = patches.shape
    r = w2.shape[0]

    if m <= _TM_MAX:
        tm, mp, n_m = m, m, 1
    else:
        tm = _TM_MAX
        n_m = -(-m // tm)
        mp = n_m * tm
        if mp != m:  # pad only the trailing lanes (masked out for the norm statistics)
            patches = jnp.pad(patches, ((0, 0), (0, 0), (0, mp - m)))
            if residual is not None:
                residual = jnp.pad(residual, ((0, 0), (0, 0), (0, mp - m)))

    add_res = residual is not None
    kernel = _make_fused_conv_kernel(
        n_m=n_m, tm=tm, m_valid=m, m_pad=mp, r_rows=r, apply_norm=apply_norm,
        act=act, add_residual=add_res, phase_groups=phase_groups)

    in_specs = [
        pl.BlockSpec((r, k), lambda ni, mi: (0, 0)),         # weights (resident)
        pl.BlockSpec((r, 1), lambda ni, mi: (0, 0)),         # bias (resident)
        pl.BlockSpec((1, k, tm), lambda ni, mi: (ni, 0, mi)),  # patch tile
    ]
    inputs = [w2, bias, patches]
    if add_res:
        in_specs.append(pl.BlockSpec((1, r, mp), lambda ni, mi: (ni, 0, 0)))
        inputs.append(residual)

    out = pl.pallas_call(
        kernel,
        out_shape=jax.ShapeDtypeStruct((n, r, mp), jnp.float32),
        grid=(n, n_m),
        in_specs=in_specs,
        out_specs=pl.BlockSpec((1, r, mp), lambda ni, mi: (ni, 0, 0)),
        compiler_params=pltpu.CompilerParams(
            dimension_semantics=("parallel", "arbitrary"),
            vmem_limit_bytes=_VMEM_LIMIT),
    )(*inputs)
    if mp != m:
        out = out[:, :, :m]
    return out


# ----------------------------------------------------------------------------
# Layer glue (padding / im2col / phase weights) in plain JAX, NCHW throughout
# ----------------------------------------------------------------------------
def _im2col_nchw(x, kh, kw, stride):
    """x: [N, C, H, W] -> patches [N, C*KH*KW, OH*OW] (channel-major K, tap minor)."""
    n, c, h, w = x.shape
    oh = (h - kh) // stride + 1
    ow = (w - kw) // stride + 1
    cols = []
    for i in range(kh):
        for j in range(kw):
            cols.append(x[:, :, i:i + stride * oh:stride, j:j + stride * ow:stride])
    patches = jnp.stack(cols, axis=2)               # [N, C, KH*KW, OH, OW]
    return patches.reshape(n, c * kh * kw, oh * ow), oh, ow


def conv2d_fused(x, w, b, *, stride=1, padding=0, pad_mode="zero",
                 apply_norm=True, act="none", residual=None):
    """x: [N, Cin, H, W] f32. w: PyTorch Conv2d layout [Cout, Cin, KH, KW]. b: [Cout]."""
    cout, cin, kh, kw = w.shape
    n = x.shape[0]
    xb = x.astype(jnp.bfloat16)                     # bf16 MXU operands, f32 accumulate
    if padding:
        mode = "reflect" if pad_mode == "reflect" else "constant"
        xb = jnp.pad(xb, ((0, 0), (0, 0), (padding, padding), (padding, padding)),
                     mode=mode)
    patches, oh, ow = _im2col_nchw(xb, kh, kw, stride)
    w2 = w.reshape(cout, cin * kh * kw).astype(jnp.bfloat16)
    b2 = b.reshape(cout, 1).astype(jnp.float32)
    res = None
    if residual is not None:
        res = residual.reshape(n, cout, oh * ow).astype(jnp.float32)
    out = _fused_conv_norm_act(patches, w2, b2, apply_norm=apply_norm, act=act,
                               residual=res)
    return out.reshape(n, cout, oh, ow)


# Phase selection for ConvTranspose2d(k=3, s=2, p=1, op=1): output index p = 2*i - 1 + k.
#   even output (phase 0): tap offset dy=0 uses kernel index 1
#   odd  output (phase 1): tap offset dy=1 uses kernel index 0; dy=0 uses kernel index 2
_PHASE_SEL = np.zeros((2, 2, 3), np.float32)
_PHASE_SEL[0, 0, 1] = 1.0
_PHASE_SEL[1, 1, 0] = 1.0
_PHASE_SEL[1, 0, 2] = 1.0


def _transpose_conv_phase_weights(w_t):
    """w_t: PyTorch ConvTranspose2d layout [Cin, Cout, 3, 3] ->
    dense phase-weight matrix [4*Cout, 4*Cin] over 2x2 input patches
    (rows ordered (row_phase a, col_phase b, cout); cols ordered (cin, dy, dx))."""
    cout = w_t.shape[1]
    cin = w_t.shape[0]
    sel = jnp.asarray(_PHASE_SEL)
    t = jnp.einsum("ayk,bxl,nckl->abcnyx", sel, sel, w_t)
    return t.reshape(4 * cout, 4 * cin)


def conv_transpose2d_fused(x, w_t, b, *, apply_norm=True, act="selu"):
    """ConvTranspose2d(k=3, stride=2, padding=1, output_padding=1) + bias
    + fused InstanceNorm (over the full 2H x 2W map, phase-grouped) + activation.
    x: [N, Cin, H, W] -> [N, Cout, 2H, 2W]."""
    n, _, h, w = x.shape
    cout = w_t.shape[1]
    xp = jnp.pad(x.astype(jnp.bfloat16), ((0, 0), (0, 0), (0, 1), (0, 1)))  # m+1 taps
    patches, oh, ow = _im2col_nchw(xp, 2, 2, 1)        # oh=h, ow=w, K = 4*Cin
    w4 = _transpose_conv_phase_weights(w_t).astype(jnp.bfloat16)            # [4Cout, 4Cin]
    b4 = jnp.concatenate([b] * 4).reshape(4 * cout, 1).astype(jnp.float32)
    out = _fused_conv_norm_act(patches, w4, b4, apply_norm=apply_norm, act=act,
                               phase_groups=4)         # [N, 4*Cout, H*W]
    # pixel-shuffle the 4 phases into the upsampled map
    out = out.reshape(n, 2, 2, cout, h, w)
    out = jnp.transpose(out, (0, 3, 4, 1, 5, 2)).reshape(n, cout, 2 * h, 2 * w)
    return out


# ----------------------------------------------------------------------------
# Model: parameters + forward
# ----------------------------------------------------------------------------
def init_params(key, input_nc, output_nc, ngf, n_blocks=6):
    keys = iter(jax.random.split(key, 64))

    def conv_w(cout, cin, kh, kw):
        s = 1.0 / np.sqrt(cin * kh * kw)
        return s * jax.random.normal(next(keys), (cout, cin, kh, kw), jnp.float32)

    def bias(c):
        return 0.01 * jax.random.normal(next(keys), (c,), jnp.float32)

    p = {}
    # En: ReflectionPad(3) + Conv(input_nc->ngf, 7) + IN + SELU
    p["enc0_w"] = conv_w(ngf, input_nc, 7, 7)
    p["enc0_b"] = bias(ngf)
    # 2 downsampling convs (k=3, s=2, p=1) + IN + SELU
    p["down"] = []
    for i in range(2):
        mult = 2 ** i
        p["down"].append((conv_w(ngf * mult * 2, ngf * mult, 3, 3), bias(ngf * mult * 2)))
    # n_blocks ResnetBlocks at ngf*4 (num_gpus == 1 branch of the reference)
    dim = ngf * 4
    p["res"] = [dict(w1=conv_w(dim, dim, 3, 3), b1=bias(dim),
                     w2=conv_w(dim, dim, 3, 3), b2=bias(dim))
                for _ in range(n_blocks)]
    # Dn: 2 ConvTranspose(k=3, s=2, p=1, op=1) + IN + SELU
    p["up"] = []
    for i in range(2):
        mult = 2 ** (2 - i)
        cin, cout_ = ngf * mult, ngf * mult // 2
        wt = (1.0 / np.sqrt(cin * 9)) * jax.random.normal(
            next(keys), (cin, cout_, 3, 3), jnp.float32)
        p["up"].append((wt, bias(cout_)))
    # ReflectionPad(3) + Conv(ngf -> output_nc, k=8) + Tanh
    p["final_w"] = conv_w(output_nc, ngf, 8, 8)
    p["final_b"] = bias(output_nc)
    return p


def resnet_generator(x_nchw, params):
    # --- En ---
    h = conv2d_fused(x_nchw, params["enc0_w"], params["enc0_b"], stride=1, padding=3,
                     pad_mode="reflect", apply_norm=True, act="selu")
    for w, b in params["down"]:
        h = conv2d_fused(h, w, b, stride=2, padding=1, pad_mode="zero",
                         apply_norm=True, act="selu")
    for blk in params["res"]:
        # ResnetBlock: ReflPad(1)+Conv3x3+IN+ReLU, ReflPad(1)+Conv3x3+IN, + residual
        y = conv2d_fused(h, blk["w1"], blk["b1"], stride=1, padding=1,
                         pad_mode="reflect", apply_norm=True, act="relu")
        h = conv2d_fused(y, blk["w2"], blk["b2"], stride=1, padding=1,
                         pad_mode="reflect", apply_norm=True, act="none", residual=h)
    # --- Dn ---
    for wt, b in params["up"]:
        h = conv_transpose2d_fused(h, wt, b, apply_norm=True, act="selu")
    # ReflectionPad(3) + Conv(ngf -> output_nc, k=8) + Tanh   (output is (H-1)x(W-1))
    h = conv2d_fused(h, params["final_w"], params["final_b"], stride=1, padding=3,
                     pad_mode="reflect", apply_norm=False, act="tanh")
    return h


if __name__ == "__main__":
    key = jax.random.PRNGKey(0)
    pkey, xkey = jax.random.split(key)
    input_nc, output_nc, ngf = 3, 3, 8
    batch, H, W = 2, 16, 16

    params = init_params(pkey, input_nc, output_nc, ngf, n_blocks=6)
    x = jax.random.normal(xkey, (batch, input_nc, H, W), jnp.float32)

    fwd = jax.jit(resnet_generator)
    out = fwd(x, params)
    jax.block_until_ready(out)

    # ReflectionPad(3) + k=8 conv on an HxW map yields (H-1)x(W-1); tanh bounds output.
    assert out.shape == (batch, output_nc, H - 1, W - 1), out.shape
    assert bool(jnp.all(jnp.isfinite(out)))
    assert bool(jnp.all(jnp.abs(out) <= 1.0 + 1e-6))
    print("KERNEL_OK")
</pallas_src>

<mosaic_0001>
module attributes {stable_mosaic.version = 11 : i64} {
  func.func @kernel(%arg0: i32, %arg1: i32, %arg2: memref<8x147xbf16, #tpu.memory_space<vmem>>, %arg3: memref<8x1xf32, #tpu.memory_space<vmem>>, %arg4: memref<1x147x256xbf16, #tpu.memory_space<vmem>>, %arg5: memref<1x8x256xf32, #tpu.memory_space<vmem>>) attributes {dimension_semantics = [#tpu.dimension_semantics<parallel>, #tpu.dimension_semantics<arbitrary>], iteration_bounds = array<i64: 2, 1>, scalar_prefetch = 0 : i64, scratch_operands = 0 : i64, tpu.core_type = #tpu.core_type<tc>, window_params = [{pipeline_mode = #tpu.pipeline_mode<synchronous>, transform_indices = @transform_0, window_bounds = array<i64: 8, 147>}, {pipeline_mode = #tpu.pipeline_mode<synchronous>, transform_indices = @transform_1, window_bounds = array<i64: 8, 1>}, {transform_indices = @transform_2, window_bounds = array<i64: 1, 147, 256>}, {transform_indices = @transform_3, window_bounds = array<i64: 1, 8, 256>}]} {
    %c0 = arith.constant 0 : index
    %c0_0 = arith.constant 0 : index
    %0 = vector.load %arg2[%c0, %c0_0] : memref<8x147xbf16, #tpu.memory_space<vmem>>, vector<8x147xbf16>
    %c0_1 = arith.constant 0 : index
    %c0_2 = arith.constant 0 : index
    %c0_3 = arith.constant 0 : index
    %1 = vector.load %arg4[%c0_1, %c0_2, %c0_3] : memref<1x147x256xbf16, #tpu.memory_space<vmem>>, vector<1x147x256xbf16>
    %2 = vector.shape_cast %1 : vector<1x147x256xbf16> to vector<147x256xbf16>
    %cst = arith.constant dense<0.000000e+00> : vector<8x256xf32>
    %3 = tpu.matmul %0, %2, %cst {dimension_numbers = #tpu.dot_dimension_numbers<[1], [0], [0], [1], [0, 0, 1, 1], [], []>} : vector<8x147xbf16>, vector<147x256xbf16>, vector<8x256xf32> -> vector<8x256xf32>
    %c0_4 = arith.constant 0 : index
    %c0_5 = arith.constant 0 : index
    %4 = vector.load %arg3[%c0_4, %c0_5] : memref<8x1xf32, #tpu.memory_space<vmem>>, vector<8x1xf32>
    %5 = vector.broadcast %4 : vector<8x1xf32> to vector<8x256xf32>
    %6 = arith.addf %3, %5 : vector<8x256xf32>
    %cst_6 = arith.constant dense<0.000000e+00> : vector<8xf32>
    %7 = vector.multi_reduction <add>, %6, %cst_6 [1] : vector<8x256xf32> to vector<8xf32>
    %8 = vector.shape_cast %7 : vector<8xf32> to vector<8x1xf32>
    %cst_7 = arith.constant 2.560000e+02 : f32
    %9 = vector.broadcast %cst_7 : f32 to vector<8x1xf32>
    %10 = arith.divf %8, %9 : vector<8x1xf32>
    %11 = vector.broadcast %10 : vector<8x1xf32> to vector<8x256xf32>
    %12 = arith.subf %6, %11 : vector<8x256xf32>
    %13 = arith.mulf %12, %12 : vector<8x256xf32>
    %cst_8 = arith.constant dense<0.000000e+00> : vector<8xf32>
    %14 = vector.multi_reduction <add>, %13, %cst_8 [1] : vector<8x256xf32> to vector<8xf32>
    %15 = vector.shape_cast %14 : vector<8xf32> to vector<8x1xf32>
    %cst_9 = arith.constant 2.560000e+02 : f32
    %16 = vector.broadcast %cst_9 : f32 to vector<8x1xf32>
    %17 = arith.divf %15, %16 : vector<8x1xf32>
    %cst_10 = arith.constant 9.99999974E-6 : f32
    %18 = vector.broadcast %cst_10 : f32 to vector<8x1xf32>
    %19 = arith.addf %17, %18 : vector<8x1xf32>
    %20 = math.rsqrt %19 : vector<8x1xf32>
    %21 = vector.broadcast %20 : vector<8x1xf32> to vector<8x256xf32>
    %22 = arith.mulf %12, %21 : vector<8x256xf32>
    %cst_11 = arith.constant 0.000000e+00 : f32
    %23 = vector.broadcast %cst_11 : f32 to vector<8x256xf32>
    %24 = arith.cmpf ogt, %22, %23 : vector<8x256xf32>
    %25 = math.exp %22 : vector<8x256xf32>
    %cst_12 = arith.constant 1.000000e+00 : f32
    %26 = vector.broadcast %cst_12 : f32 to vector<8x256xf32>
    %27 = arith.subf %25, %26 : vector<8x256xf32>
    %cst_13 = arith.constant 1.67326319 : f32
    %28 = vector.broadcast %cst_13 : f32 to vector<8x256xf32>
    %29 = arith.mulf %28, %27 : vector<8x256xf32>
    %30 = arith.select %24, %22, %29 : vector<8x256xi1>, vector<8x256xf32>
    %cst_14 = arith.constant 1.05070102 : f32
    %31 = vector.broadcast %cst_14 : f32 to vector<8x256xf32>
    %32 = arith.mulf %31, %30 : vector<8x256xf32>
    %c0_15 = arith.constant 0 : index
    %c0_16 = arith.constant 0 : index
    %c0_17 = arith.constant 0 : index
    %33 = vector.load %arg5[%c0_15, %c0_16, %c0_17] : memref<1x8x256xf32, #tpu.memory_space<vmem>>, vector<1x8x256xf32>
    %34 = vector.shape_cast %33 : vector<1x8x256xf32> to vector<8x256xf32>
    %35 = vector.shape_cast %32 : vector<8x256xf32> to vector<1x8x256xf32>
    tpu.vector_store %arg5[%c0_15, %c0_16, %c0_17], %35 {strides = array<i32>} : memref<1x8x256xf32, #tpu.memory_space<vmem>>, vector<1x8x256xf32>,
    return
  }
  func.func @transform_0(%arg0: i32, %arg1: i32) -> (i32, i32) {
    %c0_i32 = arith.constant 0 : i32
    %c0_i32_0 = arith.constant 0 : i32
    %c0_i32_1 = arith.constant 0 : i32
    return %c0_i32, %c0_i32_0 : i32, i32
  }
  func.func @transform_1(%arg0: i32, %arg1: i32) -> (i32, i32) {
    %c0_i32 = arith.constant 0 : i32
    %c0_i32_0 = arith.constant 0 : i32
    %c0_i32_1 = arith.constant 0 : i32
    return %c0_i32, %c0_i32_0 : i32, i32
  }
  func.func @transform_2(%arg0: i32, %arg1: i32) -> (i32, i32, i32) {
    %c0_i32 = arith.constant 0 : i32
    %c0_i32_0 = arith.constant 0 : i32
    return %arg0, %c0_i32, %arg1 : i32, i32, i32
  }
  func.func @transform_3(%arg0: i32, %arg1: i32) -> (i32, i32, i32) {
    %c0_i32 = arith.constant 0 : i32
    %c0_i32_0 = arith.constant 0 : i32
    %c0_i32_1 = arith.constant 0 : i32
    return %arg0, %c0_i32, %c0_i32_0 : i32, i32, i32
  }
}

module attributes {stable_mosaic.version = 11 : i64} {
  func.func @kernel(%arg0: i32, %arg1: i32, %arg2: memref<16x72xbf16, #tpu.memory_space<vmem>>, %arg3: memref<16x1xf32, #tpu.memory_space<vmem>>, %arg4: memref<1x72x64xbf16, #tpu.memory_space<vmem>>, %arg5: memref<1x16x64xf32, #tpu.memory_space<vmem>>) attributes {dimension_semantics = [#tpu.dimension_semantics<parallel>, #tpu.dimension_semantics<arbitrary>], iteration_bounds = array<i64: 2, 1>, scalar_prefetch = 0 : i64, scratch_operands = 0 : i64, tpu.core_type = #tpu.core_type<tc>, window_params = [{pipeline_mode = #tpu.pipeline_mode<synchronous>, transform_indices = @transform_0, window_bounds = array<i64: 16, 72>}, {pipeline_mode = #tpu.pipeline_mode<synchronous>, transform_indices = @transform_1, window_bounds = array<i64: 16, 1>}, {transform_indices = @transform_2, window_bounds = array<i64: 1, 72, 64>}, {transform_indices = @transform_3, window_bounds = array<i64: 1, 16, 64>}]} {
    %c0 = arith.constant 0 : index
    %c0_0 = arith.constant 0 : index
    %0 = vector.load %arg2[%c0, %c0_0] : memref<16x72xbf16, #tpu.memory_space<vmem>>, vector<16x72xbf16>
    %c0_1 = arith.constant 0 : index
    %c0_2 = arith.constant 0 : index
    %c0_3 = arith.constant 0 : index
    %1 = vector.load %arg4[%c0_1, %c0_2, %c0_3] : memref<1x72x64xbf16, #tpu.memory_space<vmem>>, vector<1x72x64xbf16>
    %2 = vector.shape_cast %1 : vector<1x72x64xbf16> to vector<72x64xbf16>
    %cst = arith.constant dense<0.000000e+00> : vector<16x64xf32>
    %3 = tpu.matmul %0, %2, %cst {dimension_numbers = #tpu.dot_dimension_numbers<[1], [0], [0], [1], [0, 0, 1, 1], [], []>} : vector<16x72xbf16>, vector<72x64xbf16>, vector<16x64xf32> -> vector<16x64xf32>
    %c0_4 = arith.constant 0 : index
    %c0_5 = arith.constant 0 : index
    %4 = vector.load %arg3[%c0_4, %c0_5] : memref<16x1xf32, #tpu.memory_space<vmem>>, vector<16x1xf32>
    %5 = vector.broadcast %4 : vector<16x1xf32> to vector<16x64xf32>
    %6 = arith.addf %3, %5 : vector<16x64xf32>
    %cst_6 = arith.constant dense<0.000000e+00> : vector<16xf32>
    %7 = vector.multi_reduction <add>, %6, %cst_6 [1] : vector<16x64xf32> to vector<16xf32>
    %8 = vector.shape_cast %7 : vector<16xf32> to vector<16x1xf32>
    %cst_7 = arith.constant 6.400000e+01 : f32
    %9 = vector.broadcast %cst_7 : f32 to vector<16x1xf32>
    %10 = arith.divf %8, %9 : vector<16x1xf32>
    %11 = vector.broadcast %10 : vector<16x1xf32> to vector<16x64xf32>
    %12 = arith.subf %6, %11 : vector<16x64xf32>
    %13 = arith.mulf %12, %12 : vector<16x64xf32>
    %cst_8 = arith.constant dense<0.000000e+00> : vector<16xf32>
    %14 = vector.multi_reduction <add>, %13, %cst_8 [1] : vector<16x64xf32> to vector<16xf32>
    %15 = vector.shape_cast %14 : vector<16xf32> to vector<16x1xf32>
    %cst_9 = arith.constant 6.400000e+01 : f32
    %16 = vector.broadcast %cst_9 : f32 to vector<16x1xf32>
    %17 = arith.divf %15, %16 : vector<16x1xf32>
    %cst_10 = arith.constant 9.99999974E-6 : f32
    %18 = vector.broadcast %cst_10 : f32 to vector<16x1xf32>
    %19 = arith.addf %17, %18 : vector<16x1xf32>
    %20 = math.rsqrt %19 : vector<16x1xf32>
    %21 = vector.broadcast %20 : vector<16x1xf32> to vector<16x64xf32>
    %22 = arith.mulf %12, %21 : vector<16x64xf32>
    %cst_11 = arith.constant 0.000000e+00 : f32
    %23 = vector.broadcast %cst_11 : f32 to vector<16x64xf32>
    %24 = arith.cmpf ogt, %22, %23 : vector<16x64xf32>
    %25 = math.exp %22 : vector<16x64xf32>
    %cst_12 = arith.constant 1.000000e+00 : f32
    %26 = vector.broadcast %cst_12 : f32 to vector<16x64xf32>
    %27 = arith.subf %25, %26 : vector<16x64xf32>
    %cst_13 = arith.constant 1.67326319 : f32
    %28 = vector.broadcast %cst_13 : f32 to vector<16x64xf32>
    %29 = arith.mulf %28, %27 : vector<16x64xf32>
    %30 = arith.select %24, %22, %29 : vector<16x64xi1>, vector<16x64xf32>
    %cst_14 = arith.constant 1.05070102 : f32
    %31 = vector.broadcast %cst_14 : f32 to vector<16x64xf32>
    %32 = arith.mulf %31, %30 : vector<16x64xf32>
    %c0_15 = arith.constant 0 : index
    %c0_16 = arith.constant 0 : index
    %c0_17 = arith.constant 0 : index
    %33 = vector.load %arg5[%c0_15, %c0_16, %c0_17] : memref<1x16x64xf32, #tpu.memory_space<vmem>>, vector<1x16x64xf32>
    %34 = vector.shape_cast %33 : vector<1x16x64xf32> to vector<16x64xf32>
    %35 = vector.shape_cast %32 : vector<16x64xf32> to vector<1x16x64xf32>
    tpu.vector_store %arg5[%c0_15, %c0_16, %c0_17], %35 {strides = array<i32>} : memref<1x16x64xf32, #tpu.memory_space<vmem>>, vector<1x16x64xf32>,
    return
  }
  func.func @transform_0(%arg0: i32, %arg1: i32) -> (i32, i32) {
    %c0_i32 = arith.constant 0 : i32
    %c0_i32_0 = arith.constant 0 : i32
    %c0_i32_1 = arith.constant 0 : i32
    return %c0_i32, %c0_i32_0 : i32, i32
  }
  func.func @transform_1(%arg0: i32, %arg1: i32) -> (i32, i32) {
    %c0_i32 = arith.constant 0 : i32
    %c0_i32_0 = arith.constant 0 : i32
    %c0_i32_1 = arith.constant 0 : i32
    return %c0_i32, %c0_i32_0 : i32, i32
  }
  func.func @transform_2(%arg0: i32, %arg1: i32) -> (i32, i32, i32) {
    %c0_i32 = arith.constant 0 : i32
    %c0_i32_0 = arith.constant 0 : i32
    return %arg0, %c0_i32, %arg1 : i32, i32, i32
  }
  func.func @transform_3(%arg0: i32, %arg1: i32) -> (i32, i32, i32) {
    %c0_i32 = arith.constant 0 : i32
    %c0_i32_0 = arith.constant 0 : i32
    %c0_i32_1 = arith.constant 0 : i32
    return %arg0, %c0_i32, %c0_i32_0 : i32, i32, i32
  }
}

module attributes {stable_mosaic.version = 11 : i64} {
  func.func @kernel(%arg0: i32, %arg1: i32, %arg2: memref<32x144xbf16, #tpu.memory_space<vmem>>, %arg3: memref<32x1xf32, #tpu.memory_space<vmem>>, %arg4: memref<1x144x16xbf16, #tpu.memory_space<vmem>>, %arg5: memref<1x32x16xf32, #tpu.memory_space<vmem>>) attributes {dimension_semantics = [#tpu.dimension_semantics<parallel>, #tpu.dimension_semantics<arbitrary>], iteration_bounds = array<i64: 2, 1>, scalar_prefetch = 0 : i64, scratch_operands = 0 : i64, tpu.core_type = #tpu.core_type<tc>, window_params = [{pipeline_mode = #tpu.pipeline_mode<synchronous>, transform_indices = @transform_0, window_bounds = array<i64: 32, 144>}, {pipeline_mode = #tpu.pipeline_mode<synchronous>, transform_indices = @transform_1, window_bounds = array<i64: 32, 1>}, {transform_indices = @transform_2, window_bounds = array<i64: 1, 144, 16>}, {transform_indices = @transform_3, window_bounds = array<i64: 1, 32, 16>}]} {
    %c0 = arith.constant 0 : index
    %c0_0 = arith.constant 0 : index
    %0 = vector.load %arg2[%c0, %c0_0] : memref<32x144xbf16, #tpu.memory_space<vmem>>, vector<32x144xbf16>
    %c0_1 = arith.constant 0 : index
    %c0_2 = arith.constant 0 : index
    %c0_3 = arith.constant 0 : index
    %1 = vector.load %arg4[%c0_1, %c0_2, %c0_3] : memref<1x144x16xbf16, #tpu.memory_space<vmem>>, vector<1x144x16xbf16>
    %2 = vector.shape_cast %1 : vector<1x144x16xbf16> to vector<144x16xbf16>
    %cst = arith.constant dense<0.000000e+00> : vector<32x16xf32>
    %3 = tpu.matmul %0, %2, %cst {dimension_numbers = #tpu.dot_dimension_numbers<[1], [0], [0], [1], [0, 0, 1, 1], [], []>} : vector<32x144xbf16>, vector<144x16xbf16>, vector<32x16xf32> -> vector<32x16xf32>
    %c0_4 = arith.constant 0 : index
    %c0_5 = arith.constant 0 : index
    %4 = vector.load %arg3[%c0_4, %c0_5] : memref<32x1xf32, #tpu.memory_space<vmem>>, vector<32x1xf32>
    %5 = vector.broadcast %4 : vector<32x1xf32> to vector<32x16xf32>
    %6 = arith.addf %3, %5 : vector<32x16xf32>
    %cst_6 = arith.constant dense<0.000000e+00> : vector<32xf32>
    %7 = vector.multi_reduction <add>, %6, %cst_6 [1] : vector<32x16xf32> to vector<32xf32>
    %8 = vector.shape_cast %7 : vector<32xf32> to vector<32x1xf32>
    %cst_7 = arith.constant 1.600000e+01 : f32
    %9 = vector.broadcast %cst_7 : f32 to vector<32x1xf32>
    %10 = arith.divf %8, %9 : vector<32x1xf32>
    %11 = vector.broadcast %10 : vector<32x1xf32> to vector<32x16xf32>
    %12 = arith.subf %6, %11 : vector<32x16xf32>
    %13 = arith.mulf %12, %12 : vector<32x16xf32>
    %cst_8 = arith.constant dense<0.000000e+00> : vector<32xf32>
    %14 = vector.multi_reduction <add>, %13, %cst_8 [1] : vector<32x16xf32> to vector<32xf32>
    %15 = vector.shape_cast %14 : vector<32xf32> to vector<32x1xf32>
    %cst_9 = arith.constant 1.600000e+01 : f32
    %16 = vector.broadcast %cst_9 : f32 to vector<32x1xf32>
    %17 = arith.divf %15, %16 : vector<32x1xf32>
    %cst_10 = arith.constant 9.99999974E-6 : f32
    %18 = vector.broadcast %cst_10 : f32 to vector<32x1xf32>
    %19 = arith.addf %17, %18 : vector<32x1xf32>
    %20 = math.rsqrt %19 : vector<32x1xf32>
    %21 = vector.broadcast %20 : vector<32x1xf32> to vector<32x16xf32>
    %22 = arith.mulf %12, %21 : vector<32x16xf32>
    %cst_11 = arith.constant 0.000000e+00 : f32
    %23 = vector.broadcast %cst_11 : f32 to vector<32x16xf32>
    %24 = arith.cmpf ogt, %22, %23 : vector<32x16xf32>
    %25 = math.exp %22 : vector<32x16xf32>
    %cst_12 = arith.constant 1.000000e+00 : f32
    %26 = vector.broadcast %cst_12 : f32 to vector<32x16xf32>
    %27 = arith.subf %25, %26 : vector<32x16xf32>
    %cst_13 = arith.constant 1.67326319 : f32
    %28 = vector.broadcast %cst_13 : f32 to vector<32x16xf32>
    %29 = arith.mulf %28, %27 : vector<32x16xf32>
    %30 = arith.select %24, %22, %29 : vector<32x16xi1>, vector<32x16xf32>
    %cst_14 = arith.constant 1.05070102 : f32
    %31 = vector.broadcast %cst_14 : f32 to vector<32x16xf32>
    %32 = arith.mulf %31, %30 : vector<32x16xf32>
    %c0_15 = arith.constant 0 : index
    %c0_16 = arith.constant 0 : index
    %c0_17 = arith.constant 0 : index
    %33 = vector.load %arg5[%c0_15, %c0_16, %c0_17] : memref<1x32x16xf32, #tpu.memory_space<vmem>>, vector<1x32x16xf32>
    %34 = vector.shape_cast %33 : vector<1x32x16xf32> to vector<32x16xf32>
    %35 = vector.shape_cast %32 : vector<32x16xf32> to vector<1x32x16xf32>
    tpu.vector_store %arg5[%c0_15, %c0_16, %c0_17], %35 {strides = array<i32>} : memref<1x32x16xf32, #tpu.memory_space<vmem>>, vector<1x32x16xf32>,
    return
  }
  func.func @transform_0(%arg0: i32, %arg1: i32) -> (i32, i32) {
    %c0_i32 = arith.constant 0 : i32
    %c0_i32_0 = arith.constant 0 : i32
    %c0_i32_1 = arith.constant 0 : i32
    return %c0_i32, %c0_i32_0 : i32, i32
  }
  func.func @transform_1(%arg0: i32, %arg1: i32) -> (i32, i32) {
    %c0_i32 = arith.constant 0 : i32
    %c0_i32_0 = arith.constant 0 : i32
    %c0_i32_1 = arith.constant 0 : i32
    return %c0_i32, %c0_i32_0 : i32, i32
  }
  func.func @transform_2(%arg0: i32, %arg1: i32) -> (i32, i32, i32) {
    %c0_i32 = arith.constant 0 : i32
    %c0_i32_0 = arith.constant 0 : i32
    return %arg0, %c0_i32, %arg1 : i32, i32, i32
  }
  func.func @transform_3(%arg0: i32, %arg1: i32) -> (i32, i32, i32) {
    %c0_i32 = arith.constant 0 : i32
    %c0_i32_0 = arith.constant 0 : i32
    %c0_i32_1 = arith.constant 0 : i32
    return %arg0, %c0_i32, %c0_i32_0 : i32, i32, i32
  }
}

module attributes {stable_mosaic.version = 11 : i64} {
  func.func @kernel(%arg0: i32, %arg1: i32, %arg2: memref<32x288xbf16, #tpu.memory_space<vmem>>, %arg3: memref<32x1xf32, #tpu.memory_space<vmem>>, %arg4: memref<1x288x16xbf16, #tpu.memory_space<vmem>>, %arg5: memref<1x32x16xf32, #tpu.memory_space<vmem>>) attributes {dimension_semantics = [#tpu.dimension_semantics<parallel>, #tpu.dimension_semantics<arbitrary>], iteration_bounds = array<i64: 2, 1>, scalar_prefetch = 0 : i64, scratch_operands = 0 : i64, tpu.core_type = #tpu.core_type<tc>, window_params = [{pipeline_mode = #tpu.pipeline_mode<synchronous>, transform_indices = @transform_0, window_bounds = array<i64: 32, 288>}, {pipeline_mode = #tpu.pipeline_mode<synchronous>, transform_indices = @transform_1, window_bounds = array<i64: 32, 1>}, {transform_indices = @transform_2, window_bounds = array<i64: 1, 288, 16>}, {transform_indices = @transform_3, window_bounds = array<i64: 1, 32, 16>}]} {
    %c0 = arith.constant 0 : index
    %c0_0 = arith.constant 0 : index
    %0 = vector.load %arg2[%c0, %c0_0] : memref<32x288xbf16, #tpu.memory_space<vmem>>, vector<32x288xbf16>
    %c0_1 = arith.constant 0 : index
    %c0_2 = arith.constant 0 : index
    %c0_3 = arith.constant 0 : index
    %1 = vector.load %arg4[%c0_1, %c0_2, %c0_3] : memref<1x288x16xbf16, #tpu.memory_space<vmem>>, vector<1x288x16xbf16>
    %2 = vector.shape_cast %1 : vector<1x288x16xbf16> to vector<288x16xbf16>
    %cst = arith.constant dense<0.000000e+00> : vector<32x16xf32>
    %3 = tpu.matmul %0, %2, %cst {dimension_numbers = #tpu.dot_dimension_numbers<[1], [0], [0], [1], [0, 0, 1, 1], [], []>} : vector<32x288xbf16>, vector<288x16xbf16>, vector<32x16xf32> -> vector<32x16xf32>
    %c0_4 = arith.constant 0 : index
    %c0_5 = arith.constant 0 : index
    %4 = vector.load %arg3[%c0_4, %c0_5] : memref<32x1xf32, #tpu.memory_space<vmem>>, vector<32x1xf32>
    %5 = vector.broadcast %4 : vector<32x1xf32> to vector<32x16xf32>
    %6 = arith.addf %3, %5 : vector<32x16xf32>
    %cst_6 = arith.constant dense<0.000000e+00> : vector<32xf32>
    %7 = vector.multi_reduction <add>, %6, %cst_6 [1] : vector<32x16xf32> to vector<32xf32>
    %8 = vector.shape_cast %7 : vector<32xf32> to vector<32x1xf32>
    %cst_7 = arith.constant 1.600000e+01 : f32
    %9 = vector.broadcast %cst_7 : f32 to vector<32x1xf32>
    %10 = arith.divf %8, %9 : vector<32x1xf32>
    %11 = vector.broadcast %10 : vector<32x1xf32> to vector<32x16xf32>
    %12 = arith.subf %6, %11 : vector<32x16xf32>
    %13 = arith.mulf %12, %12 : vector<32x16xf32>
    %cst_8 = arith.constant dense<0.000000e+00> : vector<32xf32>
    %14 = vector.multi_reduction <add>, %13, %cst_8 [1] : vector<32x16xf32> to vector<32xf32>
    %15 = vector.shape_cast %14 : vector<32xf32> to vector<32x1xf32>
    %cst_9 = arith.constant 1.600000e+01 : f32
    %16 = vector.broadcast %cst_9 : f32 to vector<32x1xf32>
    %17 = arith.divf %15, %16 : vector<32x1xf32>
    %cst_10 = arith.constant 9.99999974E-6 : f32
    %18 = vector.broadcast %cst_10 : f32 to vector<32x1xf32>
    %19 = arith.addf %17, %18 : vector<32x1xf32>
    %20 = math.rsqrt %19 : vector<32x1xf32>
    %21 = vector.broadcast %20 : vector<32x1xf32> to vector<32x16xf32>
    %22 = arith.mulf %12, %21 : vector<32x16xf32>
    %cst_11 = arith.constant 0.000000e+00 : f32
    %23 = vector.broadcast %cst_11 : f32 to vector<32x16xf32>
    %24 = arith.maximumf %22, %23 : vector<32x16xf32>
    %c0_12 = arith.constant 0 : index
    %c0_13 = arith.constant 0 : index
    %c0_14 = arith.constant 0 : index
    %25 = vector.load %arg5[%c0_12, %c0_13, %c0_14] : memref<1x32x16xf32, #tpu.memory_space<vmem>>, vector<1x32x16xf32>
    %26 = vector.shape_cast %25 : vector<1x32x16xf32> to vector<32x16xf32>
    %27 = vector.shape_cast %24 : vector<32x16xf32> to vector<1x32x16xf32>
    tpu.vector_store %arg5[%c0_12, %c0_13, %c0_14], %27 {strides = array<i32>} : memref<1x32x16xf32, #tpu.memory_space<vmem>>, vector<1x32x16xf32>,
    return
  }
  func.func @transform_0(%arg0: i32, %arg1: i32) -> (i32, i32) {
    %c0_i32 = arith.constant 0 : i32
    %c0_i32_0 = arith.constant 0 : i32
    %c0_i32_1 = arith.constant 0 : i32
    return %c0_i32, %c0_i32_0 : i32, i32
  }
  func.func @transform_1(%arg0: i32, %arg1: i32) -> (i32, i32) {
    %c0_i32 = arith.constant 0 : i32
    %c0_i32_0 = arith.constant 0 : i32
    %c0_i32_1 = arith.constant 0 : i32
    return %c0_i32, %c0_i32_0 : i32, i32
  }
  func.func @transform_2(%arg0: i32, %arg1: i32) -> (i32, i32, i32) {
    %c0_i32 = arith.constant 0 : i32
    %c0_i32_0 = arith.constant 0 : i32
    return %arg0, %c0_i32, %arg1 : i32, i32, i32
  }
  func.func @transform_3(%arg0: i32, %arg1: i32) -> (i32, i32, i32) {
    %c0_i32 = arith.constant 0 : i32
    %c0_i32_0 = arith.constant 0 : i32
    %c0_i32_1 = arith.constant 0 : i32
    return %arg0, %c0_i32, %c0_i32_0 : i32, i32, i32
  }
}

module attributes {stable_mosaic.version = 11 : i64} {
  func.func @kernel(%arg0: i32, %arg1: i32, %arg2: memref<32x288xbf16, #tpu.memory_space<vmem>>, %arg3: memref<32x1xf32, #tpu.memory_space<vmem>>, %arg4: memref<1x288x16xbf16, #tpu.memory_space<vmem>>, %arg5: memref<1x32x16xf32, #tpu.memory_space<vmem>>, %arg6: memref<1x32x16xf32, #tpu.memory_space<vmem>>) attributes {dimension_semantics = [#tpu.dimension_semantics<parallel>, #tpu.dimension_semantics<arbitrary>], iteration_bounds = array<i64: 2, 1>, scalar_prefetch = 0 : i64, scratch_operands = 0 : i64, tpu.core_type = #tpu.core_type<tc>, window_params = [{pipeline_mode = #tpu.pipeline_mode<synchronous>, transform_indices = @transform_0, window_bounds = array<i64: 32, 288>}, {pipeline_mode = #tpu.pipeline_mode<synchronous>, transform_indices = @transform_1, window_bounds = array<i64: 32, 1>}, {transform_indices = @transform_2, window_bounds = array<i64: 1, 288, 16>}, {transform_indices = @transform_3, window_bounds = array<i64: 1, 32, 16>}, {transform_indices = @transform_4, window_bounds = array<i64: 1, 32, 16>}]} {
    %c0 = arith.constant 0 : index
    %c0_0 = arith.constant 0 : index
    %0 = vector.load %arg2[%c0, %c0_0] : memref<32x288xbf16, #tpu.memory_space<vmem>>, vector<32x288xbf16>
    %c0_1 = arith.constant 0 : index
    %c0_2 = arith.constant 0 : index
    %c0_3 = arith.constant 0 : index
    %1 = vector.load %arg4[%c0_1, %c0_2, %c0_3] : memref<1x288x16xbf16, #tpu.memory_space<vmem>>, vector<1x288x16xbf16>
    %2 = vector.shape_cast %1 : vector<1x288x16xbf16> to vector<288x16xbf16>
    %cst = arith.constant dense<0.000000e+00> : vector<32x16xf32>
    %3 = tpu.matmul %0, %2, %cst {dimension_numbers = #tpu.dot_dimension_numbers<[1], [0], [0], [1], [0, 0, 1, 1], [], []>} : vector<32x288xbf16>, vector<288x16xbf16>, vector<32x16xf32> -> vector<32x16xf32>
    %c0_4 = arith.constant 0 : index
    %c0_5 = arith.constant 0 : index
    %4 = vector.load %arg3[%c0_4, %c0_5] : memref<32x1xf32, #tpu.memory_space<vmem>>, vector<32x1xf32>
    %5 = vector.broadcast %4 : vector<32x1xf32> to vector<32x16xf32>
    %6 = arith.addf %3, %5 : vector<32x16xf32>
    %cst_6 = arith.constant dense<0.000000e+00> : vector<32xf32>
    %7 = vector.multi_reduction <add>, %6, %cst_6 [1] : vector<32x16xf32> to vector<32xf32>
    %8 = vector.shape_cast %7 : vector<32xf32> to vector<32x1xf32>
    %cst_7 = arith.constant 1.600000e+01 : f32
    %9 = vector.broadcast %cst_7 : f32 to vector<32x1xf32>
    %10 = arith.divf %8, %9 : vector<32x1xf32>
    %11 = vector.broadcast %10 : vector<32x1xf32> to vector<32x16xf32>
    %12 = arith.subf %6, %11 : vector<32x16xf32>
    %13 = arith.mulf %12, %12 : vector<32x16xf32>
    %cst_8 = arith.constant dense<0.000000e+00> : vector<32xf32>
    %14 = vector.multi_reduction <add>, %13, %cst_8 [1] : vector<32x16xf32> to vector<32xf32>
    %15 = vector.shape_cast %14 : vector<32xf32> to vector<32x1xf32>
    %cst_9 = arith.constant 1.600000e+01 : f32
    %16 = vector.broadcast %cst_9 : f32 to vector<32x1xf32>
    %17 = arith.divf %15, %16 : vector<32x1xf32>
    %cst_10 = arith.constant 9.99999974E-6 : f32
    %18 = vector.broadcast %cst_10 : f32 to vector<32x1xf32>
    %19 = arith.addf %17, %18 : vector<32x1xf32>
    %20 = math.rsqrt %19 : vector<32x1xf32>
    %21 = vector.broadcast %20 : vector<32x1xf32> to vector<32x16xf32>
    %22 = arith.mulf %12, %21 : vector<32x16xf32>
    %c0_11 = arith.constant 0 : index
    %c0_12 = arith.constant 0 : index
    %c0_13 = arith.constant 0 : index
    %23 = vector.load %arg5[%c0_11, %c0_12, %c0_13] : memref<1x32x16xf32, #tpu.memory_space<vmem>>, vector<1x32x16xf32>
    %24 = vector.shape_cast %23 : vector<1x32x16xf32> to vector<32x16xf32>
    %25 = arith.addf %22, %24 : vector<32x16xf32>
    %c0_14 = arith.constant 0 : index
    %c0_15 = arith.constant 0 : index
    %c0_16 = arith.constant 0 : index
    %26 = vector.load %arg6[%c0_14, %c0_15, %c0_16] : memref<1x32x16xf32, #tpu.memory_space<vmem>>, vector<1x32x16xf32>
    %27 = vector.shape_cast %26 : vector<1x32x16xf32> to vector<32x16xf32>
    %28 = vector.shape_cast %25 : vector<32x16xf32> to vector<1x32x16xf32>
    tpu.vector_store %arg6[%c0_14, %c0_15, %c0_16], %28 {strides = array<i32>} : memref<1x32x16xf32, #tpu.memory_space<vmem>>, vector<1x32x16xf32>,
    return
  }
  func.func @transform_0(%arg0: i32, %arg1: i32) -> (i32, i32) {
    %c0_i32 = arith.constant 0 : i32
    %c0_i32_0 = arith.constant 0 : i32
    %c0_i32_1 = arith.constant 0 : i32
    return %c0_i32, %c0_i32_0 : i32, i32
  }
  func.func @transform_1(%arg0: i32, %arg1: i32) -> (i32, i32) {
    %c0_i32 = arith.constant 0 : i32
    %c0_i32_0 = arith.constant 0 : i32
    %c0_i32_1 = arith.constant 0 : i32
    return %c0_i32, %c0_i32_0 : i32, i32
  }
  func.func @transform_2(%arg0: i32, %arg1: i32) -> (i32, i32, i32) {
    %c0_i32 = arith.constant 0 : i32
    %c0_i32_0 = arith.constant 0 : i32
    return %arg0, %c0_i32, %arg1 : i32, i32, i32
  }
  func.func @transform_3(%arg0: i32, %arg1: i32) -> (i32, i32, i32) {
    %c0_i32 = arith.constant 0 : i32
    %c0_i32_0 = arith.constant 0 : i32
    %c0_i32_1 = arith.constant 0 : i32
    return %arg0, %c0_i32, %c0_i32_0 : i32, i32, i32
  }
  func.func @transform_4(%arg0: i32, %arg1: i32) -> (i32, i32, i32) {
    %c0_i32 = arith.constant 0 : i32
    %c0_i32_0 = arith.constant 0 : i32
    %c0_i32_1 = arith.constant 0 : i32
    return %arg0, %c0_i32, %c0_i32_0 : i32, i32, i32
  }
}

module attributes {stable_mosaic.version = 11 : i64} {
  func.func @kernel(%arg0: i32, %arg1: i32, %arg2: memref<64x128xbf16, #tpu.memory_space<vmem>>, %arg3: memref<64x1xf32, #tpu.memory_space<vmem>>, %arg4: memref<1x128x16xbf16, #tpu.memory_space<vmem>>, %arg5: memref<1x64x16xf32, #tpu.memory_space<vmem>>) attributes {dimension_semantics = [#tpu.dimension_semantics<parallel>, #tpu.dimension_semantics<arbitrary>], iteration_bounds = array<i64: 2, 1>, scalar_prefetch = 0 : i64, scratch_operands = 0 : i64, tpu.core_type = #tpu.core_type<tc>, window_params = [{pipeline_mode = #tpu.pipeline_mode<synchronous>, transform_indices = @transform_0, window_bounds = array<i64: 64, 128>}, {pipeline_mode = #tpu.pipeline_mode<synchronous>, transform_indices = @transform_1, window_bounds = array<i64: 64, 1>}, {transform_indices = @transform_2, window_bounds = array<i64: 1, 128, 16>}, {transform_indices = @transform_3, window_bounds = array<i64: 1, 64, 16>}]} {
    %c0 = arith.constant 0 : index
    %c0_0 = arith.constant 0 : index
    %0 = vector.load %arg2[%c0, %c0_0] : memref<64x128xbf16, #tpu.memory_space<vmem>>, vector<64x128xbf16>
    %c0_1 = arith.constant 0 : index
    %c0_2 = arith.constant 0 : index
    %c0_3 = arith.constant 0 : index
    %1 = vector.load %arg4[%c0_1, %c0_2, %c0_3] : memref<1x128x16xbf16, #tpu.memory_space<vmem>>, vector<1x128x16xbf16>
    %2 = vector.shape_cast %1 : vector<1x128x16xbf16> to vector<128x16xbf16>
    %cst = arith.constant dense<0.000000e+00> : vector<64x16xf32>
    %3 = tpu.matmul %0, %2, %cst {dimension_numbers = #tpu.dot_dimension_numbers<[1], [0], [0], [1], [0, 0, 1, 1], [], []>} : vector<64x128xbf16>, vector<128x16xbf16>, vector<64x16xf32> -> vector<64x16xf32>
    %c0_4 = arith.constant 0 : index
    %c0_5 = arith.constant 0 : index
    %4 = vector.load %arg3[%c0_4, %c0_5] : memref<64x1xf32, #tpu.memory_space<vmem>>, vector<64x1xf32>
    %5 = vector.broadcast %4 : vector<64x1xf32> to vector<64x16xf32>
    %6 = arith.addf %3, %5 : vector<64x16xf32>
    %cst_6 = arith.constant dense<0.000000e+00> : vector<64xf32>
    %7 = vector.multi_reduction <add>, %6, %cst_6 [1] : vector<64x16xf32> to vector<64xf32>
    %8 = vector.shape_cast %7 : vector<64xf32> to vector<64x1xf32>
    %9 = vector.extract_strided_slice %8 {offsets = [0, 0], sizes = [16, 1], strides = [1, 1]} : vector<64x1xf32> to vector<16x1xf32>
    %10 = vector.extract_strided_slice %8 {offsets = [16, 0], sizes = [16, 1], strides = [1, 1]} : vector<64x1xf32> to vector<16x1xf32>
    %11 = arith.addf %9, %10 : vector<16x1xf32>
    %12 = vector.extract_strided_slice %8 {offsets = [32, 0], sizes = [16, 1], strides = [1, 1]} : vector<64x1xf32> to vector<16x1xf32>
    %13 = arith.addf %11, %12 : vector<16x1xf32>
    %14 = vector.extract_strided_slice %8 {offsets = [48, 0], sizes = [16, 1], strides = [1, 1]} : vector<64x1xf32> to vector<16x1xf32>
    %15 = arith.addf %13, %14 : vector<16x1xf32>
    %16 = tpu.concatenate %15, %15, %15, %15 in 0 : vector<16x1xf32>, vector<16x1xf32>, vector<16x1xf32>, vector<16x1xf32> -> vector<64x1xf32>
    %cst_7 = arith.constant 6.400000e+01 : f32
    %17 = vector.broadcast %cst_7 : f32 to vector<64x1xf32>
    %18 = arith.divf %16, %17 : vector<64x1xf32>
    %19 = vector.broadcast %18 : vector<64x1xf32> to vector<64x16xf32>
    %20 = arith.subf %6, %19 : vector<64x16xf32>
    %21 = arith.mulf %20, %20 : vector<64x16xf32>
    %cst_8 = arith.constant dense<0.000000e+00> : vector<64xf32>
    %22 = vector.multi_reduction <add>, %21, %cst_8 [1] : vector<64x16xf32> to vector<64xf32>
    %23 = vector.shape_cast %22 : vector<64xf32> to vector<64x1xf32>
    %24 = vector.extract_strided_slice %23 {offsets = [0, 0], sizes = [16, 1], strides = [1, 1]} : vector<64x1xf32> to vector<16x1xf32>
    %25 = vector.extract_strided_slice %23 {offsets = [16, 0], sizes = [16, 1], strides = [1, 1]} : vector<64x1xf32> to vector<16x1xf32>
    %26 = arith.addf %24, %25 : vector<16x1xf32>
    %27 = vector.extract_strided_slice %23 {offsets = [32, 0], sizes = [16, 1], strides = [1, 1]} : vector<64x1xf32> to vector<16x1xf32>
    %28 = arith.addf %26, %27 : vector<16x1xf32>
    %29 = vector.extract_strided_slice %23 {offsets = [48, 0], sizes = [16, 1], strides = [1, 1]} : vector<64x1xf32> to vector<16x1xf32>
    %30 = arith.addf %28, %29 : vector<16x1xf32>
    %31 = tpu.concatenate %30, %30, %30, %30 in 0 : vector<16x1xf32>, vector<16x1xf32>, vector<16x1xf32>, vector<16x1xf32> -> vector<64x1xf32>
    %cst_9 = arith.constant 6.400000e+01 : f32
    %32 = vector.broadcast %cst_9 : f32 to vector<64x1xf32>
    %33 = arith.divf %31, %32 : vector<64x1xf32>
    %cst_10 = arith.constant 9.99999974E-6 : f32
    %34 = vector.broadcast %cst_10 : f32 to vector<64x1xf32>
    %35 = arith.addf %33, %34 : vector<64x1xf32>
    %36 = math.rsqrt %35 : vector<64x1xf32>
    %37 = vector.broadcast %36 : vector<64x1xf32> to vector<64x16xf32>
    %38 = arith.mulf %20, %37 : vector<64x16xf32>
    %cst_11 = arith.constant 0.000000e+00 : f32
    %39 = vector.broadcast %cst_11 : f32 to vector<64x16xf32>
    %40 = arith.cmpf ogt, %38, %39 : vector<64x16xf32>
    %41 = math.exp %38 : vector<64x16xf32>
    %cst_12 = arith.constant 1.000000e+00 : f32
    %42 = vector.broadcast %cst_12 : f32 to vector<64x16xf32>
    %43 = arith.subf %41, %42 : vector<64x16xf32>
    %cst_13 = arith.constant 1.67326319 : f32
    %44 = vector.broadcast %cst_13 : f32 to vector<64x16xf32>
    %45 = arith.mulf %44, %43 : vector<64x16xf32>
    %46 = arith.select %40, %38, %45 : vector<64x16xi1>, vector<64x16xf32>
    %cst_14 = arith.constant 1.05070102 : f32
    %47 = vector.broadcast %cst_14 : f32 to vector<64x16xf32>
    %48 = arith.mulf %47, %46 : vector<64x16xf32>
    %c0_15 = arith.constant 0 : index
    %c0_16 = arith.constant 0 : index
    %c0_17 = arith.constant 0 : index
    %49 = vector.load %arg5[%c0_15, %c0_16, %c0_17] : memref<1x64x16xf32, #tpu.memory_space<vmem>>, vector<1x64x16xf32>
    %50 = vector.shape_cast %49 : vector<1x64x16xf32> to vector<64x16xf32>
    %51 = vector.shape_cast %48 : vector<64x16xf32> to vector<1x64x16xf32>
    tpu.vector_store %arg5[%c0_15, %c0_16, %c0_17], %51 {strides = array<i32>} : memref<1x64x16xf32, #tpu.memory_space<vmem>>, vector<1x64x16xf32>,
    return
  }
  func.func @transform_0(%arg0: i32, %arg1: i32) -> (i32, i32) {
    %c0_i32 = arith.constant 0 : i32
    %c0_i32_0 = arith.constant 0 : i32
    %c0_i32_1 = arith.constant 0 : i32
    return %c0_i32, %c0_i32_0 : i32, i32
  }
  func.func @transform_1(%arg0: i32, %arg1: i32) -> (i32, i32) {
    %c0_i32 = arith.constant 0 : i32
    %c0_i32_0 = arith.constant 0 : i32
    %c0_i32_1 = arith.constant 0 : i32
    return %c0_i32, %c0_i32_0 : i32, i32
  }
  func.func @transform_2(%arg0: i32, %arg1: i32) -> (i32, i32, i32) {
    %c0_i32 = arith.constant 0 : i32
    %c0_i32_0 = arith.constant 0 : i32
    return %arg0, %c0_i32, %arg1 : i32, i32, i32
  }
  func.func @transform_3(%arg0: i32, %arg1: i32) -> (i32, i32, i32) {
    %c0_i32 = arith.constant 0 : i32
    %c0_i32_0 = arith.constant 0 : i32
    %c0_i32_1 = arith.constant 0 : i32
    return %arg0, %c0_i32, %c0_i32_0 : i32, i32, i32
  }
}

module attributes {stable_mosaic.version = 11 : i64} {
  func.func @kernel(%arg0: i32, %arg1: i32, %arg2: memref<32x64xbf16, #tpu.memory_space<vmem>>, %arg3: memref<32x1xf32, #tpu.memory_space<vmem>>, %arg4: memref<1x64x64xbf16, #tpu.memory_space<vmem>>, %arg5: memref<1x32x64xf32, #tpu.memory_space<vmem>>) attributes {dimension_semantics = [#tpu.dimension_semantics<parallel>, #tpu.dimension_semantics<arbitrary>], iteration_bounds = array<i64: 2, 1>, scalar_prefetch = 0 : i64, scratch_operands = 0 : i64, tpu.core_type = #tpu.core_type<tc>, window_params = [{pipeline_mode = #tpu.pipeline_mode<synchronous>, transform_indices = @transform_0, window_bounds = array<i64: 32, 64>}, {pipeline_mode = #tpu.pipeline_mode<synchronous>, transform_indices = @transform_1, window_bounds = array<i64: 32, 1>}, {transform_indices = @transform_2, window_bounds = array<i64: 1, 64, 64>}, {transform_indices = @transform_3, window_bounds = array<i64: 1, 32, 64>}]} {
    %c0 = arith.constant 0 : index
    %c0_0 = arith.constant 0 : index
    %0 = vector.load %arg2[%c0, %c0_0] : memref<32x64xbf16, #tpu.memory_space<vmem>>, vector<32x64xbf16>
    %c0_1 = arith.constant 0 : index
    %c0_2 = arith.constant 0 : index
    %c0_3 = arith.constant 0 : index
    %1 = vector.load %arg4[%c0_1, %c0_2, %c0_3] : memref<1x64x64xbf16, #tpu.memory_space<vmem>>, vector<1x64x64xbf16>
    %2 = vector.shape_cast %1 : vector<1x64x64xbf16> to vector<64x64xbf16>
    %cst = arith.constant dense<0.000000e+00> : vector<32x64xf32>
    %3 = tpu.matmul %0, %2, %cst {dimension_numbers = #tpu.dot_dimension_numbers<[1], [0], [0], [1], [0, 0, 1, 1], [], []>} : vector<32x64xbf16>, vector<64x64xbf16>, vector<32x64xf32> -> vector<32x64xf32>
    %c0_4 = arith.constant 0 : index
    %c0_5 = arith.constant 0 : index
    %4 = vector.load %arg3[%c0_4, %c0_5] : memref<32x1xf32, #tpu.memory_space<vmem>>, vector<32x1xf32>
    %5 = vector.broadcast %4 : vector<32x1xf32> to vector<32x64xf32>
    %6 = arith.addf %3, %5 : vector<32x64xf32>
    %cst_6 = arith.constant dense<0.000000e+00> : vector<32xf32>
    %7 = vector.multi_reduction <add>, %6, %cst_6 [1] : vector<32x64xf32> to vector<32xf32>
    %8 = vector.shape_cast %7 : vector<32xf32> to vector<32x1xf32>
    %9 = vector.extract_strided_slice %8 {offsets = [0, 0], sizes = [8, 1], strides = [1, 1]} : vector<32x1xf32> to vector<8x1xf32>
    %10 = vector.extract_strided_slice %8 {offsets = [8, 0], sizes = [8, 1], strides = [1, 1]} : vector<32x1xf32> to vector<8x1xf32>
    %11 = arith.addf %9, %10 : vector<8x1xf32>
    %12 = vector.extract_strided_slice %8 {offsets = [16, 0], sizes = [8, 1], strides = [1, 1]} : vector<32x1xf32> to vector<8x1xf32>
    %13 = arith.addf %11, %12 : vector<8x1xf32>
    %14 = vector.extract_strided_slice %8 {offsets = [24, 0], sizes = [8, 1], strides = [1, 1]} : vector<32x1xf32> to vector<8x1xf32>
    %15 = arith.addf %13, %14 : vector<8x1xf32>
    %16 = tpu.concatenate %15, %15, %15, %15 in 0 : vector<8x1xf32>, vector<8x1xf32>, vector<8x1xf32>, vector<8x1xf32> -> vector<32x1xf32>
    %cst_7 = arith.constant 2.560000e+02 : f32
    %17 = vector.broadcast %cst_7 : f32 to vector<32x1xf32>
    %18 = arith.divf %16, %17 : vector<32x1xf32>
    %19 = vector.broadcast %18 : vector<32x1xf32> to vector<32x64xf32>
    %20 = arith.subf %6, %19 : vector<32x64xf32>
    %21 = arith.mulf %20, %20 : vector<32x64xf32>
    %cst_8 = arith.constant dense<0.000000e+00> : vector<32xf32>
    %22 = vector.multi_reduction <add>, %21, %cst_8 [1] : vector<32x64xf32> to vector<32xf32>
    %23 = vector.shape_cast %22 : vector<32xf32> to vector<32x1xf32>
    %24 = vector.extract_strided_slice %23 {offsets = [0, 0], sizes = [8, 1], strides = [1, 1]} : vector<32x1xf32> to vector<8x1xf32>
    %25 = vector.extract_strided_slice %23 {offsets = [8, 0], sizes = [8, 1], strides = [1, 1]} : vector<32x1xf32> to vector<8x1xf32>
    %26 = arith.addf %24, %25 : vector<8x1xf32>
    %27 = vector.extract_strided_slice %23 {offsets = [16, 0], sizes = [8, 1], strides = [1, 1]} : vector<32x1xf32> to vector<8x1xf32>
    %28 = arith.addf %26, %27 : vector<8x1xf32>
    %29 = vector.extract_strided_slice %23 {offsets = [24, 0], sizes = [8, 1], strides = [1, 1]} : vector<32x1xf32> to vector<8x1xf32>
    %30 = arith.addf %28, %29 : vector<8x1xf32>
    %31 = tpu.concatenate %30, %30, %30, %30 in 0 : vector<8x1xf32>, vector<8x1xf32>, vector<8x1xf32>, vector<8x1xf32> -> vector<32x1xf32>
    %cst_9 = arith.constant 2.560000e+02 : f32
    %32 = vector.broadcast %cst_9 : f32 to vector<32x1xf32>
    %33 = arith.divf %31, %32 : vector<32x1xf32>
    %cst_10 = arith.constant 9.99999974E-6 : f32
    %34 = vector.broadcast %cst_10 : f32 to vector<32x1xf32>
    %35 = arith.addf %33, %34 : vector<32x1xf32>
    %36 = math.rsqrt %35 : vector<32x1xf32>
    %37 = vector.broadcast %36 : vector<32x1xf32> to vector<32x64xf32>
    %38 = arith.mulf %20, %37 : vector<32x64xf32>
    %cst_11 = arith.constant 0.000000e+00 : f32
    %39 = vector.broadcast %cst_11 : f32 to vector<32x64xf32>
    %40 = arith.cmpf ogt, %38, %39 : vector<32x64xf32>
    %41 = math.exp %38 : vector<32x64xf32>
    %cst_12 = arith.constant 1.000000e+00 : f32
    %42 = vector.broadcast %cst_12 : f32 to vector<32x64xf32>
    %43 = arith.subf %41, %42 : vector<32x64xf32>
    %cst_13 = arith.constant 1.67326319 : f32
    %44 = vector.broadcast %cst_13 : f32 to vector<32x64xf32>
    %45 = arith.mulf %44, %43 : vector<32x64xf32>
    %46 = arith.select %40, %38, %45 : vector<32x64xi1>, vector<32x64xf32>
    %cst_14 = arith.constant 1.05070102 : f32
    %47 = vector.broadcast %cst_14 : f32 to vector<32x64xf32>
    %48 = arith.mulf %47, %46 : vector<32x64xf32>
    %c0_15 = arith.constant 0 : index
    %c0_16 = arith.constant 0 : index
    %c0_17 = arith.constant 0 : index
    %49 = vector.load %arg5[%c0_15, %c0_16, %c0_17] : memref<1x32x64xf32, #tpu.memory_space<vmem>>, vector<1x32x64xf32>
    %50 = vector.shape_cast %49 : vector<1x32x64xf32> to vector<32x64xf32>
    %51 = vector.shape_cast %48 : vector<32x64xf32> to vector<1x32x64xf32>
    tpu.vector_store %arg5[%c0_15, %c0_16, %c0_17], %51 {strides = array<i32>} : memref<1x32x64xf32, #tpu.memory_space<vmem>>, vector<1x32x64xf32>,
    return
  }
  func.func @transform_0(%arg0: i32, %arg1: i32) -> (i32, i32) {
    %c0_i32 = arith.constant 0 : i32
    %c0_i32_0 = arith.constant 0 : i32
    %c0_i32_1 = arith.constant 0 : i32
    return %c0_i32, %c0_i32_0 : i32, i32
  }
  func.func @transform_1(%arg0: i32, %arg1: i32) -> (i32, i32) {
    %c0_i32 = arith.constant 0 : i32
    %c0_i32_0 = arith.constant 0 : i32
    %c0_i32_1 = arith.constant 0 : i32
    return %c0_i32, %c0_i32_0 : i32, i32
  }
  func.func @transform_2(%arg0: i32, %arg1: i32) -> (i32, i32, i32) {
    %c0_i32 = arith.constant 0 : i32
    %c0_i32_0 = arith.constant 0 : i32
    return %arg0, %c0_i32, %arg1 : i32, i32, i32
  }
  func.func @transform_3(%arg0: i32, %arg1: i32) -> (i32, i32, i32) {
    %c0_i32 = arith.constant 0 : i32
    %c0_i32_0 = arith.constant 0 : i32
    %c0_i32_1 = arith.constant 0 : i32
    return %arg0, %c0_i32, %c0_i32_0 : i32, i32, i32
  }
}

module attributes {stable_mosaic.version = 11 : i64} {
  func.func @kernel(%arg0: i32, %arg1: i32, %arg2: memref<3x512xbf16, #tpu.memory_space<vmem>>, %arg3: memref<3x1xf32, #tpu.memory_space<vmem>>, %arg4: memref<1x512x225xbf16, #tpu.memory_space<vmem>>, %arg5: memref<1x3x225xf32, #tpu.memory_space<vmem>>) attributes {dimension_semantics = [#tpu.dimension_semantics<parallel>, #tpu.dimension_semantics<arbitrary>], iteration_bounds = array<i64: 2, 1>, scalar_prefetch = 0 : i64, scratch_operands = 0 : i64, tpu.core_type = #tpu.core_type<tc>, window_params = [{pipeline_mode = #tpu.pipeline_mode<synchronous>, transform_indices = @transform_0, window_bounds = array<i64: 3, 512>}, {pipeline_mode = #tpu.pipeline_mode<synchronous>, transform_indices = @transform_1, window_bounds = array<i64: 3, 1>}, {transform_indices = @transform_2, window_bounds = array<i64: 1, 512, 225>}, {transform_indices = @transform_3, window_bounds = array<i64: 1, 3, 225>}]} {
    %c0 = arith.constant 0 : index
    %c0_0 = arith.constant 0 : index
    %0 = vector.load %arg2[%c0, %c0_0] : memref<3x512xbf16, #tpu.memory_space<vmem>>, vector<3x512xbf16>
    %c0_1 = arith.constant 0 : index
    %c0_2 = arith.constant 0 : index
    %c0_3 = arith.constant 0 : index
    %1 = vector.load %arg4[%c0_1, %c0_2, %c0_3] : memref<1x512x225xbf16, #tpu.memory_space<vmem>>, vector<1x512x225xbf16>
    %2 = vector.shape_cast %1 : vector<1x512x225xbf16> to vector<512x225xbf16>
    %cst = arith.constant dense<0.000000e+00> : vector<3x225xf32>
    %3 = tpu.matmul %0, %2, %cst {dimension_numbers = #tpu.dot_dimension_numbers<[1], [0], [0], [1], [0, 0, 1, 1], [], []>} : vector<3x512xbf16>, vector<512x225xbf16>, vector<3x225xf32> -> vector<3x225xf32>
    %c0_4 = arith.constant 0 : index
    %c0_5 = arith.constant 0 : index
    %4 = vector.load %arg3[%c0_4, %c0_5] : memref<3x1xf32, #tpu.memory_space<vmem>>, vector<3x1xf32>
    %5 = vector.broadcast %4 : vector<3x1xf32> to vector<3x225xf32>
    %6 = arith.addf %3, %5 : vector<3x225xf32>
    %7 = math.tanh %6 : vector<3x225xf32>
    %c0_6 = arith.constant 0 : index
    %c0_7 = arith.constant 0 : index
    %c0_8 = arith.constant 0 : index
    %8 = vector.load %arg5[%c0_6, %c0_7, %c0_8] : memref<1x3x225xf32, #tpu.memory_space<vmem>>, vector<1x3x225xf32>
    %9 = vector.shape_cast %8 : vector<1x3x225xf32> to vector<3x225xf32>
    %10 = vector.shape_cast %7 : vector<3x225xf32> to vector<1x3x225xf32>
    tpu.vector_store %arg5[%c0_6, %c0_7, %c0_8], %10 {strides = array<i32>} : memref<1x3x225xf32, #tpu.memory_space<vmem>>, vector<1x3x225xf32>,
    return
  }
  func.func @transform_0(%arg0: i32, %arg1: i32) -> (i32, i32) {
    %c0_i32 = arith.constant 0 : i32
    %c0_i32_0 = arith.constant 0 : i32
    %c0_i32_1 = arith.constant 0 : i32
    return %c0_i32, %c0_i32_0 : i32, i32
  }
  func.func @transform_1(%arg0: i32, %arg1: i32) -> (i32, i32) {
    %c0_i32 = arith.constant 0 : i32
    %c0_i32_0 = arith.constant 0 : i32
    %c0_i32_1 = arith.constant 0 : i32
    return %c0_i32, %c0_i32_0 : i32, i32
  }
  func.func @transform_2(%arg0: i32, %arg1: i32) -> (i32, i32, i32) {
    %c0_i32 = arith.constant 0 : i32
    %c0_i32_0 = arith.constant 0 : i32
    return %arg0, %c0_i32, %arg1 : i32, i32, i32
  }
  func.func @transform_3(%arg0: i32, %arg1: i32) -> (i32, i32, i32) {
    %c0_i32 = arith.constant 0 : i32
    %c0_i32_0 = arith.constant 0 : i32
    %c0_i32_1 = arith.constant 0 : i32
    return %arg0, %c0_i32, %c0_i32_0 : i32, i32, i32
  }
}

</mosaic_0001>

<llo_original>
// kernel: resnet_generator.18
$region0: #{resnet_generator.18}
  #allocation0 [shape = 'u32[]', space=smem, size = 0x4, offset = 0x4, fixed_abs, tag = 'smem constant byte address 0x4 - core index']
  #allocation1 [shape = 'u32[144,128]{1,0:T(1,128)}', space=vmem, size = 0x12000, scoped, tag = 'internal scratch']
  %s0 = inlined_call_operand.vmem [shape: bf16[8,147], index: 0, kind: input, shape index: {}]
  %s1 = inlined_call_operand.vmem [shape: f32[8,1], index: 1, kind: input, shape index: {}]
  %s2 = inlined_call_operand.vmem [shape: bf16[2,147,256], index: 2, kind: input, shape index: {}]
  %s3 = inlined_call_operand.vmem [shape: f32[2,8,256], index: 3, kind: output, shape index: {}]
  %s4 = sld [smem:[#allocation0]]
  $region45: #{resnet_generator.18} parent=0
    _
  %s6 = ssub.s32 1, %s4
  %s7 = scalar_select 0, %s6, %s4
  loop: start=0, step=1, limit=4
  $region2: #{resnet_generator.18} parent=0 // loop_pre_header
    _
  $region3: #{resnet_generator.18} parent=0 // loop_header
    %s9 = sphi 0, %s13
    %p10 = scmp.ge.s32.totalorder %s9, 4
    %s16 = sphi 0, %s28
    %s17 = sphi 0, %s24
    %s18 = sphi 0, %s16
    %s19 = sphi 0, %s17
    %s20 = sphi 0, %s18
    %s21 = sphi 0, %s19
    %s29 = sphi 0, %s29
    %s31 = sphi 0, %s29
    %s32 = sphi 0, %s31
    %s46 = sphi 0, %s32
    %s50 = sphi 0, %s50
    %s52 = sphi 0, %s50
    %s53 = sphi 0, %s52
    %s67 = sphi 0, %s53
    %s75 = sphi 0, %s77
    %s78 = sphi 0, %s75
    %s79 = sphi 0, %s78
    %s95 = sphi 0, %s79
    %s101 = sphi 0, %s103
    %s104 = sphi 0, %s101
    %s105 = sphi 0, %s104
    %s121 = sphi 0, %s105
  $region4: #{resnet_generator.18} parent=0 // loop_header_branch
    %12 = sbr.rel (%p10) target = $region8
  $region5: #{resnet_generator.18} parent=0 // loop_body
    %s14 = ssub.s32 %s9, 1
    %s15 = ssub.s32 %s9, 2
    %s22 = sadd.s32 1, %s17
    %p23 = scmp.ge.s32.totalorder %s22, 1
    %s24 = scalar_select %p23, 0, %s22
    %s25 = sadd.s32 1, %s16
    %s26 = scalar_select %p23, %s25, %s16
    %p27 = scmp.ge.s32.totalorder %s26, 2
    %s28 = scalar_select %p27, 0, %s26
    %s30 = sadd.s32 %s29, 1
    %p33 = scmp.eq.s32.totalorder %s9, 1
    %p34 = scmp.ne.s32.totalorder %s29, %s31
    %p35 = scmp.eq.s32.totalorder %s9, 0
    %p36 = por %p34, %p35
    %p37 = scmp.ne.s32.totalorder %s29, %s31
    %p38 = scmp.eq.s32.totalorder %s14, 1
    %p39 = por %p37, %p38
    %p40 = scmp.ne.s32.totalorder %s31, %s32
    %p41 = scmp.eq.s32.totalorder %s14, 0
    %p42 = por %p40, %p41
    %p43 = scmp.ne.s32.totalorder %s31, %s32
    %p44 = scmp.eq.s32.totalorder %s15, 1
    %p45 = por %p43, %p44
    %p47 = scmp.ne.s32.totalorder %s32, %s46
    %p48 = scmp.eq.s32.totalorder %s15, 0
    %p49 = por %p47, %p48
    %s51 = sadd.s32 %s50, 1
    %p54 = scmp.eq.s32.totalorder %s9, 1
    %p55 = scmp.ne.s32.totalorder %s50, %s52
    %p56 = scmp.eq.s32.totalorder %s9, 0
    %p57 = por %p55, %p56
    %p58 = scmp.ne.s32.totalorder %s50, %s52
    %p59 = scmp.eq.s32.totalorder %s14, 1
    %p60 = por %p58, %p59
    %p61 = scmp.ne.s32.totalorder %s52, %s53
    %p62 = scmp.eq.s32.totalorder %s14, 0
    %p63 = por %p61, %p62
    %p64 = scmp.ne.s32.totalorder %s52, %s53
    %p65 = scmp.eq.s32.totalorder %s15, 1
    %p66 = por %p64, %p65
    %p68 = scmp.ne.s32.totalorder %s53, %s67
    %p69 = scmp.eq.s32.totalorder %s15, 0
    %p70 = por %p68, %p69
    %s71 = ssub.s32 %s16, %s28
    %s72 = ssub.s32 %s17, %s24
    %s73 = sor.u32 %s71, %s72
    %p74 = scmp.eq.s32.totalorder %s73, 0
    %s76 = sadd.s32 %s75, 1
    %s77 = scalar_select %p74, %s75, %s76
    %p80 = pneg %p74
    %p81 = scmp.eq.s32.totalorder %s9, 1
    %p82 = por %p80, %p81
    %p83 = scmp.ne.s32.totalorder %s75, %s78
    %p84 = scmp.eq.s32.totalorder %s9, 0
    %p85 = por %p83, %p84
    %p86 = scmp.ne.s32.totalorder %s75, %s78
    %p87 = scmp.eq.s32.totalorder %s14, 1
    %p88 = por %p86, %p87
    %p89 = scmp.ne.s32.totalorder %s78, %s79
    %p90 = scmp.eq.s32.totalorder %s14, 0
    %p91 = por %p89, %p90
    %p92 = scmp.ne.s32.totalorder %s78, %s79
    %p93 = scmp.eq.s32.totalorder %s15, 1
    %p94 = por %p92, %p93
    %p96 = scmp.ne.s32.totalorder %s79, %s95
    %p97 = scmp.eq.s32.totalorder %s15, 0
    %p98 = por %p96, %p97
    %s99 = ssub.s32 %s16, %s28
    %p100 = scmp.eq.s32.totalorder %s99, 0
    %s102 = sadd.s32 %s101, 1
    %s103 = scalar_select %p100, %s101, %s102
    %p106 = pneg %p100
    %p107 = scmp.eq.s32.totalorder %s9, 1
    %p108 = por %p106, %p107
    %p109 = scmp.ne.s32.totalorder %s101, %s104
    %p110 = scmp.eq.s32.totalorder %s9, 0
    %p111 = por %p109, %p110
    %p112 = scmp.ne.s32.totalorder %s101, %s104
    %p113 = scmp.eq.s32.totalorder %s14, 1
    %p114 = por %p112, %p113
    %p115 = scmp.ne.s32.totalorder %s104, %s105
    %p116 = scmp.eq.s32.totalorder %s14, 0
    %p117 = por %p115, %p116
    %p118 = scmp.ne.s32.totalorder %s104, %s105
    %p119 = scmp.eq.s32.totalorder %s15, 1
    %p120 = por %p118, %p119
    %p122 = scmp.ne.s32.totalorder %s105, %s121
    %p123 = scmp.eq.s32.totalorder %s15, 0
    %p124 = por %p122, %p123
    %p125 = scmp.le.s32.totalorder 1, %s9
    %p126 = scmp.lt.s32.totalorder %s9, 3
    %p127 = pnand %p125, %p126
    %p128 = pneg %p127
    // Predicated region
    $region9: #{resnet_generator.18} parent=5 // pred_check
      _
    $region10: #{resnet_generator.18} parent=5 // pred_check_branch
      %130 = sbr.rel (%p127) target = $region12
    $region11: #{resnet_generator.18} parent=5 // pred_region
      %s131 = ssub.s32 %s9, 1
      // Predicated region
      $region13: #{resnet_generator.18} parent=11 // pred_check
        %p132 = pneg %p42
      $region14: #{resnet_generator.18} parent=11 // pred_check_branch
        %134 = sbr.rel (%p132) target = $region16
      $region15: #{resnet_generator.18} parent=11 // pred_region
        _
      $region16: #{resnet_generator.18} parent=11 // pred_fallthru
        _
      // Predicated region
      $region17: #{resnet_generator.18} parent=11 // pred_check
        %p135 = pneg %p63
      $region18: #{resnet_generator.18} parent=11 // pred_check_branch
        %137 = sbr.rel (%p135) target = $region20
      $region19: #{resnet_generator.18} parent=11 // pred_region
        _
      $region20: #{resnet_generator.18} parent=11 // pred_fallthru
        _
    $region12: #{resnet_generator.18} parent=5 // pred_fallthru
      _
    %p138 = scmp.lt.s32.totalorder %s9, 2
    // Predicated region
    $region21: #{resnet_generator.18} parent=5 // pred_check
      %p139 = pneg %p138
    $region22: #{resnet_generator.18} parent=5 // pred_check_branch
      %141 = sbr.rel (%p139) target = $region24
    $region23: #{resnet_generator.18} parent=5 // pred_region
      // Predicated region
      $region25: #{resnet_generator.18} parent=23 // pred_check
        %p142 = pneg %p85
      $region26: #{resnet_generator.18} parent=23 // pred_check_branch
        %144 = sbr.rel (%p142) target = $region28
      $region27: #{resnet_generator.18} parent=23 // pred_region
        %s145 = smul.u32 2, %s17
        %p146 = scmp.lt.s32.totalorder %s16, 1
        %s147 = scalar_select %p146, %s16, 1
        %p148 = scmp.lt.s32.totalorder %s145, 1
        %s149 = scalar_select %p148, %s145, 1
        %s150 = smul.addr %s147, 38
        %s151 = sadd.s32 %s149, %s150
        %s152 = smul.addr %s151, 4
        %s153 = scalar_lea.vmem %s2, %s152
        %s154 = smul.u32 2, %s17
      $region28: #{resnet_generator.18} parent=23 // pred_fallthru
        _
    $region24: #{resnet_generator.18} parent=5 // pred_fallthru
      _
    %p155 = scmp.le.s32.totalorder 1, %s9
    %p156 = scmp.lt.s32.totalorder %s9, 3
    %p157 = pnand %p155, %p156
    %p158 = pneg %p157
    // Predicated region
    $region29: #{resnet_generator.18} parent=5 // pred_check
      _
    $region30: #{resnet_generator.18} parent=5 // pred_check_branch
      %160 = sbr.rel (%p157) target = $region32
    $region31: #{resnet_generator.18} parent=5 // pred_region
      %s161 = ssub.s32 %s9, 1
      %p162 = pneg %p42
      %p163 = pneg %p39
      %p164 = pneg %p63
      %p165 = pneg %p60
      %s166 = smul.u32 2, %s19
      %p167 = scmp.lt.s32.totalorder %s18, 1
      %s168 = scalar_select %p167, %s18, 1
      %p169 = scmp.lt.s32.totalorder %s166, 1
      %s170 = scalar_select %p169, %s166, 1
      %s171 = smul.addr %s168, 38
      %s172 = sadd.s32 %s170, %s171
      %s173 = smul.addr %s172, 4
      %s174 = scalar_lea.vmem %s2, %s173
      %p175 = pneg %p91
      %p176 = pneg %p88
      %p177 = pneg %p117
      %p178 = pneg %p114
      %p179 = scmp.lt.s32.totalorder %s18, 1
      %s180 = scalar_select %p179, %s18, 1
      %s181 = smul.addr %s180, 2
      %s182 = smul.addr %s181, 8
      %s183 = scalar_lea.vmem %s3, %s182
      %s184 = smul.u32 2, %s19
      %p185 = scmp.lt.s32.totalorder %s18, 1
      %s186 = scalar_select %p185, %s18, 1
      %p187 = scmp.lt.s32.totalorder %s184, 1
      %s188 = scalar_select %p187, %s184, 1
      %s189 = smul.addr %s186, 38
      %s190 = sadd.s32 %s188, %s189
      %s191 = smul.addr %s190, 4
      %s192 = scalar_lea.vmem %s2, %s191
      %s193 = smul.u32 2, %s19
      %p194 = scmp.lt.s32.totalorder %s18, 1
      %s195 = scalar_select %p194, %s18, 1
      %s196 = smul.addr %s195, 2
      %s197 = smul.addr %s196, 8
      %s198 = scalar_lea.vmem %s3, %s197
      %v200 = vld [vmem:[%s0] sm:$0xff]
      %v201 = vld [vmem:[%s192] sm:$0xff]
      %v202 = vld [vmem:[%s192 + $0x8] sm:$0xff]
      %v203 = vld [vmem:[%s192 + $0x10] sm:$0xff]
      %v204 = vld [vmem:[%s192 + $0x18] sm:$0xff]
      %v205 = vld [vmem:[%s192 + $0x20] sm:$0xff]
      %v206 = vld [vmem:[%s192 + $0x28] sm:$0xff]
      %v207 = vld [vmem:[%s192 + $0x30] sm:$0xff]
      %v208 = vld [vmem:[%s192 + $0x38] sm:$0xff]
      %v209 = vld [vmem:[%s192 + $0x40] sm:$0xff]
      %v210 = vld [vmem:[%s192 + $0x48] sm:$0xff]
      %v211 = vld [vmem:[%s192 + $0x50] sm:$0xff]
      %v212 = vld [vmem:[%s192 + $0x58] sm:$0xff]
      %v213 = vld [vmem:[%s192 + $0x60] sm:$0xff]
      %v214 = vld [vmem:[%s192 + $0x68] sm:$0xff]
      %v215 = vld [vmem:[%s192 + $0x70] sm:$0xff]
      %v216 = vld [vmem:[%s192 + $0x78] sm:$0xff]
      %v217 = vld [vmem:[%s192 + $0x80] sm:$0xff]
      %v218 = vld [vmem:[%s192 + $0x88] sm:$0xff]
      %v219 = vld [vmem:[%s192 + $0x90] sm:$0x33]
      %v220 = vld [vmem:[%s1] sm:$0xff]
      %222 = vset.pattern.permute.xlu0 0
      %223 = vperm.xlu0 %222, %v220
      %v224 = vpop.permute.xlu0 %223
      %v227 = vunpack.c.l.b16 %v200
      %v228 = vunpack.c.h.b16 %v200
      %v229 = vpack.c.b16 %v227, %v227
      %v230 = vpack.c.b16 %v228, %v228
      %v251 = vunpack.c.l.b16 %v201
      %v252 = vunpack.c.h.b16 %v201
      %v253 = vunpack.c.l.b16 %v202
      %v254 = vunpack.c.h.b16 %v202
      %v255 = vunpack.c.l.b16 %v203
      %v256 = vunpack.c.h.b16 %v203
      %v257 = vunpack.c.l.b16 %v204
      %v258 = vunpack.c.h.b16 %v204
      %v259 = vunpack.c.l.b16 %v205
      %v260 = vunpack.c.h.b16 %v205
      %v261 = vunpack.c.l.b16 %v206
      %v262 = vunpack.c.h.b16 %v206
      %v263 = vunpack.c.l.b16 %v207
      %v264 = vunpack.c.h.b16 %v207
      %v265 = vunpack.c.l.b16 %v208
      %v266 = vunpack.c.h.b16 %v208
      %v267 = vunpack.c.l.b16 %v209
      %v268 = vunpack.c.h.b16 %v209
      %v269 = vunpack.c.l.b16 %v210
      %v270 = vunpack.c.h.b16 %v210
      %v271 = vunpack.c.l.b16 %v211
      %v272 = vunpack.c.h.b16 %v211
      %v273 = vunpack.c.l.b16 %v212
      %v274 = vunpack.c.h.b16 %v212
      %v275 = vunpack.c.l.b16 %v213
      %v276 = vunpack.c.h.b16 %v213
      %v277 = vunpack.c.l.b16 %v214
      %v278 = vunpack.c.h.b16 %v214
      %v279 = vunpack.c.l.b16 %v215
      %v280 = vunpack.c.h.b16 %v215
      %v281 = vunpack.c.l.b16 %v216
      %v282 = vunpack.c.h.b16 %v216
      %v283 = vunpack.c.l.b16 %v217
      %v284 = vunpack.c.h.b16 %v217
      %v285 = vunpack.c.l.b16 %v218
      %v286 = vunpack.c.h.b16 %v218
      %v287 = vunpack.c.l.b16 %v219
      %v288 = vunpack.c.h.b16 %v219
      %v289 = vpack.c.b16 %v253, %v251
      %v290 = vpack.c.b16 %v254, %v252
      %v291 = vpack.c.b16 %v257, %v255
      %v292 = vpack.c.b16 %v258, %v256
      %v293 = vpack.c.b16 %v261, %v259
      %v294 = vpack.c.b16 %v262, %v260
      %v295 = vpack.c.b16 %v265, %v263
      %v296 = vpack.c.b16 %v266, %v264
      %v297 = vpack.c.b16 %v269, %v267
      %v298 = vpack.c.b16 %v270, %v268
      %v299 = vpack.c.b16 %v273, %v271
      %v300 = vpack.c.b16 %v274, %v272
      %v301 = vpack.c.b16 %v277, %v275
      %v302 = vpack.c.b16 %v278, %v276
      %v303 = vpack.c.b16 %v281, %v279
      %v304 = vpack.c.b16 %v282, %v280
      %v305 = vpack.c.b16 %v285, %v283
      %v306 = vpack.c.b16 %v286, %v284
      %v307 = vpack.c.b16 %v287, %v287
      %v308 = vpack.c.b16 %v288, %v288
      %vm327 = vcmask 154624
      %v329 = vsel %vm327, %v230, 0
      %vm331 = vcmask 1040384
      %vm332 = vcmask 1041408
      %v333 = vsel %vm331, 4294967295, 65535
      %v334 = vsel %vm332, %v333, 0
      %v336 = vand.u32 %v307, %v334
      %v339 = vand.u32 %v308, %v334
      %341 = vmatprep.subr.bf16.mxu0 %v304
      %342 = vmatpush1.bf16.msra.mxu0 %v303
      %343 = vmatprep.subr.bf16.mxu0 %v302
      %344 = vmatpush1.bf16.msra.mxu0 %v301
      %345 = vmatprep.subr.bf16.mxu0 %v300
      %346 = vmatpush1.bf16.msra.mxu0 %v299
      %347 = vmatprep.subr.bf16.mxu0 %v298
      %348 = vmatpush1.bf16.msra.mxu0 %v297
      %349 = vmatprep.subr.bf16.mxu0 %v296
      %350 = vmatpush1.bf16.msra.mxu0 %v295
      %351 = vmatprep.subr.bf16.mxu0 %v294
      %352 = vmatpush1.bf16.msra.mxu0 %v293
      %353 = vmatprep.subr.bf16.mxu0 %v292
      %354 = vmatpush1.bf16.msra.mxu0 %v291
      %355 = vmatprep.subr.bf16.mxu0 %v290
      %356 = vmatpush1.bf16.msra.mxu0 %v289
      %357 = vmatprep.subr.bf16.mxu0 0
      %358 = vmatpush2.bf16.msra.mxu0 0
      %359 = vmatprep.subr.bf16.mxu0 0
      %360 = vmatpush2.bf16.msra.mxu0 0
      %361 = vmatprep.subr.bf16.mxu0 0
      %362 = vmatpush2.bf16.msra.mxu0 0
      %363 = vmatprep.subr.bf16.mxu0 0
      %364 = vmatpush2.bf16.msra.mxu0 0
      %365 = vmatprep.subr.bf16.mxu0 0
      %366 = vmatpush2.bf16.msra.mxu0 0
      %367 = vmatprep.subr.bf16.mxu0 0
      %368 = vmatpush2.bf16.msra.mxu0 0
      %369 = vmatprep.subr.bf16.mxu0 %v339
      %370 = vmatpush2.bf16.msra.mxu0 %v336
      %371 = vmatprep.subr.bf16.mxu0 %v306
      %372 = vmatpush2.bf16.msra.mxu0 %v305
      %373 = vmatprep.mubr.bf16.mxu0 %v329
      %374 = vmatmul.mubr.bf16.gmra.mxu0 %v229
      %v375 = vpop.f32.mrf.mxu0
      %v376 = vadd.f32 %v224, %v375
      %v377 = vpop.f32.mrf.mxu0
      %v378 = vadd.f32 %v224, %v377
      %v379 = vpop.f32.mrf.mxu0
      %v380 = vpop.f32.mrf.mxu0
      %381 = vdwg.mxu0
      %v382 = vadd.f32 %v376, %v378
      %383 = vadd.xlane.f32.xlu0 %v382
      %v384 = vpop.xlane.xlu0 %383
      %v385 = vrcp.pop 256.0
      %v386 = vmul.f32 %v384, %v385
      %v387 = vsub.f32 %v376, %v386
      %v388 = vsub.f32 %v378, %v386
      %v389 = vmul.f32 %v387, %v387
      %v390 = vmul.f32 %v388, %v388
      %v391 = vadd.f32 %v389, %v390
      %392 = vadd.xlane.f32.xlu0 %v391
      %v393 = vpop.xlane.xlu0 %392
      %v394 = vmul.f32 %v393, %v385
      %v395 = vadd.f32 %v394, 1e-05
      %v396 = vrsqrt.pop %v395
      %v397 = vmul.f32 %v387, %v396
      %v398 = vmul.f32 %v388, %v396
      %vm399 = vcmp.gt.f32.partialorder %v397, 0.0
      %vm400 = vcmp.gt.f32.partialorder %v398, 0.0
      %v401 = vmul.f32 %v397, 1.442695
      %v402 = vpow.pop %v401
      %v403 = vmul.f32 %v398, 1.442695
      %v404 = vpow.pop %v403
      %v405 = vsub.f32 %v402, 1.0
      %v406 = vsub.f32 %v404, 1.0
      %v407 = vmul.f32 %v405, 1.6732632
      %v408 = vmul.f32 %v406, 1.6732632
      %v409 = vsel %vm399, %v397, %v407
      %v410 = vsel %vm400, %v398, %v408
      %v411 = vmul.f32 %v409, 1.050701
      %v412 = vmul.f32 %v410, 1.050701
      %413 = vst [vmem:[%s198] sm:$0xff] %v411
      %414 = vst [vmem:[%s198 + $0x8] sm:$0xff] %v412
      %p415 = scmp.lt.s32.totalorder %s18, 1
      %s416 = scalar_select %p415, %s18, 1
      %s417 = smul.addr %s416, 2
      %s418 = smul.addr %s417, 8
      %s419 = scalar_lea.vmem %s3, %s418
      // Predicated region
      $region33: #{resnet_generator.18} parent=31 // pred_check
        %p420 = pneg %p114
      $region34: #{resnet_generator.18} parent=31 // pred_check_branch
        %422 = sbr.rel (%p420) target = $region36
      $region35: #{resnet_generator.18} parent=31 // pred_region
        _
      $region36: #{resnet_generator.18} parent=31 // pred_fallthru
        _
    $region32: #{resnet_generator.18} parent=5 // pred_fallthru
      _
    %p423 = scmp.le.s32.totalorder 2, %s9
    // Predicated region
    $region37: #{resnet_generator.18} parent=5 // pred_check
      %p424 = pneg %p423
    $region38: #{resnet_generator.18} parent=5 // pred_check_branch
      %426 = sbr.rel (%p424) target = $region40
    $region39: #{resnet_generator.18} parent=5 // pred_region
      %s427 = ssub.s32 %s9, 2
      // Predicated region
      $region41: #{resnet_generator.18} parent=39 // pred_check
        %p428 = pneg %p120
      $region42: #{resnet_generator.18} parent=39 // pred_check_branch
        %430 = sbr.rel (%p428) target = $region44
      $region43: #{resnet_generator.18} parent=39 // pred_region
        %p431 = scmp.lt.s32.totalorder %s20, 1
        %s432 = scalar_select %p431, %s20, 1
        %s433 = smul.addr %s432, 2
        %s434 = smul.addr %s433, 8
        %s435 = scalar_lea.vmem %s3, %s434
      $region44: #{resnet_generator.18} parent=39 // pred_fallthru
        _
    $region40: #{resnet_generator.18} parent=5 // pred_fallthru
      _
  $region6: #{resnet_generator.18} parent=0 // loop_footer
    %s13 = sadd.s32 1, %s9
  $region7: #{resnet_generator.18} parent=0 // loop_footer_branch
    %8 = sbr.rel target = $region3
  $region8: #{resnet_generator.18} parent=0 // loop_exit
    _

// kernel: resnet_generator.19
$region0: #{resnet_generator.19}
  #allocation0 [shape = 'u32[]', space=smem, size = 0x4, offset = 0x4, fixed_abs, tag = 'smem constant byte address 0x4 - core index']
  #allocation1 [shape = 'u32[144,128]{1,0:T(1,128)}', space=vmem, size = 0x12000, scoped, tag = 'internal scratch']
  %s0 = inlined_call_operand.vmem [shape: bf16[16,72], index: 0, kind: input, shape index: {}]
  %s1 = inlined_call_operand.vmem [shape: f32[16,1], index: 1, kind: input, shape index: {}]
  %s2 = inlined_call_operand.vmem [shape: bf16[2,72,64], index: 2, kind: input, shape index: {}]
  %s3 = inlined_call_operand.vmem [shape: f32[2,16,64], index: 3, kind: output, shape index: {}]
  %s4 = sld [smem:[#allocation0]]
  $region45: #{resnet_generator.19} parent=0
    _
  %s6 = ssub.s32 1, %s4
  %s7 = scalar_select 0, %s6, %s4
  loop: start=0, step=1, limit=4
  $region2: #{resnet_generator.19} parent=0 // loop_pre_header
    _
  $region3: #{resnet_generator.19} parent=0 // loop_header
    %s9 = sphi 0, %s13
    %p10 = scmp.ge.s32.totalorder %s9, 4
    %s16 = sphi 0, %s28
    %s17 = sphi 0, %s24
    %s18 = sphi 0, %s16
    %s19 = sphi 0, %s17
    %s20 = sphi 0, %s18
    %s21 = sphi 0, %s19
    %s29 = sphi 0, %s29
    %s31 = sphi 0, %s29
    %s32 = sphi 0, %s31
    %s46 = sphi 0, %s32
    %s50 = sphi 0, %s50
    %s52 = sphi 0, %s50
    %s53 = sphi 0, %s52
    %s67 = sphi 0, %s53
    %s75 = sphi 0, %s77
    %s78 = sphi 0, %s75
    %s79 = sphi 0, %s78
    %s95 = sphi 0, %s79
    %s101 = sphi 0, %s103
    %s104 = sphi 0, %s101
    %s105 = sphi 0, %s104
    %s121 = sphi 0, %s105
  $region4: #{resnet_generator.19} parent=0 // loop_header_branch
    %12 = sbr.rel (%p10) target = $region8
  $region5: #{resnet_generator.19} parent=0 // loop_body
    %s14 = ssub.s32 %s9, 1
    %s15 = ssub.s32 %s9, 2
    %s22 = sadd.s32 1, %s17
    %p23 = scmp.ge.s32.totalorder %s22, 1
    %s24 = scalar_select %p23, 0, %s22
    %s25 = sadd.s32 1, %s16
    %s26 = scalar_select %p23, %s25, %s16
    %p27 = scmp.ge.s32.totalorder %s26, 2
    %s28 = scalar_select %p27, 0, %s26
    %s30 = sadd.s32 %s29, 1
    %p33 = scmp.eq.s32.totalorder %s9, 1
    %p34 = scmp.ne.s32.totalorder %s29, %s31
    %p35 = scmp.eq.s32.totalorder %s9, 0
    %p36 = por %p34, %p35
    %p37 = scmp.ne.s32.totalorder %s29, %s31
    %p38 = scmp.eq.s32.totalorder %s14, 1
    %p39 = por %p37, %p38
    %p40 = scmp.ne.s32.totalorder %s31, %s32
    %p41 = scmp.eq.s32.totalorder %s14, 0
    %p42 = por %p40, %p41
    %p43 = scmp.ne.s32.totalorder %s31, %s32
    %p44 = scmp.eq.s32.totalorder %s15, 1
    %p45 = por %p43, %p44
    %p47 = scmp.ne.s32.totalorder %s32, %s46
    %p48 = scmp.eq.s32.totalorder %s15, 0
    %p49 = por %p47, %p48
    %s51 = sadd.s32 %s50, 1
    %p54 = scmp.eq.s32.totalorder %s9, 1
    %p55 = scmp.ne.s32.totalorder %s50, %s52
    %p56 = scmp.eq.s32.totalorder %s9, 0
    %p57 = por %p55, %p56
    %p58 = scmp.ne.s32.totalorder %s50, %s52
    %p59 = scmp.eq.s32.totalorder %s14, 1
    %p60 = por %p58, %p59
    %p61 = scmp.ne.s32.totalorder %s52, %s53
    %p62 = scmp.eq.s32.totalorder %s14, 0
    %p63 = por %p61, %p62
    %p64 = scmp.ne.s32.totalorder %s52, %s53
    %p65 = scmp.eq.s32.totalorder %s15, 1
    %p66 = por %p64, %p65
    %p68 = scmp.ne.s32.totalorder %s53, %s67
    %p69 = scmp.eq.s32.totalorder %s15, 0
    %p70 = por %p68, %p69
    %s71 = ssub.s32 %s16, %s28
    %s72 = ssub.s32 %s17, %s24
    %s73 = sor.u32 %s71, %s72
    %p74 = scmp.eq.s32.totalorder %s73, 0
    %s76 = sadd.s32 %s75, 1
    %s77 = scalar_select %p74, %s75, %s76
    %p80 = pneg %p74
    %p81 = scmp.eq.s32.totalorder %s9, 1
    %p82 = por %p80, %p81
    %p83 = scmp.ne.s32.totalorder %s75, %s78
    %p84 = scmp.eq.s32.totalorder %s9, 0
    %p85 = por %p83, %p84
    %p86 = scmp.ne.s32.totalorder %s75, %s78
    %p87 = scmp.eq.s32.totalorder %s14, 1
    %p88 = por %p86, %p87
    %p89 = scmp.ne.s32.totalorder %s78, %s79
    %p90 = scmp.eq.s32.totalorder %s14, 0
    %p91 = por %p89, %p90
    %p92 = scmp.ne.s32.totalorder %s78, %s79
    %p93 = scmp.eq.s32.totalorder %s15, 1
    %p94 = por %p92, %p93
    %p96 = scmp.ne.s32.totalorder %s79, %s95
    %p97 = scmp.eq.s32.totalorder %s15, 0
    %p98 = por %p96, %p97
    %s99 = ssub.s32 %s16, %s28
    %p100 = scmp.eq.s32.totalorder %s99, 0
    %s102 = sadd.s32 %s101, 1
    %s103 = scalar_select %p100, %s101, %s102
    %p106 = pneg %p100
    %p107 = scmp.eq.s32.totalorder %s9, 1
    %p108 = por %p106, %p107
    %p109 = scmp.ne.s32.totalorder %s101, %s104
    %p110 = scmp.eq.s32.totalorder %s9, 0
    %p111 = por %p109, %p110
    %p112 = scmp.ne.s32.totalorder %s101, %s104
    %p113 = scmp.eq.s32.totalorder %s14, 1
    %p114 = por %p112, %p113
    %p115 = scmp.ne.s32.totalorder %s104, %s105
    %p116 = scmp.eq.s32.totalorder %s14, 0
    %p117 = por %p115, %p116
    %p118 = scmp.ne.s32.totalorder %s104, %s105
    %p119 = scmp.eq.s32.totalorder %s15, 1
    %p120 = por %p118, %p119
    %p122 = scmp.ne.s32.totalorder %s105, %s121
    %p123 = scmp.eq.s32.totalorder %s15, 0
    %p124 = por %p122, %p123
    %p125 = scmp.le.s32.totalorder 1, %s9
    %p126 = scmp.lt.s32.totalorder %s9, 3
    %p127 = pnand %p125, %p126
    %p128 = pneg %p127
    // Predicated region
    $region9: #{resnet_generator.19} parent=5 // pred_check
      _
    $region10: #{resnet_generator.19} parent=5 // pred_check_branch
      %130 = sbr.rel (%p127) target = $region12
    $region11: #{resnet_generator.19} parent=5 // pred_region
      %s131 = ssub.s32 %s9, 1
      // Predicated region
      $region13: #{resnet_generator.19} parent=11 // pred_check
        %p132 = pneg %p42
      $region14: #{resnet_generator.19} parent=11 // pred_check_branch
        %134 = sbr.rel (%p132) target = $region16
      $region15: #{resnet_generator.19} parent=11 // pred_region
        _
      $region16: #{resnet_generator.19} parent=11 // pred_fallthru
        _
      // Predicated region
      $region17: #{resnet_generator.19} parent=11 // pred_check
        %p135 = pneg %p63
      $region18: #{resnet_generator.19} parent=11 // pred_check_branch
        %137 = sbr.rel (%p135) target = $region20
      $region19: #{resnet_generator.19} parent=11 // pred_region
        _
      $region20: #{resnet_generator.19} parent=11 // pred_fallthru
        _
    $region12: #{resnet_generator.19} parent=5 // pred_fallthru
      _
    %p138 = scmp.lt.s32.totalorder %s9, 2
    // Predicated region
    $region21: #{resnet_generator.19} parent=5 // pred_check
      %p139 = pneg %p138
    $region22: #{resnet_generator.19} parent=5 // pred_check_branch
      %141 = sbr.rel (%p139) target = $region24
    $region23: #{resnet_generator.19} parent=5 // pred_region
      // Predicated region
      $region25: #{resnet_generator.19} parent=23 // pred_check
        %p142 = pneg %p85
      $region26: #{resnet_generator.19} parent=23 // pred_check_branch
        %144 = sbr.rel (%p142) target = $region28
      $region27: #{resnet_generator.19} parent=23 // pred_region
        %p145 = scmp.lt.s32.totalorder %s16, 1
        %s146 = scalar_select %p145, %s16, 1
        %p147 = scmp.lt.s32.totalorder %s17, 0
        %s148 = scalar_select %p147, %s17, 0
        %s149 = smul.addr %s146, 9
        %s150 = sadd.s32 %s148, %s149
        %s151 = smul.addr %s150, 4
        %s152 = scalar_lea.vmem %s2, %s151
      $region28: #{resnet_generator.19} parent=23 // pred_fallthru
        _
    $region24: #{resnet_generator.19} parent=5 // pred_fallthru
      _
    %p153 = scmp.le.s32.totalorder 1, %s9
    %p154 = scmp.lt.s32.totalorder %s9, 3
    %p155 = pnand %p153, %p154
    %p156 = pneg %p155
    // Predicated region
    $region29: #{resnet_generator.19} parent=5 // pred_check
      _
    $region30: #{resnet_generator.19} parent=5 // pred_check_branch
      %158 = sbr.rel (%p155) target = $region32
    $region31: #{resnet_generator.19} parent=5 // pred_region
      %s159 = ssub.s32 %s9, 1
      %p160 = pneg %p42
      %p161 = pneg %p39
      %p162 = pneg %p63
      %p163 = pneg %p60
      %p164 = scmp.lt.s32.totalorder %s18, 1
      %s165 = scalar_select %p164, %s18, 1
      %p166 = scmp.lt.s32.totalorder %s19, 0
      %s167 = scalar_select %p166, %s19, 0
      %s168 = smul.addr %s165, 9
      %s169 = sadd.s32 %s167, %s168
      %s170 = smul.addr %s169, 4
      %s171 = scalar_lea.vmem %s2, %s170
      %p172 = pneg %p91
      %p173 = pneg %p88
      %p174 = pneg %p117
      %p175 = pneg %p114
      %p176 = scmp.lt.s32.totalorder %s18, 1
      %s177 = scalar_select %p176, %s18, 1
      %s178 = smul.addr %s177, 2
      %s179 = smul.addr %s178, 8
      %s180 = scalar_lea.vmem %s3, %s179
      %p181 = scmp.lt.s32.totalorder %s18, 1
      %s182 = scalar_select %p181, %s18, 1
      %p183 = scmp.lt.s32.totalorder %s19, 0
      %s184 = scalar_select %p183, %s19, 0
      %s185 = smul.addr %s182, 9
      %s186 = sadd.s32 %s184, %s185
      %s187 = smul.addr %s186, 4
      %s188 = scalar_lea.vmem %s2, %s187
      %p189 = scmp.lt.s32.totalorder %s18, 1
      %s190 = scalar_select %p189, %s18, 1
      %s191 = smul.addr %s190, 2
      %s192 = smul.addr %s191, 8
      %s193 = scalar_lea.vmem %s3, %s192
      %v195 = vld [vmem:[%s0] sm:$0xf]
      %v196 = vld [vmem:[%s0 + $0x4] sm:$0xf]
      %v197 = vld [vmem:[%s188] sm:$0xf]
      %v198 = vld [vmem:[%s188 + $0x4] sm:$0xf]
      %v199 = vld [vmem:[%s188 + $0x8] sm:$0xf]
      %v200 = vld [vmem:[%s188 + $0xc] sm:$0xf]
      %v201 = vld [vmem:[%s188 + $0x10] sm:$0xf]
      %v202 = vld [vmem:[%s188 + $0x14] sm:$0xf]
      %v203 = vld [vmem:[%s188 + $0x18] sm:$0xf]
      %v204 = vld [vmem:[%s188 + $0x1c] sm:$0xf]
      %v205 = vld [vmem:[%s188 + $0x20] sm:$0xf]
      %v206 = vld [vmem:[%s1] sm:$0xff]
      %v207 = vld [vmem:[%s1 + $0x8] sm:$0xff]
      %209 = vset.pattern.permute.xlu0 0
      %210 = vperm.xlu0 %209, %v206
      %v211 = vpop.permute.xlu0 %210
      %214 = vset.pattern.permute.xlu0 0
      %215 = vperm.xlu0 %214, %v207
      %v216 = vpop.permute.xlu0 %215
      %v220 = vunpack.c.l.b16 %v195
      %v221 = vunpack.c.l.b16 %v196
      %v222 = vpack.c.b16 %v221, %v220
      %v232 = vunpack.c.l.b16 %v197
      %v233 = vunpack.c.l.b16 %v198
      %v234 = vunpack.c.l.b16 %v199
      %v235 = vunpack.c.l.b16 %v200
      %v236 = vunpack.c.l.b16 %v201
      %v237 = vunpack.c.l.b16 %v202
      %v238 = vunpack.c.l.b16 %v203
      %v239 = vunpack.c.l.b16 %v204
      %v240 = vunpack.c.l.b16 %v205
      %v241 = vpack.c.b16 %v233, %v232
      %v242 = vpack.c.b16 %v235, %v234
      %v243 = vpack.c.b16 %v237, %v236
      %v244 = vpack.c.b16 %v239, %v238
      %v245 = vpack.c.b16 %v240, %v240
      %vm250 = vcmask 588800
      %v252 = vsel %vm250, %v222, 0
      %vm254 = vcmask 1043456
      %v256 = vsel %vm254, %v245, 0
      %258 = vmatprep.subr.bf16.mxu0 0
      %259 = vmatpush1.bf16.msra.mxu0 0
      %260 = vmatprep.subr.bf16.mxu0 0
      %261 = vmatpush1.bf16.msra.mxu0 0
      %262 = vmatprep.subr.bf16.mxu0 0
      %263 = vmatpush1.bf16.msra.mxu0 0
      %264 = vmatprep.subr.bf16.mxu0 0
      %265 = vmatpush1.bf16.msra.mxu0 %v256
      %266 = vmatprep.subr.bf16.mxu0 0
      %267 = vmatpush1.bf16.msra.mxu0 %v244
      %268 = vmatprep.subr.bf16.mxu0 0
      %269 = vmatpush1.bf16.msra.mxu0 %v243
      %270 = vmatprep.subr.bf16.mxu0 0
      %271 = vmatpush1.bf16.msra.mxu0 %v242
      %272 = vmatprep.subr.bf16.mxu0 0
      %273 = vmatpush1.bf16.msra.mxu0 %v241
      %274 = vmatprep.subr.bf16.mxu0 0
      %275 = vmatpush2.bf16.msra.mxu0 0
      %276 = vmatprep.subr.bf16.mxu0 0
      %277 = vmatpush2.bf16.msra.mxu0 0
      %278 = vmatprep.subr.bf16.mxu0 0
      %279 = vmatpush2.bf16.msra.mxu0 0
      %280 = vmatprep.subr.bf16.mxu0 0
      %281 = vmatpush2.bf16.msra.mxu0 0
      %282 = vmatprep.subr.bf16.mxu0 0
      %283 = vmatpush2.bf16.msra.mxu0 0
      %284 = vmatprep.subr.bf16.mxu0 0
      %285 = vmatpush2.bf16.msra.mxu0 0
      %286 = vmatprep.subr.bf16.mxu0 0
      %287 = vmatpush2.bf16.msra.mxu0 0
      %288 = vmatprep.subr.bf16.mxu0 0
      %289 = vmatpush2.bf16.msra.mxu0 0
      %290 = vmatprep.mubr.bf16.mxu0 0
      %291 = vmatmul.mubr.bf16.gmra.mxu0 %v252
      %v292 = vpop.f32.mrf.mxu0
      %v293 = vadd.f32 %v211, %v292
      %v294 = vpop.f32.mrf.mxu0
      %v295 = vpop.f32.mrf.mxu0
      %v296 = vadd.f32 %v216, %v295
      %v297 = vpop.f32.mrf.mxu0
      %298 = vdwg.mxu0
      %vm299 = vcmask 523264
      %v300 = vsel %vm299, %v293, 0.0
      %301 = vadd.xlane.f32.xlu0 %v300
      %v302 = vpop.xlane.xlu0 %301
      %v303 = vsel %vm299, %v296, 0.0
      %304 = vadd.xlane.f32.xlu0 %v303
      %v305 = vpop.xlane.xlu0 %304
      %v306 = vrcp.pop 64.0
      %v307 = vmul.f32 %v302, %v306
      %v308 = vmul.f32 %v305, %v306
      %v309 = vsub.f32 %v293, %v307
      %v310 = vsub.f32 %v296, %v308
      %v311 = vmul.f32 %v309, %v309
      %v312 = vmul.f32 %v310, %v310
      %v313 = vsel %vm299, %v311, 0.0
      %314 = vadd.xlane.f32.xlu0 %v313
      %v315 = vpop.xlane.xlu0 %314
      %v316 = vsel %vm299, %v312, 0.0
      %317 = vadd.xlane.f32.xlu0 %v316
      %v318 = vpop.xlane.xlu0 %317
      %v319 = vmul.f32 %v315, %v306
      %v320 = vmul.f32 %v318, %v306
      %v321 = vadd.f32 %v319, 1e-05
      %v322 = vadd.f32 %v320, 1e-05
      %v323 = vrsqrt.pop %v321
      %v324 = vrsqrt.pop %v322
      %v325 = vmul.f32 %v309, %v323
      %v326 = vmul.f32 %v310, %v324
      %vm327 = vcmp.gt.f32.partialorder %v325, 0.0
      %vm328 = vcmp.gt.f32.partialorder %v326, 0.0
      %v329 = vmul.f32 %v325, 1.442695
      %v330 = vpow.pop %v329
      %v331 = vmul.f32 %v326, 1.442695
      %v332 = vpow.pop %v331
      %v333 = vsub.f32 %v330, 1.0
      %v334 = vsub.f32 %v332, 1.0
      %v335 = vmul.f32 %v333, 1.6732632
      %v336 = vmul.f32 %v334, 1.6732632
      %v337 = vsel %vm327, %v325, %v335
      %v338 = vsel %vm328, %v326, %v336
      %v339 = vmul.f32 %v337, 1.050701
      %v340 = vmul.f32 %v338, 1.050701
      %341 = vst.msk [vmem:[%s193] sm:$0xff] %vm299, %v339
      %342 = vst.msk [vmem:[%s193 + $0x8] sm:$0xff] %vm299, %v340
      %p343 = scmp.lt.s32.totalorder %s18, 1
      %s344 = scalar_select %p343, %s18, 1
      %s345 = smul.addr %s344, 2
      %s346 = smul.addr %s345, 8
      %s347 = scalar_lea.vmem %s3, %s346
      // Predicated region
      $region33: #{resnet_generator.19} parent=31 // pred_check
        %p348 = pneg %p114
      $region34: #{resnet_generator.19} parent=31 // pred_check_branch
        %350 = sbr.rel (%p348) target = $region36
      $region35: #{resnet_generator.19} parent=31 // pred_region
        _
      $region36: #{resnet_generator.19} parent=31 // pred_fallthru
        _
    $region32: #{resnet_generator.19} parent=5 // pred_fallthru
      _
    %p351 = scmp.le.s32.totalorder 2, %s9
    // Predicated region
    $region37: #{resnet_generator.19} parent=5 // pred_check
      %p352 = pneg %p351
    $region38: #{resnet_generator.19} parent=5 // pred_check_branch
      %354 = sbr.rel (%p352) target = $region40
    $region39: #{resnet_generator.19} parent=5 // pred_region
      %s355 = ssub.s32 %s9, 2
      // Predicated region
      $region41: #{resnet_generator.19} parent=39 // pred_check
        %p356 = pneg %p120
      $region42: #{resnet_generator.19} parent=39 // pred_check_branch
        %358 = sbr.rel (%p356) target = $region44
      $region43: #{resnet_generator.19} parent=39 // pred_region
        %p359 = scmp.lt.s32.totalorder %s20, 1
        %s360 = scalar_select %p359, %s20, 1
        %s361 = smul.addr %s360, 2
        %s362 = smul.addr %s361, 8
        %s363 = scalar_lea.vmem %s3, %s362
      $region44: #{resnet_generator.19} parent=39 // pred_fallthru
        _
    $region40: #{resnet_generator.19} parent=5 // pred_fallthru
      _
  $region6: #{resnet_generator.19} parent=0 // loop_footer
    %s13 = sadd.s32 1, %s9
  $region7: #{resnet_generator.19} parent=0 // loop_footer_branch
    %8 = sbr.rel target = $region3
  $region8: #{resnet_generator.19} parent=0 // loop_exit
    _

// kernel: resnet_generator.20
$region0: #{resnet_generator.20}
  #allocation0 [shape = 'u32[]', space=smem, size = 0x4, offset = 0x4, fixed_abs, tag = 'smem constant byte address 0x4 - core index']
  #allocation1 [shape = 'u32[144,128]{1,0:T(1,128)}', space=vmem, size = 0x12000, scoped, tag = 'internal scratch']
  %s0 = inlined_call_operand.vmem [shape: bf16[32,144], index: 0, kind: input, shape index: {}]
  %s1 = inlined_call_operand.vmem [shape: f32[32,1], index: 1, kind: input, shape index: {}]
  %s2 = inlined_call_operand.vmem [shape: bf16[2,144,16], index: 2, kind: input, shape index: {}]
  %s3 = inlined_call_operand.vmem [shape: f32[2,32,16], index: 3, kind: output, shape index: {}]
  %s4 = sld [smem:[#allocation0]]
  $region45: #{resnet_generator.20} parent=0
    _
  %s6 = ssub.s32 1, %s4
  %s7 = scalar_select 0, %s6, %s4
  loop: start=0, step=1, limit=4
  $region2: #{resnet_generator.20} parent=0 // loop_pre_header
    _
  $region3: #{resnet_generator.20} parent=0 // loop_header
    %s9 = sphi 0, %s13
    %p10 = scmp.ge.s32.totalorder %s9, 4
    %s16 = sphi 0, %s28
    %s17 = sphi 0, %s24
    %s18 = sphi 0, %s16
    %s19 = sphi 0, %s17
    %s20 = sphi 0, %s18
    %s21 = sphi 0, %s19
    %s29 = sphi 0, %s29
    %s31 = sphi 0, %s29
    %s32 = sphi 0, %s31
    %s46 = sphi 0, %s32
    %s50 = sphi 0, %s50
    %s52 = sphi 0, %s50
    %s53 = sphi 0, %s52
    %s67 = sphi 0, %s53
    %s75 = sphi 0, %s77
    %s78 = sphi 0, %s75
    %s79 = sphi 0, %s78
    %s95 = sphi 0, %s79
    %s101 = sphi 0, %s103
    %s104 = sphi 0, %s101
    %s105 = sphi 0, %s104
    %s121 = sphi 0, %s105
  $region4: #{resnet_generator.20} parent=0 // loop_header_branch
    %12 = sbr.rel (%p10) target = $region8
  $region5: #{resnet_generator.20} parent=0 // loop_body
    %s14 = ssub.s32 %s9, 1
    %s15 = ssub.s32 %s9, 2
    %s22 = sadd.s32 1, %s17
    %p23 = scmp.ge.s32.totalorder %s22, 1
    %s24 = scalar_select %p23, 0, %s22
    %s25 = sadd.s32 1, %s16
    %s26 = scalar_select %p23, %s25, %s16
    %p27 = scmp.ge.s32.totalorder %s26, 2
    %s28 = scalar_select %p27, 0, %s26
    %s30 = sadd.s32 %s29, 1
    %p33 = scmp.eq.s32.totalorder %s9, 1
    %p34 = scmp.ne.s32.totalorder %s29, %s31
    %p35 = scmp.eq.s32.totalorder %s9, 0
    %p36 = por %p34, %p35
    %p37 = scmp.ne.s32.totalorder %s29, %s31
    %p38 = scmp.eq.s32.totalorder %s14, 1
    %p39 = por %p37, %p38
    %p40 = scmp.ne.s32.totalorder %s31, %s32
    %p41 = scmp.eq.s32.totalorder %s14, 0
    %p42 = por %p40, %p41
    %p43 = scmp.ne.s32.totalorder %s31, %s32
    %p44 = scmp.eq.s32.totalorder %s15, 1
    %p45 = por %p43, %p44
    %p47 = scmp.ne.s32.totalorder %s32, %s46
    %p48 = scmp.eq.s32.totalorder %s15, 0
    %p49 = por %p47, %p48
    %s51 = sadd.s32 %s50, 1
    %p54 = scmp.eq.s32.totalorder %s9, 1
    %p55 = scmp.ne.s32.totalorder %s50, %s52
    %p56 = scmp.eq.s32.totalorder %s9, 0
    %p57 = por %p55, %p56
    %p58 = scmp.ne.s32.totalorder %s50, %s52
    %p59 = scmp.eq.s32.totalorder %s14, 1
    %p60 = por %p58, %p59
    %p61 = scmp.ne.s32.totalorder %s52, %s53
    %p62 = scmp.eq.s32.totalorder %s14, 0
    %p63 = por %p61, %p62
    %p64 = scmp.ne.s32.totalorder %s52, %s53
    %p65 = scmp.eq.s32.totalorder %s15, 1
    %p66 = por %p64, %p65
    %p68 = scmp.ne.s32.totalorder %s53, %s67
    %p69 = scmp.eq.s32.totalorder %s15, 0
    %p70 = por %p68, %p69
    %s71 = ssub.s32 %s16, %s28
    %s72 = ssub.s32 %s17, %s24
    %s73 = sor.u32 %s71, %s72
    %p74 = scmp.eq.s32.totalorder %s73, 0
    %s76 = sadd.s32 %s75, 1
    %s77 = scalar_select %p74, %s75, %s76
    %p80 = pneg %p74
    %p81 = scmp.eq.s32.totalorder %s9, 1
    %p82 = por %p80, %p81
    %p83 = scmp.ne.s32.totalorder %s75, %s78
    %p84 = scmp.eq.s32.totalorder %s9, 0
    %p85 = por %p83, %p84
    %p86 = scmp.ne.s32.totalorder %s75, %s78
    %p87 = scmp.eq.s32.totalorder %s14, 1
    %p88 = por %p86, %p87
    %p89 = scmp.ne.s32.totalorder %s78, %s79
    %p90 = scmp.eq.s32.totalorder %s14, 0
    %p91 = por %p89, %p90
    %p92 = scmp.ne.s32.totalorder %s78, %s79
    %p93 = scmp.eq.s32.totalorder %s15, 1
    %p94 = por %p92, %p93
    %p96 = scmp.ne.s32.totalorder %s79, %s95
    %p97 = scmp.eq.s32.totalorder %s15, 0
    %p98 = por %p96, %p97
    %s99 = ssub.s32 %s16, %s28
    %p100 = scmp.eq.s32.totalorder %s99, 0
    %s102 = sadd.s32 %s101, 1
    %s103 = scalar_select %p100, %s101, %s102
    %p106 = pneg %p100
    %p107 = scmp.eq.s32.totalorder %s9, 1
    %p108 = por %p106, %p107
    %p109 = scmp.ne.s32.totalorder %s101, %s104
    %p110 = scmp.eq.s32.totalorder %s9, 0
    %p111 = por %p109, %p110
    %p112 = scmp.ne.s32.totalorder %s101, %s104
    %p113 = scmp.eq.s32.totalorder %s14, 1
    %p114 = por %p112, %p113
    %p115 = scmp.ne.s32.totalorder %s104, %s105
    %p116 = scmp.eq.s32.totalorder %s14, 0
    %p117 = por %p115, %p116
    %p118 = scmp.ne.s32.totalorder %s104, %s105
    %p119 = scmp.eq.s32.totalorder %s15, 1
    %p120 = por %p118, %p119
    %p122 = scmp.ne.s32.totalorder %s105, %s121
    %p123 = scmp.eq.s32.totalorder %s15, 0
    %p124 = por %p122, %p123
    %p125 = scmp.le.s32.totalorder 1, %s9
    %p126 = scmp.lt.s32.totalorder %s9, 3
    %p127 = pnand %p125, %p126
    %p128 = pneg %p127
    // Predicated region
    $region9: #{resnet_generator.20} parent=5 // pred_check
      _
    $region10: #{resnet_generator.20} parent=5 // pred_check_branch
      %130 = sbr.rel (%p127) target = $region12
    $region11: #{resnet_generator.20} parent=5 // pred_region
      %s131 = ssub.s32 %s9, 1
      // Predicated region
      $region13: #{resnet_generator.20} parent=11 // pred_check
        %p132 = pneg %p42
      $region14: #{resnet_generator.20} parent=11 // pred_check_branch
        %134 = sbr.rel (%p132) target = $region16
      $region15: #{resnet_generator.20} parent=11 // pred_region
        _
      $region16: #{resnet_generator.20} parent=11 // pred_fallthru
        _
      // Predicated region
      $region17: #{resnet_generator.20} parent=11 // pred_check
        %p135 = pneg %p63
      $region18: #{resnet_generator.20} parent=11 // pred_check_branch
        %137 = sbr.rel (%p135) target = $region20
      $region19: #{resnet_generator.20} parent=11 // pred_region
        _
      $region20: #{resnet_generator.20} parent=11 // pred_fallthru
        _
    $region12: #{resnet_generator.20} parent=5 // pred_fallthru
      _
    %p138 = scmp.lt.s32.totalorder %s9, 2
    // Predicated region
    $region21: #{resnet_generator.20} parent=5 // pred_check
      %p139 = pneg %p138
    $region22: #{resnet_generator.20} parent=5 // pred_check_branch
      %141 = sbr.rel (%p139) target = $region24
    $region23: #{resnet_generator.20} parent=5 // pred_region
      // Predicated region
      $region25: #{resnet_generator.20} parent=23 // pred_check
        %p142 = pneg %p85
      $region26: #{resnet_generator.20} parent=23 // pred_check_branch
        %144 = sbr.rel (%p142) target = $region28
      $region27: #{resnet_generator.20} parent=23 // pred_region
        %p145 = scmp.lt.s32.totalorder %s16, 1
        %s146 = scalar_select %p145, %s16, 1
        %p147 = scmp.lt.s32.totalorder %s17, 0
        %s148 = scalar_select %p147, %s17, 0
        %s149 = smul.addr %s146, 18
        %s150 = sadd.s32 %s148, %s149
        %s151 = smul.addr %s150, 4
        %s152 = scalar_lea.vmem %s2, %s151
      $region28: #{resnet_generator.20} parent=23 // pred_fallthru
        _
    $region24: #{resnet_generator.20} parent=5 // pred_fallthru
      _
    %p153 = scmp.le.s32.totalorder 1, %s9
    %p154 = scmp.lt.s32.totalorder %s9, 3
    %p155 = pnand %p153, %p154
    %p156 = pneg %p155
    // Predicated region
    $region29: #{resnet_generator.20} parent=5 // pred_check
      _
    $region30: #{resnet_generator.20} parent=5 // pred_check_branch
      %158 = sbr.rel (%p155) target = $region32
    $region31: #{resnet_generator.20} parent=5 // pred_region
      %s159 = ssub.s32 %s9, 1
      %p160 = pneg %p42
      %p161 = pneg %p39
      %p162 = pneg %p63
      %p163 = pneg %p60
      %p164 = scmp.lt.s32.totalorder %s18, 1
      %s165 = scalar_select %p164, %s18, 1
      %p166 = scmp.lt.s32.totalorder %s19, 0
      %s167 = scalar_select %p166, %s19, 0
      %s168 = smul.addr %s165, 18
      %s169 = sadd.s32 %s167, %s168
      %s170 = smul.addr %s169, 4
      %s171 = scalar_lea.vmem %s2, %s170
      %p172 = pneg %p91
      %p173 = pneg %p88
      %p174 = pneg %p117
      %p175 = pneg %p114
      %p176 = scmp.lt.s32.totalorder %s18, 1
      %s177 = scalar_select %p176, %s18, 1
      %s178 = smul.addr %s177, 4
      %s179 = smul.addr %s178, 8
      %s180 = scalar_lea.vmem %s3, %s179
      %p181 = scmp.lt.s32.totalorder %s18, 1
      %s182 = scalar_select %p181, %s18, 1
      %p183 = scmp.lt.s32.totalorder %s19, 0
      %s184 = scalar_select %p183, %s19, 0
      %s185 = smul.addr %s182, 18
      %s186 = sadd.s32 %s184, %s185
      %s187 = smul.addr %s186, 4
      %s188 = scalar_lea.vmem %s2, %s187
      %p189 = scmp.lt.s32.totalorder %s18, 1
      %s190 = scalar_select %p189, %s18, 1
      %s191 = smul.addr %s190, 4
      %s192 = smul.addr %s191, 8
      %s193 = scalar_lea.vmem %s3, %s192
      %v195 = vld [vmem:[%s0] sm:$0xff]
      %v196 = vld [vmem:[%s0 + $0x8] sm:$0xff]
      %v197 = vld [vmem:[%s0 + $0x10] sm:$0xff]
      %v198 = vld [vmem:[%s0 + $0x18] sm:$0xff]
      %v199 = vld [vmem:[%s188] sm:$0xf]
      %v200 = vld [vmem:[%s188 + $0x4] sm:$0xf]
      %v201 = vld [vmem:[%s188 + $0x8] sm:$0xf]
      %v202 = vld [vmem:[%s188 + $0xc] sm:$0xf]
      %v203 = vld [vmem:[%s188 + $0x10] sm:$0xf]
      %v204 = vld [vmem:[%s188 + $0x14] sm:$0xf]
      %v205 = vld [vmem:[%s188 + $0x18] sm:$0xf]
      %v206 = vld [vmem:[%s188 + $0x1c] sm:$0xf]
      %v207 = vld [vmem:[%s188 + $0x20] sm:$0xf]
      %v208 = vld [vmem:[%s188 + $0x24] sm:$0xf]
      %v209 = vld [vmem:[%s188 + $0x28] sm:$0xf]
      %v210 = vld [vmem:[%s188 + $0x2c] sm:$0xf]
      %v211 = vld [vmem:[%s188 + $0x30] sm:$0xf]
      %v212 = vld [vmem:[%s188 + $0x34] sm:$0xf]
      %v213 = vld [vmem:[%s188 + $0x38] sm:$0xf]
      %v214 = vld [vmem:[%s188 + $0x3c] sm:$0xf]
      %v215 = vld [vmem:[%s188 + $0x40] sm:$0xf]
      %v216 = vld [vmem:[%s188 + $0x44] sm:$0xf]
      %v217 = vld [vmem:[%s1] sm:$0xff]
      %v218 = vld [vmem:[%s1 + $0x8] sm:$0xff]
      %v219 = vld [vmem:[%s1 + $0x10] sm:$0xff]
      %v220 = vld [vmem:[%s1 + $0x18] sm:$0xff]
      %222 = vset.pattern.permute.xlu0 0
      %223 = vperm.xlu0 %222, %v217
      %v224 = vpop.permute.xlu0 %223
      %227 = vset.pattern.permute.xlu0 0
      %228 = vperm.xlu0 %227, %v218
      %v229 = vpop.permute.xlu0 %228
      %232 = vset.pattern.permute.xlu0 0
      %233 = vperm.xlu0 %232, %v219
      %v234 = vpop.permute.xlu0 %233
      %237 = vset.pattern.permute.xlu0 0
      %238 = vperm.xlu0 %237, %v220
      %v239 = vpop.permute.xlu0 %238
      %v245 = vunpack.c.l.b16 %v195
      %v246 = vunpack.c.h.b16 %v195
      %v247 = vunpack.c.l.b16 %v196
      %v248 = vunpack.c.h.b16 %v196
      %v249 = vunpack.c.l.b16 %v197
      %v250 = vunpack.c.h.b16 %v197
      %v251 = vunpack.c.l.b16 %v198
      %v252 = vunpack.c.h.b16 %v198
      %v253 = vpack.c.b16 %v247, %v245
      %v254 = vpack.c.b16 %v248, %v246
      %v255 = vpack.c.b16 %v251, %v249
      %v256 = vpack.c.b16 %v252, %v250
      %v277 = vunpack.c.l.b16 %v199
      %v278 = vunpack.c.l.b16 %v200
      %v279 = vunpack.c.l.b16 %v201
      %v280 = vunpack.c.l.b16 %v202
      %v281 = vunpack.c.l.b16 %v203
      %v282 = vunpack.c.l.b16 %v204
      %v283 = vunpack.c.l.b16 %v205
      %v284 = vunpack.c.l.b16 %v206
      %v285 = vunpack.c.l.b16 %v207
      %v286 = vunpack.c.l.b16 %v208
      %v287 = vunpack.c.l.b16 %v209
      %v288 = vunpack.c.l.b16 %v210
      %v289 = vunpack.c.l.b16 %v211
      %v290 = vunpack.c.l.b16 %v212
      %v291 = vunpack.c.l.b16 %v213
      %v292 = vunpack.c.l.b16 %v214
      %v293 = vunpack.c.l.b16 %v215
      %v294 = vunpack.c.l.b16 %v216
      %v295 = vpack.c.b16 %v278, %v277
      %v296 = vpack.c.b16 %v280, %v279
      %v297 = vpack.c.b16 %v282, %v281
      %v298 = vpack.c.b16 %v284, %v283
      %v299 = vpack.c.b16 %v286, %v285
      %v300 = vpack.c.b16 %v288, %v287
      %v301 = vpack.c.b16 %v290, %v289
      %v302 = vpack.c.b16 %v292, %v291
      %v303 = vpack.c.b16 %v294, %v293
      %vm313 = vcmask 130048
      %v315 = vsel %vm313, %v254, 0
      %v318 = vsel %vm313, %v256, 0
      %320 = vmatprep.subr.bf16.mxu0 0
      %321 = vmatpush1.bf16.msra.mxu0 %v302
      %322 = vmatprep.subr.bf16.mxu0 0
      %323 = vmatpush1.bf16.msra.mxu0 %v301
      %324 = vmatprep.subr.bf16.mxu0 0
      %325 = vmatpush1.bf16.msra.mxu0 %v300
      %326 = vmatprep.subr.bf16.mxu0 0
      %327 = vmatpush1.bf16.msra.mxu0 %v299
      %328 = vmatprep.subr.bf16.mxu0 0
      %329 = vmatpush1.bf16.msra.mxu0 %v298
      %330 = vmatprep.subr.bf16.mxu0 0
      %331 = vmatpush1.bf16.msra.mxu0 %v297
      %332 = vmatprep.subr.bf16.mxu0 0
      %333 = vmatpush1.bf16.msra.mxu0 %v296
      %334 = vmatprep.subr.bf16.mxu0 0
      %335 = vmatpush1.bf16.msra.mxu0 %v295
      %336 = vmatprep.subr.bf16.mxu0 0
      %337 = vmatpush2.bf16.msra.mxu0 0
      %338 = vmatprep.subr.bf16.mxu0 0
      %339 = vmatpush2.bf16.msra.mxu0 0
      %340 = vmatprep.subr.bf16.mxu0 0
      %341 = vmatpush2.bf16.msra.mxu0 0
      %342 = vmatprep.subr.bf16.mxu0 0
      %343 = vmatpush2.bf16.msra.mxu0 0
      %344 = vmatprep.subr.bf16.mxu0 0
      %345 = vmatpush2.bf16.msra.mxu0 0
      %346 = vmatprep.subr.bf16.mxu0 0
      %347 = vmatpush2.bf16.msra.mxu0 0
      %348 = vmatprep.subr.bf16.mxu0 0
      %349 = vmatpush2.bf16.msra.mxu0 0
      %350 = vmatprep.subr.bf16.mxu0 0
      %351 = vmatpush2.bf16.msra.mxu0 %v303
      %352 = vmatprep.mubr.bf16.mxu0 %v315
      %353 = vmatmul.mubr.bf16.gmra.mxu0 %v253
      %v354 = vpop.f32.mrf.mxu0
      %v355 = vadd.f32 %v224, %v354
      %v356 = vpop.f32.mrf.mxu0
      %v357 = vpop.f32.mrf.mxu0
      %v358 = vadd.f32 %v229, %v357
      %v359 = vpop.f32.mrf.mxu0
      %360 = vmatprep.mubr.bf16.mxu0 %v318
      %361 = vmatmul.mubr.bf16.gmra.mxu0 %v255
      %v362 = vpop.f32.mrf.mxu0
      %v363 = vadd.f32 %v234, %v362
      %v364 = vpop.f32.mrf.mxu0
      %v365 = vpop.f32.mrf.mxu0
      %v366 = vadd.f32 %v239, %v365
      %v367 = vpop.f32.mrf.mxu0
      %368 = vdwg.mxu0
      %v369 = vsel %vm313, %v355, 0.0
      %370 = vadd.xlane.f32.xlu0 %v369
      %v371 = vpop.xlane.xlu0 %370
      %v372 = vsel %vm313, %v358, 0.0
      %373 = vadd.xlane.f32.xlu0 %v372
      %v374 = vpop.xlane.xlu0 %373
      %v375 = vsel %vm313, %v363, 0.0
      %376 = vadd.xlane.f32.xlu0 %v375
      %v377 = vpop.xlane.xlu0 %376
      %v378 = vsel %vm313, %v366, 0.0
      %379 = vadd.xlane.f32.xlu0 %v378
      %v380 = vpop.xlane.xlu0 %379
      %v381 = vrcp.pop 16.0
      %v382 = vmul.f32 %v371, %v381
      %v383 = vmul.f32 %v374, %v381
      %v384 = vmul.f32 %v377, %v381
      %v385 = vmul.f32 %v380, %v381
      %v386 = vsub.f32 %v355, %v382
      %v387 = vsub.f32 %v358, %v383
      %v388 = vsub.f32 %v363, %v384
      %v389 = vsub.f32 %v366, %v385
      %v390 = vmul.f32 %v386, %v386
      %v391 = vmul.f32 %v387, %v387
      %v392 = vmul.f32 %v388, %v388
      %v393 = vmul.f32 %v389, %v389
      %v394 = vsel %vm313, %v390, 0.0
      %395 = vadd.xlane.f32.xlu0 %v394
      %v396 = vpop.xlane.xlu0 %395
      %v397 = vsel %vm313, %v391, 0.0
      %398 = vadd.xlane.f32.xlu0 %v397
      %v399 = vpop.xlane.xlu0 %398
      %v400 = vsel %vm313, %v392, 0.0
      %401 = vadd.xlane.f32.xlu0 %v400
      %v402 = vpop.xlane.xlu0 %401
      %v403 = vsel %vm313, %v393, 0.0
      %404 = vadd.xlane.f32.xlu0 %v403
      %v405 = vpop.xlane.xlu0 %404
      %v406 = vmul.f32 %v396, %v381
      %v407 = vmul.f32 %v399, %v381
      %v408 = vmul.f32 %v402, %v381
      %v409 = vmul.f32 %v405, %v381
      %v410 = vadd.f32 %v406, 1e-05
      %v411 = vadd.f32 %v407, 1e-05
      %v412 = vadd.f32 %v408, 1e-05
      %v413 = vadd.f32 %v409, 1e-05
      %v414 = vrsqrt.pop %v410
      %v415 = vrsqrt.pop %v411
      %v416 = vrsqrt.pop %v412
      %v417 = vrsqrt.pop %v413
      %v418 = vmul.f32 %v386, %v414
      %v419 = vmul.f32 %v387, %v415
      %v420 = vmul.f32 %v388, %v416
      %v421 = vmul.f32 %v389, %v417
      %vm422 = vcmp.gt.f32.partialorder %v418, 0.0
      %vm423 = vcmp.gt.f32.partialorder %v419, 0.0
      %vm424 = vcmp.gt.f32.partialorder %v420, 0.0
      %vm425 = vcmp.gt.f32.partialorder %v421, 0.0
      %v426 = vmul.f32 %v418, 1.442695
      %v427 = vpow.pop %v426
      %v428 = vmul.f32 %v419, 1.442695
      %v429 = vpow.pop %v428
      %v430 = vmul.f32 %v420, 1.442695
      %v431 = vpow.pop %v430
      %v432 = vmul.f32 %v421, 1.442695
      %v433 = vpow.pop %v432
      %v434 = vsub.f32 %v427, 1.0
      %v435 = vsub.f32 %v429, 1.0
      %v436 = vsub.f32 %v431, 1.0
      %v437 = vsub.f32 %v433, 1.0
      %v438 = vmul.f32 %v434, 1.6732632
      %v439 = vmul.f32 %v435, 1.6732632
      %v440 = vmul.f32 %v436, 1.6732632
      %v441 = vmul.f32 %v437, 1.6732632
      %v442 = vsel %vm422, %v418, %v438
      %v443 = vsel %vm423, %v419, %v439
      %v444 = vsel %vm424, %v420, %v440
      %v445 = vsel %vm425, %v421, %v441
      %v446 = vmul.f32 %v442, 1.050701
      %v447 = vmul.f32 %v443, 1.050701
      %v448 = vmul.f32 %v444, 1.050701
      %v449 = vmul.f32 %v445, 1.050701
      %450 = vst.msk [vmem:[%s193] sm:$0xff] %vm313, %v446
      %451 = vst.msk [vmem:[%s193 + $0x8] sm:$0xff] %vm313, %v447
      %452 = vst.msk [vmem:[%s193 + $0x10] sm:$0xff] %vm313, %v448
      %453 = vst.msk [vmem:[%s193 + $0x18] sm:$0xff] %vm313, %v449
      %p454 = scmp.lt.s32.totalorder %s18, 1
      %s455 = scalar_select %p454, %s18, 1
      %s456 = smul.addr %s455, 4
      %s457 = smul.addr %s456, 8
      %s458 = scalar_lea.vmem %s3, %s457
      // Predicated region
      $region33: #{resnet_generator.20} parent=31 // pred_check
        %p459 = pneg %p114
      $region34: #{resnet_generator.20} parent=31 // pred_check_branch
        %461 = sbr.rel (%p459) target = $region36
      $region35: #{resnet_generator.20} parent=31 // pred_region
        _
      $region36: #{resnet_generator.20} parent=31 // pred_fallthru
        _
    $region32: #{resnet_generator.20} parent=5 // pred_fallthru
      _
    %p462 = scmp.le.s32.totalorder 2, %s9
    // Predicated region
    $region37: #{resnet_generator.20} parent=5 // pred_check
      %p463 = pneg %p462
    $region38: #{resnet_generator.20} parent=5 // pred_check_branch
      %465 = sbr.rel (%p463) target = $region40
    $region39: #{resnet_generator.20} parent=5 // pred_region
      %s466 = ssub.s32 %s9, 2
      // Predicated region
      $region41: #{resnet_generator.20} parent=39 // pred_check
        %p467 = pneg %p120
      $region42: #{resnet_generator.20} parent=39 // pred_check_branch
        %469 = sbr.rel (%p467) target = $region44
      $region43: #{resnet_generator.20} parent=39 // pred_region
        %p470 = scmp.lt.s32.totalorder %s20, 1
        %s471 = scalar_select %p470, %s20, 1
        %s472 = smul.addr %s471, 4
        %s473 = smul.addr %s472, 8
        %s474 = scalar_lea.vmem %s3, %s473
      $region44: #{resnet_generator.20} parent=39 // pred_fallthru
        _
    $region40: #{resnet_generator.20} parent=5 // pred_fallthru
      _
  $region6: #{resnet_generator.20} parent=0 // loop_footer
    %s13 = sadd.s32 1, %s9
  $region7: #{resnet_generator.20} parent=0 // loop_footer_branch
    %8 = sbr.rel target = $region3
  $region8: #{resnet_generator.20} parent=0 // loop_exit
    _

// kernel: resnet_generator.21
$region0: #{resnet_generator.21}
  #allocation0 [shape = 'u32[]', space=smem, size = 0x4, offset = 0x4, fixed_abs, tag = 'smem constant byte address 0x4 - core index']
  #allocation1 [shape = 'u32[144,128]{1,0:T(1,128)}', space=vmem, size = 0x12000, scoped, tag = 'internal scratch']
  %s0 = inlined_call_operand.vmem [shape: bf16[32,288], index: 0, kind: input, shape index: {}]
  %s1 = inlined_call_operand.vmem [shape: f32[32,1], index: 1, kind: input, shape index: {}]
  %s2 = inlined_call_operand.vmem [shape: bf16[2,288,16], index: 2, kind: input, shape index: {}]
  %s3 = inlined_call_operand.vmem [shape: f32[2,32,16], index: 3, kind: output, shape index: {}]
  %s4 = sld [smem:[#allocation0]]
  $region45: #{resnet_generator.21} parent=0
    _
  %s6 = ssub.s32 1, %s4
  %s7 = scalar_select 0, %s6, %s4
  loop: start=0, step=1, limit=4
  $region2: #{resnet_generator.21} parent=0 // loop_pre_header
    _
  $region3: #{resnet_generator.21} parent=0 // loop_header
    %s9 = sphi 0, %s13
    %p10 = scmp.ge.s32.totalorder %s9, 4
    %s16 = sphi 0, %s28
    %s17 = sphi 0, %s24
    %s18 = sphi 0, %s16
    %s19 = sphi 0, %s17
    %s20 = sphi 0, %s18
    %s21 = sphi 0, %s19
    %s29 = sphi 0, %s29
    %s31 = sphi 0, %s29
    %s32 = sphi 0, %s31
    %s46 = sphi 0, %s32
    %s50 = sphi 0, %s50
    %s52 = sphi 0, %s50
    %s53 = sphi 0, %s52
    %s67 = sphi 0, %s53
    %s75 = sphi 0, %s77
    %s78 = sphi 0, %s75
    %s79 = sphi 0, %s78
    %s95 = sphi 0, %s79
    %s101 = sphi 0, %s103
    %s104 = sphi 0, %s101
    %s105 = sphi 0, %s104
    %s121 = sphi 0, %s105
  $region4: #{resnet_generator.21} parent=0 // loop_header_branch
    %12 = sbr.rel (%p10) target = $region8
  $region5: #{resnet_generator.21} parent=0 // loop_body
    %s14 = ssub.s32 %s9, 1
    %s15 = ssub.s32 %s9, 2
    %s22 = sadd.s32 1, %s17
    %p23 = scmp.ge.s32.totalorder %s22, 1
    %s24 = scalar_select %p23, 0, %s22
    %s25 = sadd.s32 1, %s16
    %s26 = scalar_select %p23, %s25, %s16
    %p27 = scmp.ge.s32.totalorder %s26, 2
    %s28 = scalar_select %p27, 0, %s26
    %s30 = sadd.s32 %s29, 1
    %p33 = scmp.eq.s32.totalorder %s9, 1
    %p34 = scmp.ne.s32.totalorder %s29, %s31
    %p35 = scmp.eq.s32.totalorder %s9, 0
    %p36 = por %p34, %p35
    %p37 = scmp.ne.s32.totalorder %s29, %s31
    %p38 = scmp.eq.s32.totalorder %s14, 1
    %p39 = por %p37, %p38
    %p40 = scmp.ne.s32.totalorder %s31, %s32
    %p41 = scmp.eq.s32.totalorder %s14, 0
    %p42 = por %p40, %p41
    %p43 = scmp.ne.s32.totalorder %s31, %s32
    %p44 = scmp.eq.s32.totalorder %s15, 1
    %p45 = por %p43, %p44
    %p47 = scmp.ne.s32.totalorder %s32, %s46
    %p48 = scmp.eq.s32.totalorder %s15, 0
    %p49 = por %p47, %p48
    %s51 = sadd.s32 %s50, 1
    %p54 = scmp.eq.s32.totalorder %s9, 1
    %p55 = scmp.ne.s32.totalorder %s50, %s52
    %p56 = scmp.eq.s32.totalorder %s9, 0
    %p57 = por %p55, %p56
    %p58 = scmp.ne.s32.totalorder %s50, %s52
    %p59 = scmp.eq.s32.totalorder %s14, 1
    %p60 = por %p58, %p59
    %p61 = scmp.ne.s32.totalorder %s52, %s53
    %p62 = scmp.eq.s32.totalorder %s14, 0
    %p63 = por %p61, %p62
    %p64 = scmp.ne.s32.totalorder %s52, %s53
    %p65 = scmp.eq.s32.totalorder %s15, 1
    %p66 = por %p64, %p65
    %p68 = scmp.ne.s32.totalorder %s53, %s67
    %p69 = scmp.eq.s32.totalorder %s15, 0
    %p70 = por %p68, %p69
    %s71 = ssub.s32 %s16, %s28
    %s72 = ssub.s32 %s17, %s24
    %s73 = sor.u32 %s71, %s72
    %p74 = scmp.eq.s32.totalorder %s73, 0
    %s76 = sadd.s32 %s75, 1
    %s77 = scalar_select %p74, %s75, %s76
    %p80 = pneg %p74
    %p81 = scmp.eq.s32.totalorder %s9, 1
    %p82 = por %p80, %p81
    %p83 = scmp.ne.s32.totalorder %s75, %s78
    %p84 = scmp.eq.s32.totalorder %s9, 0
    %p85 = por %p83, %p84
    %p86 = scmp.ne.s32.totalorder %s75, %s78
    %p87 = scmp.eq.s32.totalorder %s14, 1
    %p88 = por %p86, %p87
    %p89 = scmp.ne.s32.totalorder %s78, %s79
    %p90 = scmp.eq.s32.totalorder %s14, 0
    %p91 = por %p89, %p90
    %p92 = scmp.ne.s32.totalorder %s78, %s79
    %p93 = scmp.eq.s32.totalorder %s15, 1
    %p94 = por %p92, %p93
    %p96 = scmp.ne.s32.totalorder %s79, %s95
    %p97 = scmp.eq.s32.totalorder %s15, 0
    %p98 = por %p96, %p97
    %s99 = ssub.s32 %s16, %s28
    %p100 = scmp.eq.s32.totalorder %s99, 0
    %s102 = sadd.s32 %s101, 1
    %s103 = scalar_select %p100, %s101, %s102
    %p106 = pneg %p100
    %p107 = scmp.eq.s32.totalorder %s9, 1
    %p108 = por %p106, %p107
    %p109 = scmp.ne.s32.totalorder %s101, %s104
    %p110 = scmp.eq.s32.totalorder %s9, 0
    %p111 = por %p109, %p110
    %p112 = scmp.ne.s32.totalorder %s101, %s104
    %p113 = scmp.eq.s32.totalorder %s14, 1
    %p114 = por %p112, %p113
    %p115 = scmp.ne.s32.totalorder %s104, %s105
    %p116 = scmp.eq.s32.totalorder %s14, 0
    %p117 = por %p115, %p116
    %p118 = scmp.ne.s32.totalorder %s104, %s105
    %p119 = scmp.eq.s32.totalorder %s15, 1
    %p120 = por %p118, %p119
    %p122 = scmp.ne.s32.totalorder %s105, %s121
    %p123 = scmp.eq.s32.totalorder %s15, 0
    %p124 = por %p122, %p123
    %p125 = scmp.le.s32.totalorder 1, %s9
    %p126 = scmp.lt.s32.totalorder %s9, 3
    %p127 = pnand %p125, %p126
    %p128 = pneg %p127
    // Predicated region
    $region9: #{resnet_generator.21} parent=5 // pred_check
      _
    $region10: #{resnet_generator.21} parent=5 // pred_check_branch
      %130 = sbr.rel (%p127) target = $region12
    $region11: #{resnet_generator.21} parent=5 // pred_region
      %s131 = ssub.s32 %s9, 1
      // Predicated region
      $region13: #{resnet_generator.21} parent=11 // pred_check
        %p132 = pneg %p42
      $region14: #{resnet_generator.21} parent=11 // pred_check_branch
        %134 = sbr.rel (%p132) target = $region16
      $region15: #{resnet_generator.21} parent=11 // pred_region
        _
      $region16: #{resnet_generator.21} parent=11 // pred_fallthru
        _
      // Predicated region
      $region17: #{resnet_generator.21} parent=11 // pred_check
        %p135 = pneg %p63
      $region18: #{resnet_generator.21} parent=11 // pred_check_branch
        %137 = sbr.rel (%p135) target = $region20
      $region19: #{resnet_generator.21} parent=11 // pred_region
        _
      $region20: #{resnet_generator.21} parent=11 // pred_fallthru
        _
    $region12: #{resnet_generator.21} parent=5 // pred_fallthru
      _
    %p138 = scmp.lt.s32.totalorder %s9, 2
    // Predicated region
    $region21: #{resnet_generator.21} parent=5 // pred_check
      %p139 = pneg %p138
    $region22: #{resnet_generator.21} parent=5 // pred_check_branch
      %141 = sbr.rel (%p139) target = $region24
    $region23: #{resnet_generator.21} parent=5 // pred_region
      // Predicated region
      $region25: #{resnet_generator.21} parent=23 // pred_check
        %p142 = pneg %p85
      $region26: #{resnet_generator.21} parent=23 // pred_check_branch
        %144 = sbr.rel (%p142) target = $region28
      $region27: #{resnet_generator.21} parent=23 // pred_region
        %p145 = scmp.lt.s32.totalorder %s16, 1
        %s146 = scalar_select %p145, %s16, 1
        %p147 = scmp.lt.s32.totalorder %s17, 0
        %s148 = scalar_select %p147, %s17, 0
        %s149 = smul.addr %s146, 36
        %s150 = sadd.s32 %s148, %s149
        %s151 = smul.addr %s150, 4
        %s152 = scalar_lea.vmem %s2, %s151
      $region28: #{resnet_generator.21} parent=23 // pred_fallthru
        _
    $region24: #{resnet_generator.21} parent=5 // pred_fallthru
      _
    %p153 = scmp.le.s32.totalorder 1, %s9
    %p154 = scmp.lt.s32.totalorder %s9, 3
    %p155 = pnand %p153, %p154
    %p156 = pneg %p155
    // Predicated region
    $region29: #{resnet_generator.21} parent=5 // pred_check
      _
    $region30: #{resnet_generator.21} parent=5 // pred_check_branch
      %158 = sbr.rel (%p155) target = $region32
    $region31: #{resnet_generator.21} parent=5 // pred_region
      %s159 = ssub.s32 %s9, 1
      %p160 = pneg %p42
      %p161 = pneg %p39
      %p162 = pneg %p63
      %p163 = pneg %p60
      %p164 = scmp.lt.s32.totalorder %s18, 1
      %s165 = scalar_select %p164, %s18, 1
      %p166 = scmp.lt.s32.totalorder %s19, 0
      %s167 = scalar_select %p166, %s19, 0
      %s168 = smul.addr %s165, 36
      %s169 = sadd.s32 %s167, %s168
      %s170 = smul.addr %s169, 4
      %s171 = scalar_lea.vmem %s2, %s170
      %p172 = pneg %p91
      %p173 = pneg %p88
      %p174 = pneg %p117
      %p175 = pneg %p114
      %p176 = scmp.lt.s32.totalorder %s18, 1
      %s177 = scalar_select %p176, %s18, 1
      %s178 = smul.addr %s177, 4
      %s179 = smul.addr %s178, 8
      %s180 = scalar_lea.vmem %s3, %s179
      %p181 = scmp.lt.s32.totalorder %s18, 1
      %s182 = scalar_select %p181, %s18, 1
      %p183 = scmp.lt.s32.totalorder %s19, 0
      %s184 = scalar_select %p183, %s19, 0
      %s185 = smul.addr %s182, 36
      %s186 = sadd.s32 %s184, %s185
      %s187 = smul.addr %s186, 4
      %s188 = scalar_lea.vmem %s2, %s187
      %p189 = scmp.lt.s32.totalorder %s18, 1
      %s190 = scalar_select %p189, %s18, 1
      %s191 = smul.addr %s190, 4
      %s192 = smul.addr %s191, 8
      %s193 = scalar_lea.vmem %s3, %s192
      %v195 = vld [vmem:[%s0] sm:$0xff]
      %v196 = vld [vmem:[%s0 + $0x8] sm:$0xf]
      %v197 = vld [vmem:[%s0 + $0xc] sm:$0xff]
      %v198 = vld [vmem:[%s0 + $0x14] sm:$0xf]
      %v199 = vld [vmem:[%s0 + $0x18] sm:$0xff]
      %v200 = vld [vmem:[%s0 + $0x20] sm:$0xf]
      %v201 = vld [vmem:[%s0 + $0x24] sm:$0xff]
      %v202 = vld [vmem:[%s0 + $0x2c] sm:$0xf]
      %v203 = vld [vmem:[%s188] sm:$0xf]
      %v204 = vld [vmem:[%s188 + $0x4] sm:$0xf]
      %v205 = vld [vmem:[%s188 + $0x8] sm:$0xf]
      %v206 = vld [vmem:[%s188 + $0xc] sm:$0xf]
      %v207 = vld [vmem:[%s188 + $0x10] sm:$0xf]
      %v208 = vld [vmem:[%s188 + $0x14] sm:$0xf]
      %v209 = vld [vmem:[%s188 + $0x18] sm:$0xf]
      %v210 = vld [vmem:[%s188 + $0x1c] sm:$0xf]
      %v211 = vld [vmem:[%s188 + $0x20] sm:$0xf]
      %v212 = vld [vmem:[%s188 + $0x24] sm:$0xf]
      %v213 = vld [vmem:[%s188 + $0x28] sm:$0xf]
      %v214 = vld [vmem:[%s188 + $0x2c] sm:$0xf]
      %v215 = vld [vmem:[%s188 + $0x30] sm:$0xf]
      %v216 = vld [vmem:[%s188 + $0x34] sm:$0xf]
      %v217 = vld [vmem:[%s188 + $0x38] sm:$0xf]
      %v218 = vld [vmem:[%s188 + $0x3c] sm:$0xf]
      %v219 = vld [vmem:[%s188 + $0x40] sm:$0xf]
      %v220 = vld [vmem:[%s188 + $0x44] sm:$0xf]
      %v221 = vld [vmem:[%s188 + $0x48] sm:$0xf]
      %v222 = vld [vmem:[%s188 + $0x4c] sm:$0xf]
      %v223 = vld [vmem:[%s188 + $0x50] sm:$0xf]
      %v224 = vld [vmem:[%s188 + $0x54] sm:$0xf]
      %v225 = vld [vmem:[%s188 + $0x58] sm:$0xf]
      %v226 = vld [vmem:[%s188 + $0x5c] sm:$0xf]
      %v227 = vld [vmem:[%s188 + $0x60] sm:$0xf]
      %v228 = vld [vmem:[%s188 + $0x64] sm:$0xf]
      %v229 = vld [vmem:[%s188 + $0x68] sm:$0xf]
      %v230 = vld [vmem:[%s188 + $0x6c] sm:$0xf]
      %v231 = vld [vmem:[%s188 + $0x70] sm:$0xf]
      %v232 = vld [vmem:[%s188 + $0x74] sm:$0xf]
      %v233 = vld [vmem:[%s188 + $0x78] sm:$0xf]
      %v234 = vld [vmem:[%s188 + $0x7c] sm:$0xf]
      %v235 = vld [vmem:[%s188 + $0x80] sm:$0xf]
      %v236 = vld [vmem:[%s188 + $0x84] sm:$0xf]
      %v237 = vld [vmem:[%s188 + $0x88] sm:$0xf]
      %v238 = vld [vmem:[%s188 + $0x8c] sm:$0xf]
      %v239 = vld [vmem:[%s1] sm:$0xff]
      %v240 = vld [vmem:[%s1 + $0x8] sm:$0xff]
      %v241 = vld [vmem:[%s1 + $0x10] sm:$0xff]
      %v242 = vld [vmem:[%s1 + $0x18] sm:$0xff]
      %244 = vset.pattern.permute.xlu0 0
      %245 = vperm.xlu0 %244, %v239
      %v246 = vpop.permute.xlu0 %245
      %249 = vset.pattern.permute.xlu0 0
      %250 = vperm.xlu0 %249, %v240
      %v251 = vpop.permute.xlu0 %250
      %254 = vset.pattern.permute.xlu0 0
      %255 = vperm.xlu0 %254, %v241
      %v256 = vpop.permute.xlu0 %255
      %259 = vset.pattern.permute.xlu0 0
      %260 = vperm.xlu0 %259, %v242
      %v261 = vpop.permute.xlu0 %260
      %v271 = vunpack.c.l.b16 %v195
      %v272 = vunpack.c.h.b16 %v195
      %v273 = vunpack.c.l.b16 %v196
      %v274 = vunpack.c.l.b16 %v197
      %v275 = vunpack.c.h.b16 %v197
      %v276 = vunpack.c.l.b16 %v198
      %v277 = vunpack.c.l.b16 %v199
      %v278 = vunpack.c.h.b16 %v199
      %v279 = vunpack.c.l.b16 %v200
      %v280 = vunpack.c.l.b16 %v201
      %v281 = vunpack.c.h.b16 %v201
      %v282 = vunpack.c.l.b16 %v202
      %v283 = vpack.c.b16 %v274, %v271
      %v284 = vpack.c.b16 %v275, %v272
      %v285 = vpack.c.b16 %v276, %v273
      %v286 = vpack.c.b16 %v280, %v277
      %v287 = vpack.c.b16 %v281, %v278
      %v288 = vpack.c.b16 %v282, %v279
      %v329 = vunpack.c.l.b16 %v203
      %v330 = vunpack.c.l.b16 %v204
      %v331 = vunpack.c.l.b16 %v205
      %v332 = vunpack.c.l.b16 %v206
      %v333 = vunpack.c.l.b16 %v207
      %v334 = vunpack.c.l.b16 %v208
      %v335 = vunpack.c.l.b16 %v209
      %v336 = vunpack.c.l.b16 %v210
      %v337 = vunpack.c.l.b16 %v211
      %v338 = vunpack.c.l.b16 %v212
      %v339 = vunpack.c.l.b16 %v213
      %v340 = vunpack.c.l.b16 %v214
      %v341 = vunpack.c.l.b16 %v215
      %v342 = vunpack.c.l.b16 %v216
      %v343 = vunpack.c.l.b16 %v217
      %v344 = vunpack.c.l.b16 %v218
      %v345 = vunpack.c.l.b16 %v219
      %v346 = vunpack.c.l.b16 %v220
      %v347 = vunpack.c.l.b16 %v221
      %v348 = vunpack.c.l.b16 %v222
      %v349 = vunpack.c.l.b16 %v223
      %v350 = vunpack.c.l.b16 %v224
      %v351 = vunpack.c.l.b16 %v225
      %v352 = vunpack.c.l.b16 %v226
      %v353 = vunpack.c.l.b16 %v227
      %v354 = vunpack.c.l.b16 %v228
      %v355 = vunpack.c.l.b16 %v229
      %v356 = vunpack.c.l.b16 %v230
      %v357 = vunpack.c.l.b16 %v231
      %v358 = vunpack.c.l.b16 %v232
      %v359 = vunpack.c.l.b16 %v233
      %v360 = vunpack.c.l.b16 %v234
      %v361 = vunpack.c.l.b16 %v235
      %v362 = vunpack.c.l.b16 %v236
      %v363 = vunpack.c.l.b16 %v237
      %v364 = vunpack.c.l.b16 %v238
      %v365 = vpack.c.b16 %v330, %v329
      %v366 = vpack.c.b16 %v332, %v331
      %v367 = vpack.c.b16 %v334, %v333
      %v368 = vpack.c.b16 %v336, %v335
      %v369 = vpack.c.b16 %v338, %v337
      %v370 = vpack.c.b16 %v340, %v339
      %v371 = vpack.c.b16 %v342, %v341
      %v372 = vpack.c.b16 %v344, %v343
      %v373 = vpack.c.b16 %v346, %v345
      %v374 = vpack.c.b16 %v348, %v347
      %v375 = vpack.c.b16 %v350, %v349
      %v376 = vpack.c.b16 %v352, %v351
      %v377 = vpack.c.b16 %v354, %v353
      %v378 = vpack.c.b16 %v356, %v355
      %v379 = vpack.c.b16 %v358, %v357
      %v380 = vpack.c.b16 %v360, %v359
      %v381 = vpack.c.b16 %v362, %v361
      %v382 = vpack.c.b16 %v364, %v363
      %vm401 = vcmask 261120
      %v403 = vsel %vm401, %v285, 0
      %v406 = vsel %vm401, %v288, 0
      %408 = vmatprep.subr.bf16.mxu0 0
      %409 = vmatpush1.bf16.msra.mxu0 %v372
      %410 = vmatprep.subr.bf16.mxu0 0
      %411 = vmatpush1.bf16.msra.mxu0 %v371
      %412 = vmatprep.subr.bf16.mxu0 0
      %413 = vmatpush1.bf16.msra.mxu0 %v370
      %414 = vmatprep.subr.bf16.mxu0 0
      %415 = vmatpush1.bf16.msra.mxu0 %v369
      %416 = vmatprep.subr.bf16.mxu0 0
      %417 = vmatpush1.bf16.msra.mxu0 %v368
      %418 = vmatprep.subr.bf16.mxu0 0
      %419 = vmatpush1.bf16.msra.mxu0 %v367
      %420 = vmatprep.subr.bf16.mxu0 0
      %421 = vmatpush1.bf16.msra.mxu0 %v366
      %422 = vmatprep.subr.bf16.mxu0 0
      %423 = vmatpush1.bf16.msra.mxu0 %v365
      %424 = vmatprep.subr.bf16.mxu0 0
      %425 = vmatpush2.bf16.msra.mxu0 %v380
      %426 = vmatprep.subr.bf16.mxu0 0
      %427 = vmatpush2.bf16.msra.mxu0 %v379
      %428 = vmatprep.subr.bf16.mxu0 0
      %429 = vmatpush2.bf16.msra.mxu0 %v378
      %430 = vmatprep.subr.bf16.mxu0 0
      %431 = vmatpush2.bf16.msra.mxu0 %v377
      %432 = vmatprep.subr.bf16.mxu0 0
      %433 = vmatpush2.bf16.msra.mxu0 %v376
      %434 = vmatprep.subr.bf16.mxu0 0
      %435 = vmatpush2.bf16.msra.mxu0 %v375
      %436 = vmatprep.subr.bf16.mxu0 0
      %437 = vmatpush2.bf16.msra.mxu0 %v374
      %438 = vmatprep.subr.bf16.mxu0 0
      %439 = vmatpush2.bf16.msra.mxu0 %v373
      %440 = vmatprep.mubr.bf16.mxu0 %v284
      %441 = vmatmul.mubr.bf16.gmra.mxu0 %v283
      %v442 = vpop.f32.mrf.mxu0
      %v443 = vadd.f32 %v246, %v442
      %v444 = vpop.f32.mrf.mxu0
      %v445 = vpop.f32.mrf.mxu0
      %v446 = vadd.f32 %v251, %v445
      %v447 = vpop.f32.mrf.mxu0
      %448 = vmatprep.mubr.bf16.mxu0 %v287
      %449 = vmatmul.mubr.bf16.gmra.mxu0 %v286
      %v450 = vpop.f32.mrf.mxu0
      %v451 = vadd.f32 %v256, %v450
      %v452 = vpop.f32.mrf.mxu0
      %v453 = vpop.f32.mrf.mxu0
      %v454 = vadd.f32 %v261, %v453
      %v455 = vpop.f32.mrf.mxu0
      %456 = vdwg.mxu0
      %457 = vmatprep.subr.bf16.mxu0 0
      %458 = vmatpush1.bf16.msra.mxu0 0
      %459 = vmatprep.subr.bf16.mxu0 0
      %460 = vmatpush1.bf16.msra.mxu0 0
      %461 = vmatprep.subr.bf16.mxu0 0
      %462 = vmatpush1.bf16.msra.mxu0 0
      %463 = vmatprep.subr.bf16.mxu0 0
      %464 = vmatpush1.bf16.msra.mxu0 0
      %465 = vmatprep.subr.bf16.mxu0 0
      %466 = vmatpush1.bf16.msra.mxu0 0
      %467 = vmatprep.subr.bf16.mxu0 0
      %468 = vmatpush1.bf16.msra.mxu0 0
      %469 = vmatprep.subr.bf16.mxu0 0
      %470 = vmatpush1.bf16.msra.mxu0 %v382
      %471 = vmatprep.subr.bf16.mxu0 0
      %472 = vmatpush1.bf16.msra.mxu0 %v381
      %473 = vmatprep.subr.bf16.mxu0 0
      %474 = vmatpush2.bf16.msra.mxu0 0
      %475 = vmatprep.subr.bf16.mxu0 0
      %476 = vmatpush2.bf16.msra.mxu0 0
      %477 = vmatprep.subr.bf16.mxu0 0
      %478 = vmatpush2.bf16.msra.mxu0 0
      %479 = vmatprep.subr.bf16.mxu0 0
      %480 = vmatpush2.bf16.msra.mxu0 0
      %481 = vmatprep.subr.bf16.mxu0 0
      %482 = vmatpush2.bf16.msra.mxu0 0
      %483 = vmatprep.subr.bf16.mxu0 0
      %484 = vmatpush2.bf16.msra.mxu0 0
      %485 = vmatprep.subr.bf16.mxu0 0
      %486 = vmatpush2.bf16.msra.mxu0 0
      %487 = vmatprep.subr.bf16.mxu0 0
      %488 = vmatpush2.bf16.msra.mxu0 0
      %489 = vmatprep.mubr.bf16.mxu0 0
      %490 = vmatmul.mubr.bf16.gmra.mxu0 %v403
      %v491 = vpop.f32.mrf.mxu0
      %v492 = vadd.f32 %v443, %v491
      %v493 = vpop.f32.mrf.mxu0
      %v494 = vpop.f32.mrf.mxu0
      %v495 = vadd.f32 %v446, %v494
      %v496 = vpop.f32.mrf.mxu0
      %497 = vmatprep.mubr.bf16.mxu0 0
      %498 = vmatmul.mubr.bf16.gmra.mxu0 %v406
      %v499 = vpop.f32.mrf.mxu0
      %v500 = vadd.f32 %v451, %v499
      %v501 = vpop.f32.mrf.mxu0
      %v502 = vpop.f32.mrf.mxu0
      %v503 = vadd.f32 %v454, %v502
      %v504 = vpop.f32.mrf.mxu0
      %505 = vdwg.mxu0
      %vm506 = vcmask 130048
      %v507 = vsel %vm506, %v492, 0.0
      %508 = vadd.xlane.f32.xlu0 %v507
      %v509 = vpop.xlane.xlu0 %508
      %v510 = vsel %vm506, %v495, 0.0
      %511 = vadd.xlane.f32.xlu0 %v510
      %v512 = vpop.xlane.xlu0 %511
      %v513 = vsel %vm506, %v500, 0.0
      %514 = vadd.xlane.f32.xlu0 %v513
      %v515 = vpop.xlane.xlu0 %514
      %v516 = vsel %vm506, %v503, 0.0
      %517 = vadd.xlane.f32.xlu0 %v516
      %v518 = vpop.xlane.xlu0 %517
      %v519 = vrcp.pop 16.0
      %v520 = vmul.f32 %v509, %v519
      %v521 = vmul.f32 %v512, %v519
      %v522 = vmul.f32 %v515, %v519
      %v523 = vmul.f32 %v518, %v519
      %v524 = vsub.f32 %v492, %v520
      %v525 = vsub.f32 %v495, %v521
      %v526 = vsub.f32 %v500, %v522
      %v527 = vsub.f32 %v503, %v523
      %v528 = vmul.f32 %v524, %v524
      %v529 = vmul.f32 %v525, %v525
      %v530 = vmul.f32 %v526, %v526
      %v531 = vmul.f32 %v527, %v527
      %v532 = vsel %vm506, %v528, 0.0
      %533 = vadd.xlane.f32.xlu0 %v532
      %v534 = vpop.xlane.xlu0 %533
      %v535 = vsel %vm506, %v529, 0.0
      %536 = vadd.xlane.f32.xlu0 %v535
      %v537 = vpop.xlane.xlu0 %536
      %v538 = vsel %vm506, %v530, 0.0
      %539 = vadd.xlane.f32.xlu0 %v538
      %v540 = vpop.xlane.xlu0 %539
      %v541 = vsel %vm506, %v531, 0.0
      %542 = vadd.xlane.f32.xlu0 %v541
      %v543 = vpop.xlane.xlu0 %542
      %v544 = vmul.f32 %v534, %v519
      %v545 = vmul.f32 %v537, %v519
      %v546 = vmul.f32 %v540, %v519
      %v547 = vmul.f32 %v543, %v519
      %v548 = vadd.f32 %v544, 1e-05
      %v549 = vadd.f32 %v545, 1e-05
      %v550 = vadd.f32 %v546, 1e-05
      %v551 = vadd.f32 %v547, 1e-05
      %v552 = vrsqrt.pop %v548
      %v553 = vrsqrt.pop %v549
      %v554 = vrsqrt.pop %v550
      %v555 = vrsqrt.pop %v551
      %v556 = vmul.f32 %v524, %v552
      %v557 = vmul.f32 %v525, %v553
      %v558 = vmul.f32 %v526, %v554
      %v559 = vmul.f32 %v527, %v555
      %v560 = vmax.f32 %v556, 0.0
      %v561 = vmax.f32 %v557, 0.0
      %v562 = vmax.f32 %v558, 0.0
      %v563 = vmax.f32 %v559, 0.0
      %564 = vst.msk [vmem:[%s193] sm:$0xff] %vm506, %v560
      %565 = vst.msk [vmem:[%s193 + $0x8] sm:$0xff] %vm506, %v561
      %566 = vst.msk [vmem:[%s193 + $0x10] sm:$0xff] %vm506, %v562
      %567 = vst.msk [vmem:[%s193 + $0x18] sm:$0xff] %vm506, %v563
      %p568 = scmp.lt.s32.totalorder %s18, 1
      %s569 = scalar_select %p568, %s18, 1
      %s570 = smul.addr %s569, 4
      %s571 = smul.addr %s570, 8
      %s572 = scalar_lea.vmem %s3, %s571
      // Predicated region
      $region33: #{resnet_generator.21} parent=31 // pred_check
        %p573 = pneg %p114
      $region34: #{resnet_generator.21} parent=31 // pred_check_branch
        %575 = sbr.rel (%p573) target = $region36
      $region35: #{resnet_generator.21} parent=31 // pred_region
        _
      $region36: #{resnet_generator.21} parent=31 // pred_fallthru
        _
    $region32: #{resnet_generator.21} parent=5 // pred_fallthru
      _
    %p576 = scmp.le.s32.totalorder 2, %s9
    // Predicated region
    $region37: #{resnet_generator.21} parent=5 // pred_check
      %p577 = pneg %p576
    $region38: #{resnet_generator.21} parent=5 // pred_check_branch
      %579 = sbr.rel (%p577) target = $region40
    $region39: #{resnet_generator.21} parent=5 // pred_region
      %s580 = ssub.s32 %s9, 2
      // Predicated region
      $region41: #{resnet_generator.21} parent=39 // pred_check
        %p581 = pneg %p120
      $region42: #{resnet_generator.21} parent=39 // pred_check_branch
        %583 = sbr.rel (%p581) target = $region44
      $region43: #{resnet_generator.21} parent=39 // pred_region
        %p584 = scmp.lt.s32.totalorder %s20, 1
        %s585 = scalar_select %p584, %s20, 1
        %s586 = smul.addr %s585, 4
        %s587 = smul.addr %s586, 8
        %s588 = scalar_lea.vmem %s3, %s587
      $region44: #{resnet_generator.21} parent=39 // pred_fallthru
        _
    $region40: #{resnet_generator.21} parent=5 // pred_fallthru
      _
  $region6: #{resnet_generator.21} parent=0 // loop_footer
    %s13 = sadd.s32 1, %s9
  $region7: #{resnet_generator.21} parent=0 // loop_footer_branch
    %8 = sbr.rel target = $region3
  $region8: #{resnet_generator.21} parent=0 // loop_exit
    _

// kernel: resnet_generator.22
$region0: #{resnet_generator.22}
  #allocation0 [shape = 'u32[]', space=smem, size = 0x4, offset = 0x4, fixed_abs, tag = 'smem constant byte address 0x4 - core index']
  #allocation1 [shape = 'u32[144,128]{1,0:T(1,128)}', space=vmem, size = 0x12000, scoped, tag = 'internal scratch']
  %s0 = inlined_call_operand.vmem [shape: bf16[32,288], index: 0, kind: input, shape index: {}]
  %s1 = inlined_call_operand.vmem [shape: f32[32,1], index: 1, kind: input, shape index: {}]
  %s2 = inlined_call_operand.vmem [shape: bf16[2,288,16], index: 2, kind: input, shape index: {}]
  %s3 = inlined_call_operand.vmem [shape: f32[2,32,16], index: 3, kind: input, shape index: {}]
  %s4 = inlined_call_operand.vmem [shape: f32[2,32,16], index: 4, kind: output, shape index: {}]
  %s5 = sld [smem:[#allocation0]]
  $region49: #{resnet_generator.22} parent=0
    _
  %s7 = ssub.s32 1, %s5
  %s8 = scalar_select 0, %s7, %s5
  loop: start=0, step=1, limit=4
  $region2: #{resnet_generator.22} parent=0 // loop_pre_header
    _
  $region3: #{resnet_generator.22} parent=0 // loop_header
    %s10 = sphi 0, %s14
    %p11 = scmp.ge.s32.totalorder %s10, 4
    %s17 = sphi 0, %s29
    %s18 = sphi 0, %s25
    %s19 = sphi 0, %s17
    %s20 = sphi 0, %s18
    %s21 = sphi 0, %s19
    %s22 = sphi 0, %s20
    %s30 = sphi 0, %s30
    %s32 = sphi 0, %s30
    %s33 = sphi 0, %s32
    %s47 = sphi 0, %s33
    %s51 = sphi 0, %s51
    %s53 = sphi 0, %s51
    %s54 = sphi 0, %s53
    %s68 = sphi 0, %s54
    %s76 = sphi 0, %s78
    %s79 = sphi 0, %s76
    %s80 = sphi 0, %s79
    %s96 = sphi 0, %s80
    %s102 = sphi 0, %s104
    %s105 = sphi 0, %s102
    %s106 = sphi 0, %s105
    %s122 = sphi 0, %s106
    %s128 = sphi 0, %s130
    %s131 = sphi 0, %s128
    %s132 = sphi 0, %s131
    %s148 = sphi 0, %s132
  $region4: #{resnet_generator.22} parent=0 // loop_header_branch
    %13 = sbr.rel (%p11) target = $region8
  $region5: #{resnet_generator.22} parent=0 // loop_body
    %s15 = ssub.s32 %s10, 1
    %s16 = ssub.s32 %s10, 2
    %s23 = sadd.s32 1, %s18
    %p24 = scmp.ge.s32.totalorder %s23, 1
    %s25 = scalar_select %p24, 0, %s23
    %s26 = sadd.s32 1, %s17
    %s27 = scalar_select %p24, %s26, %s17
    %p28 = scmp.ge.s32.totalorder %s27, 2
    %s29 = scalar_select %p28, 0, %s27
    %s31 = sadd.s32 %s30, 1
    %p34 = scmp.eq.s32.totalorder %s10, 1
    %p35 = scmp.ne.s32.totalorder %s30, %s32
    %p36 = scmp.eq.s32.totalorder %s10, 0
    %p37 = por %p35, %p36
    %p38 = scmp.ne.s32.totalorder %s30, %s32
    %p39 = scmp.eq.s32.totalorder %s15, 1
    %p40 = por %p38, %p39
    %p41 = scmp.ne.s32.totalorder %s32, %s33
    %p42 = scmp.eq.s32.totalorder %s15, 0
    %p43 = por %p41, %p42
    %p44 = scmp.ne.s32.totalorder %s32, %s33
    %p45 = scmp.eq.s32.totalorder %s16, 1
    %p46 = por %p44, %p45
    %p48 = scmp.ne.s32.totalorder %s33, %s47
    %p49 = scmp.eq.s32.totalorder %s16, 0
    %p50 = por %p48, %p49
    %s52 = sadd.s32 %s51, 1
    %p55 = scmp.eq.s32.totalorder %s10, 1
    %p56 = scmp.ne.s32.totalorder %s51, %s53
    %p57 = scmp.eq.s32.totalorder %s10, 0
    %p58 = por %p56, %p57
    %p59 = scmp.ne.s32.totalorder %s51, %s53
    %p60 = scmp.eq.s32.totalorder %s15, 1
    %p61 = por %p59, %p60
    %p62 = scmp.ne.s32.totalorder %s53, %s54
    %p63 = scmp.eq.s32.totalorder %s15, 0
    %p64 = por %p62, %p63
    %p65 = scmp.ne.s32.totalorder %s53, %s54
    %p66 = scmp.eq.s32.totalorder %s16, 1
    %p67 = por %p65, %p66
    %p69 = scmp.ne.s32.totalorder %s54, %s68
    %p70 = scmp.eq.s32.totalorder %s16, 0
    %p71 = por %p69, %p70
    %s72 = ssub.s32 %s17, %s29
    %s73 = ssub.s32 %s18, %s25
    %s74 = sor.u32 %s72, %s73
    %p75 = scmp.eq.s32.totalorder %s74, 0
    %s77 = sadd.s32 %s76, 1
    %s78 = scalar_select %p75, %s76, %s77
    %p81 = pneg %p75
    %p82 = scmp.eq.s32.totalorder %s10, 1
    %p83 = por %p81, %p82
    %p84 = scmp.ne.s32.totalorder %s76, %s79
    %p85 = scmp.eq.s32.totalorder %s10, 0
    %p86 = por %p84, %p85
    %p87 = scmp.ne.s32.totalorder %s76, %s79
    %p88 = scmp.eq.s32.totalorder %s15, 1
    %p89 = por %p87, %p88
    %p90 = scmp.ne.s32.totalorder %s79, %s80
    %p91 = scmp.eq.s32.totalorder %s15, 0
    %p92 = por %p90, %p91
    %p93 = scmp.ne.s32.totalorder %s79, %s80
    %p94 = scmp.eq.s32.totalorder %s16, 1
    %p95 = por %p93, %p94
    %p97 = scmp.ne.s32.totalorder %s80, %s96
    %p98 = scmp.eq.s32.totalorder %s16, 0
    %p99 = por %p97, %p98
    %s100 = ssub.s32 %s17, %s29
    %p101 = scmp.eq.s32.totalorder %s100, 0
    %s103 = sadd.s32 %s102, 1
    %s104 = scalar_select %p101, %s102, %s103
    %p107 = pneg %p101
    %p108 = scmp.eq.s32.totalorder %s10, 1
    %p109 = por %p107, %p108
    %p110 = scmp.ne.s32.totalorder %s102, %s105
    %p111 = scmp.eq.s32.totalorder %s10, 0
    %p112 = por %p110, %p111
    %p113 = scmp.ne.s32.totalorder %s102, %s105
    %p114 = scmp.eq.s32.totalorder %s15, 1
    %p115 = por %p113, %p114
    %p116 = scmp.ne.s32.totalorder %s105, %s106
    %p117 = scmp.eq.s32.totalorder %s15, 0
    %p118 = por %p116, %p117
    %p119 = scmp.ne.s32.totalorder %s105, %s106
    %p120 = scmp.eq.s32.totalorder %s16, 1
    %p121 = por %p119, %p120
    %p123 = scmp.ne.s32.totalorder %s106, %s122
    %p124 = scmp.eq.s32.totalorder %s16, 0
    %p125 = por %p123, %p124
    %s126 = ssub.s32 %s17, %s29
    %p127 = scmp.eq.s32.totalorder %s126, 0
    %s129 = sadd.s32 %s128, 1
    %s130 = scalar_select %p127, %s128, %s129
    %p133 = pneg %p127
    %p134 = scmp.eq.s32.totalorder %s10, 1
    %p135 = por %p133, %p134
    %p136 = scmp.ne.s32.totalorder %s128, %s131
    %p137 = scmp.eq.s32.totalorder %s10, 0
    %p138 = por %p136, %p137
    %p139 = scmp.ne.s32.totalorder %s128, %s131
    %p140 = scmp.eq.s32.totalorder %s15, 1
    %p141 = por %p139, %p140
    %p142 = scmp.ne.s32.totalorder %s131, %s132
    %p143 = scmp.eq.s32.totalorder %s15, 0
    %p144 = por %p142, %p143
    %p145 = scmp.ne.s32.totalorder %s131, %s132
    %p146 = scmp.eq.s32.totalorder %s16, 1
    %p147 = por %p145, %p146
    %p149 = scmp.ne.s32.totalorder %s132, %s148
    %p150 = scmp.eq.s32.totalorder %s16, 0
    %p151 = por %p149, %p150
    %p152 = scmp.le.s32.totalorder 1, %s10
    %p153 = scmp.lt.s32.totalorder %s10, 3
    %p154 = pnand %p152, %p153
    %p155 = pneg %p154
    // Predicated region
    $region9: #{resnet_generator.22} parent=5 // pred_check
      _
    $region10: #{resnet_generator.22} parent=5 // pred_check_branch
      %157 = sbr.rel (%p154) target = $region12
    $region11: #{resnet_generator.22} parent=5 // pred_region
      %s158 = ssub.s32 %s10, 1
      // Predicated region
      $region13: #{resnet_generator.22} parent=11 // pred_check
        %p159 = pneg %p43
      $region14: #{resnet_generator.22} parent=11 // pred_check_branch
        %161 = sbr.rel (%p159) target = $region16
      $region15: #{resnet_generator.22} parent=11 // pred_region
        _
      $region16: #{resnet_generator.22} parent=11 // pred_fallthru
        _
      // Predicated region
      $region17: #{resnet_generator.22} parent=11 // pred_check
        %p162 = pneg %p64
      $region18: #{resnet_generator.22} parent=11 // pred_check_branch
        %164 = sbr.rel (%p162) target = $region20
      $region19: #{resnet_generator.22} parent=11 // pred_region
        _
      $region20: #{resnet_generator.22} parent=11 // pred_fallthru
        _
    $region12: #{resnet_generator.22} parent=5 // pred_fallthru
      _
    %p165 = scmp.lt.s32.totalorder %s10, 2
    // Predicated region
    $region21: #{resnet_generator.22} parent=5 // pred_check
      %p166 = pneg %p165
    $region22: #{resnet_generator.22} parent=5 // pred_check_branch
      %168 = sbr.rel (%p166) target = $region24
    $region23: #{resnet_generator.22} parent=5 // pred_region
      // Predicated region
      $region25: #{resnet_generator.22} parent=23 // pred_check
        %p169 = pneg %p86
      $region26: #{resnet_generator.22} parent=23 // pred_check_branch
        %171 = sbr.rel (%p169) target = $region28
      $region27: #{resnet_generator.22} parent=23 // pred_region
        %p172 = scmp.lt.s32.totalorder %s17, 1
        %s173 = scalar_select %p172, %s17, 1
        %p174 = scmp.lt.s32.totalorder %s18, 0
        %s175 = scalar_select %p174, %s18, 0
        %s176 = smul.addr %s173, 36
        %s177 = sadd.s32 %s175, %s176
        %s178 = smul.addr %s177, 4
        %s179 = scalar_lea.vmem %s2, %s178
      $region28: #{resnet_generator.22} parent=23 // pred_fallthru
        _
      // Predicated region
      $region29: #{resnet_generator.22} parent=23 // pred_check
        %p180 = pneg %p112
      $region30: #{resnet_generator.22} parent=23 // pred_check_branch
        %182 = sbr.rel (%p180) target = $region32
      $region31: #{resnet_generator.22} parent=23 // pred_region
        %p183 = scmp.lt.s32.totalorder %s17, 1
        %s184 = scalar_select %p183, %s17, 1
        %s185 = smul.addr %s184, 4
        %s186 = smul.addr %s185, 8
        %s187 = scalar_lea.vmem %s3, %s186
      $region32: #{resnet_generator.22} parent=23 // pred_fallthru
        _
    $region24: #{resnet_generator.22} parent=5 // pred_fallthru
      _
    %p188 = scmp.le.s32.totalorder 1, %s10
    %p189 = scmp.lt.s32.totalorder %s10, 3
    %p190 = pnand %p188, %p189
    %p191 = pneg %p190
    // Predicated region
    $region33: #{resnet_generator.22} parent=5 // pred_check
      _
    $region34: #{resnet_generator.22} parent=5 // pred_check_branch
      %193 = sbr.rel (%p190) target = $region36
    $region35: #{resnet_generator.22} parent=5 // pred_region
      %s194 = ssub.s32 %s10, 1
      %p195 = pneg %p43
      %p196 = pneg %p40
      %p197 = pneg %p64
      %p198 = pneg %p61
      %p199 = scmp.lt.s32.totalorder %s19, 1
      %s200 = scalar_select %p199, %s19, 1
      %p201 = scmp.lt.s32.totalorder %s20, 0
      %s202 = scalar_select %p201, %s20, 0
      %s203 = smul.addr %s200, 36
      %s204 = sadd.s32 %s202, %s203
      %s205 = smul.addr %s204, 4
      %s206 = scalar_lea.vmem %s2, %s205
      %p207 = pneg %p92
      %p208 = pneg %p89
      %p209 = scmp.lt.s32.totalorder %s19, 1
      %s210 = scalar_select %p209, %s19, 1
      %s211 = smul.addr %s210, 4
      %s212 = smul.addr %s211, 8
      %s213 = scalar_lea.vmem %s3, %s212
      %p214 = pneg %p118
      %p215 = pneg %p115
      %p216 = pneg %p144
      %p217 = pneg %p141
      %p218 = scmp.lt.s32.totalorder %s19, 1
      %s219 = scalar_select %p218, %s19, 1
      %s220 = smul.addr %s219, 4
      %s221 = smul.addr %s220, 8
      %s222 = scalar_lea.vmem %s4, %s221
      %p223 = scmp.lt.s32.totalorder %s19, 1
      %s224 = scalar_select %p223, %s19, 1
      %p225 = scmp.lt.s32.totalorder %s20, 0
      %s226 = scalar_select %p225, %s20, 0
      %s227 = smul.addr %s224, 36
      %s228 = sadd.s32 %s226, %s227
      %s229 = smul.addr %s228, 4
      %s230 = scalar_lea.vmem %s2, %s229
      %p231 = scmp.lt.s32.totalorder %s19, 1
      %s232 = scalar_select %p231, %s19, 1
      %s233 = smul.addr %s232, 4
      %s234 = smul.addr %s233, 8
      %s235 = scalar_lea.vmem %s3, %s234
      %p236 = scmp.lt.s32.totalorder %s19, 1
      %s237 = scalar_select %p236, %s19, 1
      %s238 = smul.addr %s237, 4
      %s239 = smul.addr %s238, 8
      %s240 = scalar_lea.vmem %s4, %s239
      %v242 = vld [vmem:[%s0] sm:$0xff]
      %v243 = vld [vmem:[%s0 + $0x8] sm:$0xf]
      %v244 = vld [vmem:[%s0 + $0xc] sm:$0xff]
      %v245 = vld [vmem:[%s0 + $0x14] sm:$0xf]
      %v246 = vld [vmem:[%s0 + $0x18] sm:$0xff]
      %v247 = vld [vmem:[%s0 + $0x20] sm:$0xf]
      %v248 = vld [vmem:[%s0 + $0x24] sm:$0xff]
      %v249 = vld [vmem:[%s0 + $0x2c] sm:$0xf]
      %v250 = vld [vmem:[%s230] sm:$0xf]
      %v251 = vld [vmem:[%s230 + $0x4] sm:$0xf]
      %v252 = vld [vmem:[%s230 + $0x8] sm:$0xf]
      %v253 = vld [vmem:[%s230 + $0xc] sm:$0xf]
      %v254 = vld [vmem:[%s230 + $0x10] sm:$0xf]
      %v255 = vld [vmem:[%s230 + $0x14] sm:$0xf]
      %v256 = vld [vmem:[%s230 + $0x18] sm:$0xf]
      %v257 = vld [vmem:[%s230 + $0x1c] sm:$0xf]
      %v258 = vld [vmem:[%s230 + $0x20] sm:$0xf]
      %v259 = vld [vmem:[%s230 + $0x24] sm:$0xf]
      %v260 = vld [vmem:[%s230 + $0x28] sm:$0xf]
      %v261 = vld [vmem:[%s230 + $0x2c] sm:$0xf]
      %v262 = vld [vmem:[%s230 + $0x30] sm:$0xf]
      %v263 = vld [vmem:[%s230 + $0x34] sm:$0xf]
      %v264 = vld [vmem:[%s230 + $0x38] sm:$0xf]
      %v265 = vld [vmem:[%s230 + $0x3c] sm:$0xf]
      %v266 = vld [vmem:[%s230 + $0x40] sm:$0xf]
      %v267 = vld [vmem:[%s230 + $0x44] sm:$0xf]
      %v268 = vld [vmem:[%s230 + $0x48] sm:$0xf]
      %v269 = vld [vmem:[%s230 + $0x4c] sm:$0xf]
      %v270 = vld [vmem:[%s230 + $0x50] sm:$0xf]
      %v271 = vld [vmem:[%s230 + $0x54] sm:$0xf]
      %v272 = vld [vmem:[%s230 + $0x58] sm:$0xf]
      %v273 = vld [vmem:[%s230 + $0x5c] sm:$0xf]
      %v274 = vld [vmem:[%s230 + $0x60] sm:$0xf]
      %v275 = vld [vmem:[%s230 + $0x64] sm:$0xf]
      %v276 = vld [vmem:[%s230 + $0x68] sm:$0xf]
      %v277 = vld [vmem:[%s230 + $0x6c] sm:$0xf]
      %v278 = vld [vmem:[%s230 + $0x70] sm:$0xf]
      %v279 = vld [vmem:[%s230 + $0x74] sm:$0xf]
      %v280 = vld [vmem:[%s230 + $0x78] sm:$0xf]
      %v281 = vld [vmem:[%s230 + $0x7c] sm:$0xf]
      %v282 = vld [vmem:[%s230 + $0x80] sm:$0xf]
      %v283 = vld [vmem:[%s230 + $0x84] sm:$0xf]
      %v284 = vld [vmem:[%s230 + $0x88] sm:$0xf]
      %v285 = vld [vmem:[%s230 + $0x8c] sm:$0xf]
      %v286 = vld [vmem:[%s1] sm:$0xff]
      %v287 = vld [vmem:[%s1 + $0x8] sm:$0xff]
      %v288 = vld [vmem:[%s1 + $0x10] sm:$0xff]
      %v289 = vld [vmem:[%s1 + $0x18] sm:$0xff]
      %291 = vset.pattern.permute.xlu0 0
      %292 = vperm.xlu0 %291, %v286
      %v293 = vpop.permute.xlu0 %292
      %296 = vset.pattern.permute.xlu0 0
      %297 = vperm.xlu0 %296, %v287
      %v298 = vpop.permute.xlu0 %297
      %301 = vset.pattern.permute.xlu0 0
      %302 = vperm.xlu0 %301, %v288
      %v303 = vpop.permute.xlu0 %302
      %306 = vset.pattern.permute.xlu0 0
      %307 = vperm.xlu0 %306, %v289
      %v308 = vpop.permute.xlu0 %307
      %v318 = vunpack.c.l.b16 %v242
      %v319 = vunpack.c.h.b16 %v242
      %v320 = vunpack.c.l.b16 %v243
      %v321 = vunpack.c.l.b16 %v244
      %v322 = vunpack.c.h.b16 %v244
      %v323 = vunpack.c.l.b16 %v245
      %v324 = vunpack.c.l.b16 %v246
      %v325 = vunpack.c.h.b16 %v246
      %v326 = vunpack.c.l.b16 %v247
      %v327 = vunpack.c.l.b16 %v248
      %v328 = vunpack.c.h.b16 %v248
      %v329 = vunpack.c.l.b16 %v249
      %v330 = vpack.c.b16 %v321, %v318
      %v331 = vpack.c.b16 %v322, %v319
      %v332 = vpack.c.b16 %v323, %v320
      %v333 = vpack.c.b16 %v327, %v324
      %v334 = vpack.c.b16 %v328, %v325
      %v335 = vpack.c.b16 %v329, %v326
      %v376 = vunpack.c.l.b16 %v250
      %v377 = vunpack.c.l.b16 %v251
      %v378 = vunpack.c.l.b16 %v252
      %v379 = vunpack.c.l.b16 %v253
      %v380 = vunpack.c.l.b16 %v254
      %v381 = vunpack.c.l.b16 %v255
      %v382 = vunpack.c.l.b16 %v256
      %v383 = vunpack.c.l.b16 %v257
      %v384 = vunpack.c.l.b16 %v258
      %v385 = vunpack.c.l.b16 %v259
      %v386 = vunpack.c.l.b16 %v260
      %v387 = vunpack.c.l.b16 %v261
      %v388 = vunpack.c.l.b16 %v262
      %v389 = vunpack.c.l.b16 %v263
      %v390 = vunpack.c.l.b16 %v264
      %v391 = vunpack.c.l.b16 %v265
      %v392 = vunpack.c.l.b16 %v266
      %v393 = vunpack.c.l.b16 %v267
      %v394 = vunpack.c.l.b16 %v268
      %v395 = vunpack.c.l.b16 %v269
      %v396 = vunpack.c.l.b16 %v270
      %v397 = vunpack.c.l.b16 %v271
      %v398 = vunpack.c.l.b16 %v272
      %v399 = vunpack.c.l.b16 %v273
      %v400 = vunpack.c.l.b16 %v274
      %v401 = vunpack.c.l.b16 %v275
      %v402 = vunpack.c.l.b16 %v276
      %v403 = vunpack.c.l.b16 %v277
      %v404 = vunpack.c.l.b16 %v278
      %v405 = vunpack.c.l.b16 %v279
      %v406 = vunpack.c.l.b16 %v280
      %v407 = vunpack.c.l.b16 %v281
      %v408 = vunpack.c.l.b16 %v282
      %v409 = vunpack.c.l.b16 %v283
      %v410 = vunpack.c.l.b16 %v284
      %v411 = vunpack.c.l.b16 %v285
      %v412 = vpack.c.b16 %v377, %v376
      %v413 = vpack.c.b16 %v379, %v378
      %v414 = vpack.c.b16 %v381, %v380
      %v415 = vpack.c.b16 %v383, %v382
      %v416 = vpack.c.b16 %v385, %v384
      %v417 = vpack.c.b16 %v387, %v386
      %v418 = vpack.c.b16 %v389, %v388
      %v419 = vpack.c.b16 %v391, %v390
      %v420 = vpack.c.b16 %v393, %v392
      %v421 = vpack.c.b16 %v395, %v394
      %v422 = vpack.c.b16 %v397, %v396
      %v423 = vpack.c.b16 %v399, %v398
      %v424 = vpack.c.b16 %v401, %v400
      %v425 = vpack.c.b16 %v403, %v402
      %v426 = vpack.c.b16 %v405, %v404
      %v427 = vpack.c.b16 %v407, %v406
      %v428 = vpack.c.b16 %v409, %v408
      %v429 = vpack.c.b16 %v411, %v410
      %vm448 = vcmask 261120
      %v450 = vsel %vm448, %v332, 0
      %v453 = vsel %vm448, %v335, 0
      %455 = vmatprep.subr.bf16.mxu0 0
      %456 = vmatpush1.bf16.msra.mxu0 %v419
      %457 = vmatprep.subr.bf16.mxu0 0
      %458 = vmatpush1.bf16.msra.mxu0 %v418
      %459 = vmatprep.subr.bf16.mxu0 0
      %460 = vmatpush1.bf16.msra.mxu0 %v417
      %461 = vmatprep.subr.bf16.mxu0 0
      %462 = vmatpush1.bf16.msra.mxu0 %v416
      %463 = vmatprep.subr.bf16.mxu0 0
      %464 = vmatpush1.bf16.msra.mxu0 %v415
      %465 = vmatprep.subr.bf16.mxu0 0
      %466 = vmatpush1.bf16.msra.mxu0 %v414
      %467 = vmatprep.subr.bf16.mxu0 0
      %468 = vmatpush1.bf16.msra.mxu0 %v413
      %469 = vmatprep.subr.bf16.mxu0 0
      %470 = vmatpush1.bf16.msra.mxu0 %v412
      %471 = vmatprep.subr.bf16.mxu0 0
      %472 = vmatpush2.bf16.msra.mxu0 %v427
      %473 = vmatprep.subr.bf16.mxu0 0
      %474 = vmatpush2.bf16.msra.mxu0 %v426
      %475 = vmatprep.subr.bf16.mxu0 0
      %476 = vmatpush2.bf16.msra.mxu0 %v425
      %477 = vmatprep.subr.bf16.mxu0 0
      %478 = vmatpush2.bf16.msra.mxu0 %v424
      %479 = vmatprep.subr.bf16.mxu0 0
      %480 = vmatpush2.bf16.msra.mxu0 %v423
      %481 = vmatprep.subr.bf16.mxu0 0
      %482 = vmatpush2.bf16.msra.mxu0 %v422
      %483 = vmatprep.subr.bf16.mxu0 0
      %484 = vmatpush2.bf16.msra.mxu0 %v421
      %485 = vmatprep.subr.bf16.mxu0 0
      %486 = vmatpush2.bf16.msra.mxu0 %v420
      %487 = vmatprep.mubr.bf16.mxu0 %v331
      %488 = vmatmul.mubr.bf16.gmra.mxu0 %v330
      %v489 = vpop.f32.mrf.mxu0
      %v490 = vadd.f32 %v293, %v489
      %v491 = vpop.f32.mrf.mxu0
      %v492 = vpop.f32.mrf.mxu0
      %v493 = vadd.f32 %v298, %v492
      %v494 = vpop.f32.mrf.mxu0
      %495 = vmatprep.mubr.bf16.mxu0 %v334
      %496 = vmatmul.mubr.bf16.gmra.mxu0 %v333
      %v497 = vpop.f32.mrf.mxu0
      %v498 = vadd.f32 %v303, %v497
      %v499 = vpop.f32.mrf.mxu0
      %v500 = vpop.f32.mrf.mxu0
      %v501 = vadd.f32 %v308, %v500
      %v502 = vpop.f32.mrf.mxu0
      %503 = vdwg.mxu0
      %504 = vmatprep.subr.bf16.mxu0 0
      %505 = vmatpush1.bf16.msra.mxu0 0
      %506 = vmatprep.subr.bf16.mxu0 0
      %507 = vmatpush1.bf16.msra.mxu0 0
      %508 = vmatprep.subr.bf16.mxu0 0
      %509 = vmatpush1.bf16.msra.mxu0 0
      %510 = vmatprep.subr.bf16.mxu0 0
      %511 = vmatpush1.bf16.msra.mxu0 0
      %512 = vmatprep.subr.bf16.mxu0 0
      %513 = vmatpush1.bf16.msra.mxu0 0
      %514 = vmatprep.subr.bf16.mxu0 0
      %515 = vmatpush1.bf16.msra.mxu0 0
      %516 = vmatprep.subr.bf16.mxu0 0
      %517 = vmatpush1.bf16.msra.mxu0 %v429
      %518 = vmatprep.subr.bf16.mxu0 0
      %519 = vmatpush1.bf16.msra.mxu0 %v428
      %520 = vmatprep.subr.bf16.mxu0 0
      %521 = vmatpush2.bf16.msra.mxu0 0
      %522 = vmatprep.subr.bf16.mxu0 0
      %523 = vmatpush2.bf16.msra.mxu0 0
      %524 = vmatprep.subr.bf16.mxu0 0
      %525 = vmatpush2.bf16.msra.mxu0 0
      %526 = vmatprep.subr.bf16.mxu0 0
      %527 = vmatpush2.bf16.msra.mxu0 0
      %528 = vmatprep.subr.bf16.mxu0 0
      %529 = vmatpush2.bf16.msra.mxu0 0
      %530 = vmatprep.subr.bf16.mxu0 0
      %531 = vmatpush2.bf16.msra.mxu0 0
      %532 = vmatprep.subr.bf16.mxu0 0
      %533 = vmatpush2.bf16.msra.mxu0 0
      %534 = vmatprep.subr.bf16.mxu0 0
      %535 = vmatpush2.bf16.msra.mxu0 0
      %536 = vmatprep.mubr.bf16.mxu0 0
      %537 = vmatmul.mubr.bf16.gmra.mxu0 %v450
      %v538 = vpop.f32.mrf.mxu0
      %v539 = vadd.f32 %v490, %v538
      %v540 = vpop.f32.mrf.mxu0
      %v541 = vpop.f32.mrf.mxu0
      %v542 = vadd.f32 %v493, %v541
      %v543 = vpop.f32.mrf.mxu0
      %544 = vmatprep.mubr.bf16.mxu0 0
      %545 = vmatmul.mubr.bf16.gmra.mxu0 %v453
      %v546 = vpop.f32.mrf.mxu0
      %v547 = vadd.f32 %v498, %v546
      %v548 = vpop.f32.mrf.mxu0
      %v549 = vpop.f32.mrf.mxu0
      %v550 = vadd.f32 %v501, %v549
      %v551 = vpop.f32.mrf.mxu0
      %552 = vdwg.mxu0
      %vm553 = vcmask 130048
      %v554 = vsel %vm553, %v539, 0.0
      %555 = vadd.xlane.f32.xlu0 %v554
      %v556 = vpop.xlane.xlu0 %555
      %v557 = vsel %vm553, %v542, 0.0
      %558 = vadd.xlane.f32.xlu0 %v557
      %v559 = vpop.xlane.xlu0 %558
      %v560 = vsel %vm553, %v547, 0.0
      %561 = vadd.xlane.f32.xlu0 %v560
      %v562 = vpop.xlane.xlu0 %561
      %v563 = vsel %vm553, %v550, 0.0
      %564 = vadd.xlane.f32.xlu0 %v563
      %v565 = vpop.xlane.xlu0 %564
      %v566 = vrcp.pop 16.0
      %v567 = vmul.f32 %v556, %v566
      %v568 = vmul.f32 %v559, %v566
      %v569 = vmul.f32 %v562, %v566
      %v570 = vmul.f32 %v565, %v566
      %v571 = vsub.f32 %v539, %v567
      %v572 = vsub.f32 %v542, %v568
      %v573 = vsub.f32 %v547, %v569
      %v574 = vsub.f32 %v550, %v570
      %v575 = vmul.f32 %v571, %v571
      %v576 = vmul.f32 %v572, %v572
      %v577 = vmul.f32 %v573, %v573
      %v578 = vmul.f32 %v574, %v574
      %v579 = vsel %vm553, %v575, 0.0
      %580 = vadd.xlane.f32.xlu0 %v579
      %v581 = vpop.xlane.xlu0 %580
      %v582 = vsel %vm553, %v576, 0.0
      %583 = vadd.xlane.f32.xlu0 %v582
      %v584 = vpop.xlane.xlu0 %583
      %v585 = vsel %vm553, %v577, 0.0
      %586 = vadd.xlane.f32.xlu0 %v585
      %v587 = vpop.xlane.xlu0 %586
      %v588 = vsel %vm553, %v578, 0.0
      %589 = vadd.xlane.f32.xlu0 %v588
      %v590 = vpop.xlane.xlu0 %589
      %v591 = vmul.f32 %v581, %v566
      %v592 = vmul.f32 %v584, %v566
      %v593 = vmul.f32 %v587, %v566
      %v594 = vmul.f32 %v590, %v566
      %v595 = vadd.f32 %v591, 1e-05
      %v596 = vadd.f32 %v592, 1e-05
      %v597 = vadd.f32 %v593, 1e-05
      %v598 = vadd.f32 %v594, 1e-05
      %v599 = vrsqrt.pop %v595
      %v600 = vrsqrt.pop %v596
      %v601 = vrsqrt.pop %v597
      %v602 = vrsqrt.pop %v598
      %v603 = vmul.f32 %v571, %v599
      %v604 = vmul.f32 %v572, %v600
      %v605 = vmul.f32 %v573, %v601
      %v606 = vmul.f32 %v574, %v602
      %v607 = vld [vmem:[%s235] sm:$0xff]
      %v608 = vld [vmem:[%s235 + $0x8] sm:$0xff]
      %v609 = vld [vmem:[%s235 + $0x10] sm:$0xff]
      %v610 = vld [vmem:[%s235 + $0x18] sm:$0xff]
      %v611 = vadd.f32 %v603, %v607
      %v612 = vadd.f32 %v604, %v608
      %v613 = vadd.f32 %v605, %v609
      %v614 = vadd.f32 %v606, %v610
      %615 = vst.msk [vmem:[%s240] sm:$0xff] %vm553, %v611
      %616 = vst.msk [vmem:[%s240 + $0x8] sm:$0xff] %vm553, %v612
      %617 = vst.msk [vmem:[%s240 + $0x10] sm:$0xff] %vm553, %v613
      %618 = vst.msk [vmem:[%s240 + $0x18] sm:$0xff] %vm553, %v614
      %p619 = scmp.lt.s32.totalorder %s19, 1
      %s620 = scalar_select %p619, %s19, 1
      %s621 = smul.addr %s620, 4
      %s622 = smul.addr %s621, 8
      %s623 = scalar_lea.vmem %s4, %s622
      // Predicated region
      $region37: #{resnet_generator.22} parent=35 // pred_check
        %p624 = pneg %p141
      $region38: #{resnet_generator.22} parent=35 // pred_check_branch
        %626 = sbr.rel (%p624) target = $region40
      $region39: #{resnet_generator.22} parent=35 // pred_region
        _
      $region40: #{resnet_generator.22} parent=35 // pred_fallthru
        _
    $region36: #{resnet_generator.22} parent=5 // pred_fallthru
      _
    %p627 = scmp.le.s32.totalorder 2, %s10
    // Predicated region
    $region41: #{resnet_generator.22} parent=5 // pred_check
      %p628 = pneg %p627
    $region42: #{resnet_generator.22} parent=5 // pred_check_branch
      %630 = sbr.rel (%p628) target = $region44
    $region43: #{resnet_generator.22} parent=5 // pred_region
      %s631 = ssub.s32 %s10, 2
      // Predicated region
      $region45: #{resnet_generator.22} parent=43 // pred_check
        %p632 = pneg %p147
      $region46: #{resnet_generator.22} parent=43 // pred_check_branch
        %634 = sbr.rel (%p632) target = $region48
      $region47: #{resnet_generator.22} parent=43 // pred_region
        %p635 = scmp.lt.s32.totalorder %s21, 1
        %s636 = scalar_select %p635, %s21, 1
        %s637 = smul.addr %s636, 4
        %s638 = smul.addr %s637, 8
        %s639 = scalar_lea.vmem %s4, %s638
      $region48: #{resnet_generator.22} parent=43 // pred_fallthru
        _
    $region44: #{resnet_generator.22} parent=5 // pred_fallthru
      _
  $region6: #{resnet_generator.22} parent=0 // loop_footer
    %s14 = sadd.s32 1, %s10
  $region7: #{resnet_generator.22} parent=0 // loop_footer_branch
    %9 = sbr.rel target = $region3
  $region8: #{resnet_generator.22} parent=0 // loop_exit
    _

// kernel: resnet_generator.33
$region0: #{resnet_generator.33}
  #allocation0 [shape = 'u32[]', space=smem, size = 0x4, offset = 0x4, fixed_abs, tag = 'smem constant byte address 0x4 - core index']
  #allocation1 [shape = 'u32[144,128]{1,0:T(1,128)}', space=vmem, size = 0x12000, scoped, tag = 'internal scratch']
  %s0 = inlined_call_operand.vmem [shape: bf16[64,128], index: 0, kind: input, shape index: {}]
  %s1 = inlined_call_operand.vmem [shape: f32[64,1], index: 1, kind: input, shape index: {}]
  %s2 = inlined_call_operand.vmem [shape: bf16[2,128,16], index: 2, kind: input, shape index: {}]
  %s3 = inlined_call_operand.vmem [shape: f32[2,64,16], index: 3, kind: output, shape index: {}]
  %s4 = sld [smem:[#allocation0]]
  $region45: #{resnet_generator.33} parent=0
    _
  %s6 = ssub.s32 1, %s4
  %s7 = scalar_select 0, %s6, %s4
  loop: start=0, step=1, limit=4
  $region2: #{resnet_generator.33} parent=0 // loop_pre_header
    _
  $region3: #{resnet_generator.33} parent=0 // loop_header
    %s9 = sphi 0, %s13
    %p10 = scmp.ge.s32.totalorder %s9, 4
    %s16 = sphi 0, %s28
    %s17 = sphi 0, %s24
    %s18 = sphi 0, %s16
    %s19 = sphi 0, %s17
    %s20 = sphi 0, %s18
    %s21 = sphi 0, %s19
    %s29 = sphi 0, %s29
    %s31 = sphi 0, %s29
    %s32 = sphi 0, %s31
    %s46 = sphi 0, %s32
    %s50 = sphi 0, %s50
    %s52 = sphi 0, %s50
    %s53 = sphi 0, %s52
    %s67 = sphi 0, %s53
    %s75 = sphi 0, %s77
    %s78 = sphi 0, %s75
    %s79 = sphi 0, %s78
    %s95 = sphi 0, %s79
    %s101 = sphi 0, %s103
    %s104 = sphi 0, %s101
    %s105 = sphi 0, %s104
    %s121 = sphi 0, %s105
  $region4: #{resnet_generator.33} parent=0 // loop_header_branch
    %12 = sbr.rel (%p10) target = $region8
  $region5: #{resnet_generator.33} parent=0 // loop_body
    %s14 = ssub.s32 %s9, 1
    %s15 = ssub.s32 %s9, 2
    %s22 = sadd.s32 1, %s17
    %p23 = scmp.ge.s32.totalorder %s22, 1
    %s24 = scalar_select %p23, 0, %s22
    %s25 = sadd.s32 1, %s16
    %s26 = scalar_select %p23, %s25, %s16
    %p27 = scmp.ge.s32.totalorder %s26, 2
    %s28 = scalar_select %p27, 0, %s26
    %s30 = sadd.s32 %s29, 1
    %p33 = scmp.eq.s32.totalorder %s9, 1
    %p34 = scmp.ne.s32.totalorder %s29, %s31
    %p35 = scmp.eq.s32.totalorder %s9, 0
    %p36 = por %p34, %p35
    %p37 = scmp.ne.s32.totalorder %s29, %s31
    %p38 = scmp.eq.s32.totalorder %s14, 1
    %p39 = por %p37, %p38
    %p40 = scmp.ne.s32.totalorder %s31, %s32
    %p41 = scmp.eq.s32.totalorder %s14, 0
    %p42 = por %p40, %p41
    %p43 = scmp.ne.s32.totalorder %s31, %s32
    %p44 = scmp.eq.s32.totalorder %s15, 1
    %p45 = por %p43, %p44
    %p47 = scmp.ne.s32.totalorder %s32, %s46
    %p48 = scmp.eq.s32.totalorder %s15, 0
    %p49 = por %p47, %p48
    %s51 = sadd.s32 %s50, 1
    %p54 = scmp.eq.s32.totalorder %s9, 1
    %p55 = scmp.ne.s32.totalorder %s50, %s52
    %p56 = scmp.eq.s32.totalorder %s9, 0
    %p57 = por %p55, %p56
    %p58 = scmp.ne.s32.totalorder %s50, %s52
    %p59 = scmp.eq.s32.totalorder %s14, 1
    %p60 = por %p58, %p59
    %p61 = scmp.ne.s32.totalorder %s52, %s53
    %p62 = scmp.eq.s32.totalorder %s14, 0
    %p63 = por %p61, %p62
    %p64 = scmp.ne.s32.totalorder %s52, %s53
    %p65 = scmp.eq.s32.totalorder %s15, 1
    %p66 = por %p64, %p65
    %p68 = scmp.ne.s32.totalorder %s53, %s67
    %p69 = scmp.eq.s32.totalorder %s15, 0
    %p70 = por %p68, %p69
    %s71 = ssub.s32 %s16, %s28
    %s72 = ssub.s32 %s17, %s24
    %s73 = sor.u32 %s71, %s72
    %p74 = scmp.eq.s32.totalorder %s73, 0
    %s76 = sadd.s32 %s75, 1
    %s77 = scalar_select %p74, %s75, %s76
    %p80 = pneg %p74
    %p81 = scmp.eq.s32.totalorder %s9, 1
    %p82 = por %p80, %p81
    %p83 = scmp.ne.s32.totalorder %s75, %s78
    %p84 = scmp.eq.s32.totalorder %s9, 0
    %p85 = por %p83, %p84
    %p86 = scmp.ne.s32.totalorder %s75, %s78
    %p87 = scmp.eq.s32.totalorder %s14, 1
    %p88 = por %p86, %p87
    %p89 = scmp.ne.s32.totalorder %s78, %s79
    %p90 = scmp.eq.s32.totalorder %s14, 0
    %p91 = por %p89, %p90
    %p92 = scmp.ne.s32.totalorder %s78, %s79
    %p93 = scmp.eq.s32.totalorder %s15, 1
    %p94 = por %p92, %p93
    %p96 = scmp.ne.s32.totalorder %s79, %s95
    %p97 = scmp.eq.s32.totalorder %s15, 0
    %p98 = por %p96, %p97
    %s99 = ssub.s32 %s16, %s28
    %p100 = scmp.eq.s32.totalorder %s99, 0
    %s102 = sadd.s32 %s101, 1
    %s103 = scalar_select %p100, %s101, %s102
    %p106 = pneg %p100
    %p107 = scmp.eq.s32.totalorder %s9, 1
    %p108 = por %p106, %p107
    %p109 = scmp.ne.s32.totalorder %s101, %s104
    %p110 = scmp.eq.s32.totalorder %s9, 0
    %p111 = por %p109, %p110
    %p112 = scmp.ne.s32.totalorder %s101, %s104
    %p113 = scmp.eq.s32.totalorder %s14, 1
    %p114 = por %p112, %p113
    %p115 = scmp.ne.s32.totalorder %s104, %s105
    %p116 = scmp.eq.s32.totalorder %s14, 0
    %p117 = por %p115, %p116
    %p118 = scmp.ne.s32.totalorder %s104, %s105
    %p119 = scmp.eq.s32.totalorder %s15, 1
    %p120 = por %p118, %p119
    %p122 = scmp.ne.s32.totalorder %s105, %s121
    %p123 = scmp.eq.s32.totalorder %s15, 0
    %p124 = por %p122, %p123
    %p125 = scmp.le.s32.totalorder 1, %s9
    %p126 = scmp.lt.s32.totalorder %s9, 3
    %p127 = pnand %p125, %p126
    %p128 = pneg %p127
    // Predicated region
    $region9: #{resnet_generator.33} parent=5 // pred_check
      _
    $region10: #{resnet_generator.33} parent=5 // pred_check_branch
      %130 = sbr.rel (%p127) target = $region12
    $region11: #{resnet_generator.33} parent=5 // pred_region
      %s131 = ssub.s32 %s9, 1
      // Predicated region
      $region13: #{resnet_generator.33} parent=11 // pred_check
        %p132 = pneg %p42
      $region14: #{resnet_generator.33} parent=11 // pred_check_branch
        %134 = sbr.rel (%p132) target = $region16
      $region15: #{resnet_generator.33} parent=11 // pred_region
        _
      $region16: #{resnet_generator.33} parent=11 // pred_fallthru
        _
      // Predicated region
      $region17: #{resnet_generator.33} parent=11 // pred_check
        %p135 = pneg %p63
      $region18: #{resnet_generator.33} parent=11 // pred_check_branch
        %137 = sbr.rel (%p135) target = $region20
      $region19: #{resnet_generator.33} parent=11 // pred_region
        _
      $region20: #{resnet_generator.33} parent=11 // pred_fallthru
        _
    $region12: #{resnet_generator.33} parent=5 // pred_fallthru
      _
    %p138 = scmp.lt.s32.totalorder %s9, 2
    // Predicated region
    $region21: #{resnet_generator.33} parent=5 // pred_check
      %p139 = pneg %p138
    $region22: #{resnet_generator.33} parent=5 // pred_check_branch
      %141 = sbr.rel (%p139) target = $region24
    $region23: #{resnet_generator.33} parent=5 // pred_region
      // Predicated region
      $region25: #{resnet_generator.33} parent=23 // pred_check
        %p142 = pneg %p85
      $region26: #{resnet_generator.33} parent=23 // pred_check_branch
        %144 = sbr.rel (%p142) target = $region28
      $region27: #{resnet_generator.33} parent=23 // pred_region
        %p145 = scmp.lt.s32.totalorder %s16, 1
        %s146 = scalar_select %p145, %s16, 1
        %p147 = scmp.lt.s32.totalorder %s17, 0
        %s148 = scalar_select %p147, %s17, 0
        %s149 = smul.addr %s146, 16
        %s150 = sadd.s32 %s148, %s149
        %s151 = smul.addr %s150, 4
        %s152 = scalar_lea.vmem %s2, %s151
      $region28: #{resnet_generator.33} parent=23 // pred_fallthru
        _
    $region24: #{resnet_generator.33} parent=5 // pred_fallthru
      _
    %p153 = scmp.le.s32.totalorder 1, %s9
    %p154 = scmp.lt.s32.totalorder %s9, 3
    %p155 = pnand %p153, %p154
    %p156 = pneg %p155
    // Predicated region
    $region29: #{resnet_generator.33} parent=5 // pred_check
      _
    $region30: #{resnet_generator.33} parent=5 // pred_check_branch
      %158 = sbr.rel (%p155) target = $region32
    $region31: #{resnet_generator.33} parent=5 // pred_region
      %s159 = ssub.s32 %s9, 1
      %p160 = pneg %p42
      %p161 = pneg %p39
      %p162 = pneg %p63
      %p163 = pneg %p60
      %p164 = scmp.lt.s32.totalorder %s18, 1
      %s165 = scalar_select %p164, %s18, 1
      %p166 = scmp.lt.s32.totalorder %s19, 0
      %s167 = scalar_select %p166, %s19, 0
      %s168 = smul.addr %s165, 16
      %s169 = sadd.s32 %s167, %s168
      %s170 = smul.addr %s169, 4
      %s171 = scalar_lea.vmem %s2, %s170
      %p172 = pneg %p91
      %p173 = pneg %p88
      %p174 = pneg %p117
      %p175 = pneg %p114
      %p176 = scmp.lt.s32.totalorder %s18, 1
      %s177 = scalar_select %p176, %s18, 1
      %s178 = smul.addr %s177, 8
      %s179 = smul.addr %s178, 8
      %s180 = scalar_lea.vmem %s3, %s179
      %p181 = scmp.lt.s32.totalorder %s18, 1
      %s182 = scalar_select %p181, %s18, 1
      %p183 = scmp.lt.s32.totalorder %s19, 0
      %s184 = scalar_select %p183, %s19, 0
      %s185 = smul.addr %s182, 16
      %s186 = sadd.s32 %s184, %s185
      %s187 = smul.addr %s186, 4
      %s188 = scalar_lea.vmem %s2, %s187
      %p189 = scmp.lt.s32.totalorder %s18, 1
      %s190 = scalar_select %p189, %s18, 1
      %s191 = smul.addr %s190, 8
      %s192 = smul.addr %s191, 8
      %s193 = scalar_lea.vmem %s3, %s192
      %v195 = vld [vmem:[%s0] sm:$0xf]
      %v196 = vld [vmem:[%s0 + $0x4] sm:$0xf]
      %v197 = vld [vmem:[%s0 + $0x8] sm:$0xf]
      %v198 = vld [vmem:[%s0 + $0xc] sm:$0xf]
      %v199 = vld [vmem:[%s0 + $0x10] sm:$0xf]
      %v200 = vld [vmem:[%s0 + $0x14] sm:$0xf]
      %v201 = vld [vmem:[%s0 + $0x18] sm:$0xf]
      %v202 = vld [vmem:[%s0 + $0x1c] sm:$0xf]
      %v203 = vld [vmem:[%s188] sm:$0xf]
      %v204 = vld [vmem:[%s188 + $0x4] sm:$0xf]
      %v205 = vld [vmem:[%s188 + $0x8] sm:$0xf]
      %v206 = vld [vmem:[%s188 + $0xc] sm:$0xf]
      %v207 = vld [vmem:[%s188 + $0x10] sm:$0xf]
      %v208 = vld [vmem:[%s188 + $0x14] sm:$0xf]
      %v209 = vld [vmem:[%s188 + $0x18] sm:$0xf]
      %v210 = vld [vmem:[%s188 + $0x1c] sm:$0xf]
      %v211 = vld [vmem:[%s188 + $0x20] sm:$0xf]
      %v212 = vld [vmem:[%s188 + $0x24] sm:$0xf]
      %v213 = vld [vmem:[%s188 + $0x28] sm:$0xf]
      %v214 = vld [vmem:[%s188 + $0x2c] sm:$0xf]
      %v215 = vld [vmem:[%s188 + $0x30] sm:$0xf]
      %v216 = vld [vmem:[%s188 + $0x34] sm:$0xf]
      %v217 = vld [vmem:[%s188 + $0x38] sm:$0xf]
      %v218 = vld [vmem:[%s188 + $0x3c] sm:$0xf]
      %v219 = vld [vmem:[%s1] sm:$0xff]
      %v220 = vld [vmem:[%s1 + $0x8] sm:$0xff]
      %v221 = vld [vmem:[%s1 + $0x10] sm:$0xff]
      %v222 = vld [vmem:[%s1 + $0x18] sm:$0xff]
      %v223 = vld [vmem:[%s1 + $0x20] sm:$0xff]
      %v224 = vld [vmem:[%s1 + $0x28] sm:$0xff]
      %v225 = vld [vmem:[%s1 + $0x30] sm:$0xff]
      %v226 = vld [vmem:[%s1 + $0x38] sm:$0xff]
      %228 = vset.pattern.permute.xlu0 0
      %229 = vperm.xlu0 %228, %v219
      %v230 = vpop.permute.xlu0 %229
      %233 = vset.pattern.permute.xlu0 0
      %234 = vperm.xlu0 %233, %v220
      %v235 = vpop.permute.xlu0 %234
      %238 = vset.pattern.permute.xlu0 0
      %239 = vperm.xlu0 %238, %v221
      %v240 = vpop.permute.xlu0 %239
      %243 = vset.pattern.permute.xlu0 0
      %244 = vperm.xlu0 %243, %v222
      %v245 = vpop.permute.xlu0 %244
      %248 = vset.pattern.permute.xlu0 0
      %249 = vperm.xlu0 %248, %v223
      %v250 = vpop.permute.xlu0 %249
      %253 = vset.pattern.permute.xlu0 0
      %254 = vperm.xlu0 %253, %v224
      %v255 = vpop.permute.xlu0 %254
      %258 = vset.pattern.permute.xlu0 0
      %259 = vperm.xlu0 %258, %v225
      %v260 = vpop.permute.xlu0 %259
      %263 = vset.pattern.permute.xlu0 0
      %264 = vperm.xlu0 %263, %v226
      %v265 = vpop.permute.xlu0 %264
      %v275 = vunpack.c.l.b16 %v195
      %v276 = vunpack.c.l.b16 %v196
      %v277 = vunpack.c.l.b16 %v197
      %v278 = vunpack.c.l.b16 %v198
      %v279 = vunpack.c.l.b16 %v199
      %v280 = vunpack.c.l.b16 %v200
      %v281 = vunpack.c.l.b16 %v201
      %v282 = vunpack.c.l.b16 %v202
      %v283 = vpack.c.b16 %v276, %v275
      %v284 = vpack.c.b16 %v278, %v277
      %v285 = vpack.c.b16 %v280, %v279
      %v286 = vpack.c.b16 %v282, %v281
      %v307 = vunpack.c.l.b16 %v203
      %v308 = vunpack.c.l.b16 %v204
      %v309 = vunpack.c.l.b16 %v205
      %v310 = vunpack.c.l.b16 %v206
      %v311 = vunpack.c.l.b16 %v207
      %v312 = vunpack.c.l.b16 %v208
      %v313 = vunpack.c.l.b16 %v209
      %v314 = vunpack.c.l.b16 %v210
      %v315 = vunpack.c.l.b16 %v211
      %v316 = vunpack.c.l.b16 %v212
      %v317 = vunpack.c.l.b16 %v213
      %v318 = vunpack.c.l.b16 %v214
      %v319 = vunpack.c.l.b16 %v215
      %v320 = vunpack.c.l.b16 %v216
      %v321 = vunpack.c.l.b16 %v217
      %v322 = vunpack.c.l.b16 %v218
      %v323 = vpack.c.b16 %v308, %v307
      %v324 = vpack.c.b16 %v310, %v309
      %v325 = vpack.c.b16 %v312, %v311
      %v326 = vpack.c.b16 %v314, %v313
      %v327 = vpack.c.b16 %v316, %v315
      %v328 = vpack.c.b16 %v318, %v317
      %v329 = vpack.c.b16 %v320, %v319
      %v330 = vpack.c.b16 %v322, %v321
      %339 = vmatprep.subr.bf16.mxu0 0
      %340 = vmatpush1.bf16.msra.mxu0 %v330
      %341 = vmatprep.subr.bf16.mxu0 0
      %342 = vmatpush1.bf16.msra.mxu0 %v329
      %343 = vmatprep.subr.bf16.mxu0 0
      %344 = vmatpush1.bf16.msra.mxu0 %v328
      %345 = vmatprep.subr.bf16.mxu0 0
      %346 = vmatpush1.bf16.msra.mxu0 %v327
      %347 = vmatprep.subr.bf16.mxu0 0
      %348 = vmatpush1.bf16.msra.mxu0 %v326
      %349 = vmatprep.subr.bf16.mxu0 0
      %350 = vmatpush1.bf16.msra.mxu0 %v325
      %351 = vmatprep.subr.bf16.mxu0 0
      %352 = vmatpush1.bf16.msra.mxu0 %v324
      %353 = vmatprep.subr.bf16.mxu0 0
      %354 = vmatpush1.bf16.msra.mxu0 %v323
      %355 = vmatprep.subr.bf16.mxu0 0
      %356 = vmatpush2.bf16.msra.mxu0 0
      %357 = vmatprep.subr.bf16.mxu0 0
      %358 = vmatpush2.bf16.msra.mxu0 0
      %359 = vmatprep.subr.bf16.mxu0 0
      %360 = vmatpush2.bf16.msra.mxu0 0
      %361 = vmatprep.subr.bf16.mxu0 0
      %362 = vmatpush2.bf16.msra.mxu0 0
      %363 = vmatprep.subr.bf16.mxu0 0
      %364 = vmatpush2.bf16.msra.mxu0 0
      %365 = vmatprep.subr.bf16.mxu0 0
      %366 = vmatpush2.bf16.msra.mxu0 0
      %367 = vmatprep.subr.bf16.mxu0 0
      %368 = vmatpush2.bf16.msra.mxu0 0
      %369 = vmatprep.subr.bf16.mxu0 0
      %370 = vmatpush2.bf16.msra.mxu0 0
      %371 = vmatprep.mubr.bf16.mxu0 0
      %372 = vmatmul.mubr.bf16.gmra.mxu0 %v283
      %v373 = vpop.f32.mrf.mxu0
      %v374 = vadd.f32 %v230, %v373
      %v375 = vpop.f32.mrf.mxu0
      %v376 = vpop.f32.mrf.mxu0
      %v377 = vadd.f32 %v235, %v376
      %v378 = vpop.f32.mrf.mxu0
      %379 = vmatprep.mubr.bf16.mxu0 0
      %380 = vmatmul.mubr.bf16.gmra.mxu0 %v284
      %v381 = vpop.f32.mrf.mxu0
      %v382 = vadd.f32 %v240, %v381
      %v383 = vpop.f32.mrf.mxu0
      %v384 = vpop.f32.mrf.mxu0
      %v385 = vadd.f32 %v245, %v384
      %v386 = vpop.f32.mrf.mxu0
      %387 = vmatprep.mubr.bf16.mxu0 0
      %388 = vmatmul.mubr.bf16.gmra.mxu0 %v285
      %v389 = vpop.f32.mrf.mxu0
      %v390 = vadd.f32 %v250, %v389
      %v391 = vpop.f32.mrf.mxu0
      %v392 = vpop.f32.mrf.mxu0
      %v393 = vadd.f32 %v255, %v392
      %v394 = vpop.f32.mrf.mxu0
      %395 = vmatprep.mubr.bf16.mxu0 0
      %396 = vmatmul.mubr.bf16.gmra.mxu0 %v286
      %v397 = vpop.f32.mrf.mxu0
      %v398 = vadd.f32 %v260, %v397
      %v399 = vpop.f32.mrf.mxu0
      %v400 = vpop.f32.mrf.mxu0
      %v401 = vadd.f32 %v265, %v400
      %v402 = vpop.f32.mrf.mxu0
      %403 = vdwg.mxu0
      %vm404 = vcmask 130048
      %v405 = vsel %vm404, %v374, 0.0
      %406 = vadd.xlane.f32.xlu0 %v405
      %v407 = vpop.xlane.xlu0 %406
      %v408 = vsel %vm404, %v377, 0.0
      %409 = vadd.xlane.f32.xlu0 %v408
      %v410 = vpop.xlane.xlu0 %409
      %v411 = vsel %vm404, %v382, 0.0
      %412 = vadd.xlane.f32.xlu0 %v411
      %v413 = vpop.xlane.xlu0 %412
      %v414 = vsel %vm404, %v385, 0.0
      %415 = vadd.xlane.f32.xlu0 %v414
      %v416 = vpop.xlane.xlu0 %415
      %v417 = vsel %vm404, %v390, 0.0
      %418 = vadd.xlane.f32.xlu0 %v417
      %v419 = vpop.xlane.xlu0 %418
      %v420 = vsel %vm404, %v393, 0.0
      %421 = vadd.xlane.f32.xlu0 %v420
      %v422 = vpop.xlane.xlu0 %421
      %v423 = vsel %vm404, %v398, 0.0
      %424 = vadd.xlane.f32.xlu0 %v423
      %v425 = vpop.xlane.xlu0 %424
      %v426 = vsel %vm404, %v401, 0.0
      %427 = vadd.xlane.f32.xlu0 %v426
      %v428 = vpop.xlane.xlu0 %427
      %v429 = vadd.f32 %v407, %v413
      %v430 = vadd.f32 %v410, %v416
      %v431 = vadd.f32 %v429, %v419
      %v432 = vadd.f32 %v430, %v422
      %v433 = vadd.f32 %v431, %v425
      %v434 = vadd.f32 %v432, %v428
      %v435 = vrcp.pop 64.0
      %v436 = vmul.f32 %v433, %v435
      %v437 = vmul.f32 %v434, %v435
      %439 = vset.pattern.permute.xlu0 0
      %440 = vperm.xlu0 %439, %v436
      %v441 = vpop.permute.xlu0 %440
      %444 = vset.pattern.permute.xlu0 0
      %445 = vperm.xlu0 %444, %v437
      %v446 = vpop.permute.xlu0 %445
      %v448 = vsub.f32 %v374, %v441
      %v449 = vsub.f32 %v377, %v446
      %v450 = vsub.f32 %v382, %v441
      %v451 = vsub.f32 %v385, %v446
      %v452 = vsub.f32 %v390, %v441
      %v453 = vsub.f32 %v393, %v446
      %v454 = vsub.f32 %v398, %v441
      %v455 = vsub.f32 %v401, %v446
      %v456 = vmul.f32 %v448, %v448
      %v457 = vmul.f32 %v449, %v449
      %v458 = vmul.f32 %v450, %v450
      %v459 = vmul.f32 %v451, %v451
      %v460 = vmul.f32 %v452, %v452
      %v461 = vmul.f32 %v453, %v453
      %v462 = vmul.f32 %v454, %v454
      %v463 = vmul.f32 %v455, %v455
      %v464 = vsel %vm404, %v456, 0.0
      %465 = vadd.xlane.f32.xlu0 %v464
      %v466 = vpop.xlane.xlu0 %465
      %v467 = vsel %vm404, %v457, 0.0
      %468 = vadd.xlane.f32.xlu0 %v467
      %v469 = vpop.xlane.xlu0 %468
      %v470 = vsel %vm404, %v458, 0.0
      %471 = vadd.xlane.f32.xlu0 %v470
      %v472 = vpop.xlane.xlu0 %471
      %v473 = vsel %vm404, %v459, 0.0
      %474 = vadd.xlane.f32.xlu0 %v473
      %v475 = vpop.xlane.xlu0 %474
      %v476 = vsel %vm404, %v460, 0.0
      %477 = vadd.xlane.f32.xlu0 %v476
      %v478 = vpop.xlane.xlu0 %477
      %v479 = vsel %vm404, %v461, 0.0
      %480 = vadd.xlane.f32.xlu0 %v479
      %v481 = vpop.xlane.xlu0 %480
      %v482 = vsel %vm404, %v462, 0.0
      %483 = vadd.xlane.f32.xlu0 %v482
      %v484 = vpop.xlane.xlu0 %483
      %v485 = vsel %vm404, %v463, 0.0
      %486 = vadd.xlane.f32.xlu0 %v485
      %v487 = vpop.xlane.xlu0 %486
      %v488 = vadd.f32 %v466, %v472
      %v489 = vadd.f32 %v469, %v475
      %v490 = vadd.f32 %v488, %v478
      %v491 = vadd.f32 %v489, %v481
      %v492 = vadd.f32 %v490, %v484
      %v493 = vadd.f32 %v491, %v487
      %v494 = vmul.f32 %v492, %v435
      %v495 = vmul.f32 %v493, %v435
      %v496 = vadd.f32 %v494, 1e-05
      %v497 = vadd.f32 %v495, 1e-05
      %v498 = vrsqrt.pop %v496
      %v499 = vrsqrt.pop %v497
      %501 = vset.pattern.permute.xlu0 0
      %502 = vperm.xlu0 %501, %v498
      %v503 = vpop.permute.xlu0 %502
      %506 = vset.pattern.permute.xlu0 0
      %507 = vperm.xlu0 %506, %v499
      %v508 = vpop.permute.xlu0 %507
      %v510 = vmul.f32 %v448, %v503
      %v511 = vmul.f32 %v449, %v508
      %v512 = vmul.f32 %v450, %v503
      %v513 = vmul.f32 %v451, %v508
      %v514 = vmul.f32 %v452, %v503
      %v515 = vmul.f32 %v453, %v508
      %v516 = vmul.f32 %v454, %v503
      %v517 = vmul.f32 %v455, %v508
      %vm518 = vcmp.gt.f32.partialorder %v510, 0.0
      %vm519 = vcmp.gt.f32.partialorder %v511, 0.0
      %vm520 = vcmp.gt.f32.partialorder %v512, 0.0
      %vm521 = vcmp.gt.f32.partialorder %v513, 0.0
      %vm522 = vcmp.gt.f32.partialorder %v514, 0.0
      %vm523 = vcmp.gt.f32.partialorder %v515, 0.0
      %vm524 = vcmp.gt.f32.partialorder %v516, 0.0
      %vm525 = vcmp.gt.f32.partialorder %v517, 0.0
      %v526 = vmul.f32 %v510, 1.442695
      %v527 = vpow.pop %v526
      %v528 = vmul.f32 %v511, 1.442695
      %v529 = vpow.pop %v528
      %v530 = vmul.f32 %v512, 1.442695
      %v531 = vpow.pop %v530
      %v532 = vmul.f32 %v513, 1.442695
      %v533 = vpow.pop %v532
      %v534 = vmul.f32 %v514, 1.442695
      %v535 = vpow.pop %v534
      %v536 = vmul.f32 %v515, 1.442695
      %v537 = vpow.pop %v536
      %v538 = vmul.f32 %v516, 1.442695
      %v539 = vpow.pop %v538
      %v540 = vmul.f32 %v517, 1.442695
      %v541 = vpow.pop %v540
      %v542 = vsub.f32 %v527, 1.0
      %v543 = vsub.f32 %v529, 1.0
      %v544 = vsub.f32 %v531, 1.0
      %v545 = vsub.f32 %v533, 1.0
      %v546 = vsub.f32 %v535, 1.0
      %v547 = vsub.f32 %v537, 1.0
      %v548 = vsub.f32 %v539, 1.0
      %v549 = vsub.f32 %v541, 1.0
      %v550 = vmul.f32 %v542, 1.6732632
      %v551 = vmul.f32 %v543, 1.6732632
      %v552 = vmul.f32 %v544, 1.6732632
      %v553 = vmul.f32 %v545, 1.6732632
      %v554 = vmul.f32 %v546, 1.6732632
      %v555 = vmul.f32 %v547, 1.6732632
      %v556 = vmul.f32 %v548, 1.6732632
      %v557 = vmul.f32 %v549, 1.6732632
      %v558 = vsel %vm518, %v510, %v550
      %v559 = vsel %vm519, %v511, %v551
      %v560 = vsel %vm520, %v512, %v552
      %v561 = vsel %vm521, %v513, %v553
      %v562 = vsel %vm522, %v514, %v554
      %v563 = vsel %vm523, %v515, %v555
      %v564 = vsel %vm524, %v516, %v556
      %v565 = vsel %vm525, %v517, %v557
      %v566 = vmul.f32 %v558, 1.050701
      %v567 = vmul.f32 %v559, 1.050701
      %v568 = vmul.f32 %v560, 1.050701
      %v569 = vmul.f32 %v561, 1.050701
      %v570 = vmul.f32 %v562, 1.050701
      %v571 = vmul.f32 %v563, 1.050701
      %v572 = vmul.f32 %v564, 1.050701
      %v573 = vmul.f32 %v565, 1.050701
      %574 = vst.msk [vmem:[%s193] sm:$0xff] %vm404, %v566
      %575 = vst.msk [vmem:[%s193 + $0x8] sm:$0xff] %vm404, %v567
      %576 = vst.msk [vmem:[%s193 + $0x10] sm:$0xff] %vm404, %v568
      %577 = vst.msk [vmem:[%s193 + $0x18] sm:$0xff] %vm404, %v569
      %578 = vst.msk [vmem:[%s193 + $0x20] sm:$0xff] %vm404, %v570
      %579 = vst.msk [vmem:[%s193 + $0x28] sm:$0xff] %vm404, %v571
      %580 = vst.msk [vmem:[%s193 + $0x30] sm:$0xff] %vm404, %v572
      %581 = vst.msk [vmem:[%s193 + $0x38] sm:$0xff] %vm404, %v573
      %p582 = scmp.lt.s32.totalorder %s18, 1
      %s583 = scalar_select %p582, %s18, 1
      %s584 = smul.addr %s583, 8
      %s585 = smul.addr %s584, 8
      %s586 = scalar_lea.vmem %s3, %s585
      // Predicated region
      $region33: #{resnet_generator.33} parent=31 // pred_check
        %p587 = pneg %p114
      $region34: #{resnet_generator.33} parent=31 // pred_check_branch
        %589 = sbr.rel (%p587) target = $region36
      $region35: #{resnet_generator.33} parent=31 // pred_region
        _
      $region36: #{resnet_generator.33} parent=31 // pred_fallthru
        _
    $region32: #{resnet_generator.33} parent=5 // pred_fallthru
      _
    %p590 = scmp.le.s32.totalorder 2, %s9
    // Predicated region
    $region37: #{resnet_generator.33} parent=5 // pred_check
      %p591 = pneg %p590
    $region38: #{resnet_generator.33} parent=5 // pred_check_branch
      %593 = sbr.rel (%p591) target = $region40
    $region39: #{resnet_generator.33} parent=5 // pred_region
      %s594 = ssub.s32 %s9, 2
      // Predicated region
      $region41: #{resnet_generator.33} parent=39 // pred_check
        %p595 = pneg %p120
      $region42: #{resnet_generator.33} parent=39 // pred_check_branch
        %597 = sbr.rel (%p595) target = $region44
      $region43: #{resnet_generator.33} parent=39 // pred_region
        %p598 = scmp.lt.s32.totalorder %s20, 1
        %s599 = scalar_select %p598, %s20, 1
        %s600 = smul.addr %s599, 8
        %s601 = smul.addr %s600, 8
        %s602 = scalar_lea.vmem %s3, %s601
      $region44: #{resnet_generator.33} parent=39 // pred_fallthru
        _
    $region40: #{resnet_generator.33} parent=5 // pred_fallthru
      _
  $region6: #{resnet_generator.33} parent=0 // loop_footer
    %s13 = sadd.s32 1, %s9
  $region7: #{resnet_generator.33} parent=0 // loop_footer_branch
    %8 = sbr.rel target = $region3
  $region8: #{resnet_generator.33} parent=0 // loop_exit
    _

// kernel: resnet_generator.34
$region0: #{resnet_generator.34}
  #allocation0 [shape = 'u32[]', space=smem, size = 0x4, offset = 0x4, fixed_abs, tag = 'smem constant byte address 0x4 - core index']
  #allocation1 [shape = 'u32[144,128]{1,0:T(1,128)}', space=vmem, size = 0x12000, scoped, tag = 'internal scratch']
  %s0 = inlined_call_operand.vmem [shape: bf16[32,64], index: 0, kind: input, shape index: {}]
  %s1 = inlined_call_operand.vmem [shape: f32[32,1], index: 1, kind: input, shape index: {}]
  %s2 = inlined_call_operand.vmem [shape: bf16[2,64,64], index: 2, kind: input, shape index: {}]
  %s3 = inlined_call_operand.vmem [shape: f32[2,32,64], index: 3, kind: output, shape index: {}]
  %s4 = sld [smem:[#allocation0]]
  $region45: #{resnet_generator.34} parent=0
    _
  %s6 = ssub.s32 1, %s4
  %s7 = scalar_select 0, %s6, %s4
  loop: start=0, step=1, limit=4
  $region2: #{resnet_generator.34} parent=0 // loop_pre_header
    _
  $region3: #{resnet_generator.34} parent=0 // loop_header
    %s9 = sphi 0, %s13
    %p10 = scmp.ge.s32.totalorder %s9, 4
    %s16 = sphi 0, %s28
    %s17 = sphi 0, %s24
    %s18 = sphi 0, %s16
    %s19 = sphi 0, %s17
    %s20 = sphi 0, %s18
    %s21 = sphi 0, %s19
    %s29 = sphi 0, %s29
    %s31 = sphi 0, %s29
    %s32 = sphi 0, %s31
    %s46 = sphi 0, %s32
    %s50 = sphi 0, %s50
    %s52 = sphi 0, %s50
    %s53 = sphi 0, %s52
    %s67 = sphi 0, %s53
    %s75 = sphi 0, %s77
    %s78 = sphi 0, %s75
    %s79 = sphi 0, %s78
    %s95 = sphi 0, %s79
    %s101 = sphi 0, %s103
    %s104 = sphi 0, %s101
    %s105 = sphi 0, %s104
    %s121 = sphi 0, %s105
  $region4: #{resnet_generator.34} parent=0 // loop_header_branch
    %12 = sbr.rel (%p10) target = $region8
  $region5: #{resnet_generator.34} parent=0 // loop_body
    %s14 = ssub.s32 %s9, 1
    %s15 = ssub.s32 %s9, 2
    %s22 = sadd.s32 1, %s17
    %p23 = scmp.ge.s32.totalorder %s22, 1
    %s24 = scalar_select %p23, 0, %s22
    %s25 = sadd.s32 1, %s16
    %s26 = scalar_select %p23, %s25, %s16
    %p27 = scmp.ge.s32.totalorder %s26, 2
    %s28 = scalar_select %p27, 0, %s26
    %s30 = sadd.s32 %s29, 1
    %p33 = scmp.eq.s32.totalorder %s9, 1
    %p34 = scmp.ne.s32.totalorder %s29, %s31
    %p35 = scmp.eq.s32.totalorder %s9, 0
    %p36 = por %p34, %p35
    %p37 = scmp.ne.s32.totalorder %s29, %s31
    %p38 = scmp.eq.s32.totalorder %s14, 1
    %p39 = por %p37, %p38
    %p40 = scmp.ne.s32.totalorder %s31, %s32
    %p41 = scmp.eq.s32.totalorder %s14, 0
    %p42 = por %p40, %p41
    %p43 = scmp.ne.s32.totalorder %s31, %s32
    %p44 = scmp.eq.s32.totalorder %s15, 1
    %p45 = por %p43, %p44
    %p47 = scmp.ne.s32.totalorder %s32, %s46
    %p48 = scmp.eq.s32.totalorder %s15, 0
    %p49 = por %p47, %p48
    %s51 = sadd.s32 %s50, 1
    %p54 = scmp.eq.s32.totalorder %s9, 1
    %p55 = scmp.ne.s32.totalorder %s50, %s52
    %p56 = scmp.eq.s32.totalorder %s9, 0
    %p57 = por %p55, %p56
    %p58 = scmp.ne.s32.totalorder %s50, %s52
    %p59 = scmp.eq.s32.totalorder %s14, 1
    %p60 = por %p58, %p59
    %p61 = scmp.ne.s32.totalorder %s52, %s53
    %p62 = scmp.eq.s32.totalorder %s14, 0
    %p63 = por %p61, %p62
    %p64 = scmp.ne.s32.totalorder %s52, %s53
    %p65 = scmp.eq.s32.totalorder %s15, 1
    %p66 = por %p64, %p65
    %p68 = scmp.ne.s32.totalorder %s53, %s67
    %p69 = scmp.eq.s32.totalorder %s15, 0
    %p70 = por %p68, %p69
    %s71 = ssub.s32 %s16, %s28
    %s72 = ssub.s32 %s17, %s24
    %s73 = sor.u32 %s71, %s72
    %p74 = scmp.eq.s32.totalorder %s73, 0
    %s76 = sadd.s32 %s75, 1
    %s77 = scalar_select %p74, %s75, %s76
    %p80 = pneg %p74
    %p81 = scmp.eq.s32.totalorder %s9, 1
    %p82 = por %p80, %p81
    %p83 = scmp.ne.s32.totalorder %s75, %s78
    %p84 = scmp.eq.s32.totalorder %s9, 0
    %p85 = por %p83, %p84
    %p86 = scmp.ne.s32.totalorder %s75, %s78
    %p87 = scmp.eq.s32.totalorder %s14, 1
    %p88 = por %p86, %p87
    %p89 = scmp.ne.s32.totalorder %s78, %s79
    %p90 = scmp.eq.s32.totalorder %s14, 0
    %p91 = por %p89, %p90
    %p92 = scmp.ne.s32.totalorder %s78, %s79
    %p93 = scmp.eq.s32.totalorder %s15, 1
    %p94 = por %p92, %p93
    %p96 = scmp.ne.s32.totalorder %s79, %s95
    %p97 = scmp.eq.s32.totalorder %s15, 0
    %p98 = por %p96, %p97
    %s99 = ssub.s32 %s16, %s28
    %p100 = scmp.eq.s32.totalorder %s99, 0
    %s102 = sadd.s32 %s101, 1
    %s103 = scalar_select %p100, %s101, %s102
    %p106 = pneg %p100
    %p107 = scmp.eq.s32.totalorder %s9, 1
    %p108 = por %p106, %p107
    %p109 = scmp.ne.s32.totalorder %s101, %s104
    %p110 = scmp.eq.s32.totalorder %s9, 0
    %p111 = por %p109, %p110
    %p112 = scmp.ne.s32.totalorder %s101, %s104
    %p113 = scmp.eq.s32.totalorder %s14, 1
    %p114 = por %p112, %p113
    %p115 = scmp.ne.s32.totalorder %s104, %s105
    %p116 = scmp.eq.s32.totalorder %s14, 0
    %p117 = por %p115, %p116
    %p118 = scmp.ne.s32.totalorder %s104, %s105
    %p119 = scmp.eq.s32.totalorder %s15, 1
    %p120 = por %p118, %p119
    %p122 = scmp.ne.s32.totalorder %s105, %s121
    %p123 = scmp.eq.s32.totalorder %s15, 0
    %p124 = por %p122, %p123
    %p125 = scmp.le.s32.totalorder 1, %s9
    %p126 = scmp.lt.s32.totalorder %s9, 3
    %p127 = pnand %p125, %p126
    %p128 = pneg %p127
    // Predicated region
    $region9: #{resnet_generator.34} parent=5 // pred_check
      _
    $region10: #{resnet_generator.34} parent=5 // pred_check_branch
      %130 = sbr.rel (%p127) target = $region12
    $region11: #{resnet_generator.34} parent=5 // pred_region
      %s131 = ssub.s32 %s9, 1
      // Predicated region
      $region13: #{resnet_generator.34} parent=11 // pred_check
        %p132 = pneg %p42
      $region14: #{resnet_generator.34} parent=11 // pred_check_branch
        %134 = sbr.rel (%p132) target = $region16
      $region15: #{resnet_generator.34} parent=11 // pred_region
        _
      $region16: #{resnet_generator.34} parent=11 // pred_fallthru
        _
      // Predicated region
      $region17: #{resnet_generator.34} parent=11 // pred_check
        %p135 = pneg %p63
      $region18: #{resnet_generator.34} parent=11 // pred_check_branch
        %137 = sbr.rel (%p135) target = $region20
      $region19: #{resnet_generator.34} parent=11 // pred_region
        _
      $region20: #{resnet_generator.34} parent=11 // pred_fallthru
        _
    $region12: #{resnet_generator.34} parent=5 // pred_fallthru
      _
    %p138 = scmp.lt.s32.totalorder %s9, 2
    // Predicated region
    $region21: #{resnet_generator.34} parent=5 // pred_check
      %p139 = pneg %p138
    $region22: #{resnet_generator.34} parent=5 // pred_check_branch
      %141 = sbr.rel (%p139) target = $region24
    $region23: #{resnet_generator.34} parent=5 // pred_region
      // Predicated region
      $region25: #{resnet_generator.34} parent=23 // pred_check
        %p142 = pneg %p85
      $region26: #{resnet_generator.34} parent=23 // pred_check_branch
        %144 = sbr.rel (%p142) target = $region28
      $region27: #{resnet_generator.34} parent=23 // pred_region
        %p145 = scmp.lt.s32.totalorder %s16, 1
        %s146 = scalar_select %p145, %s16, 1
        %p147 = scmp.lt.s32.totalorder %s17, 0
        %s148 = scalar_select %p147, %s17, 0
        %s149 = smul.addr %s146, 8
        %s150 = sadd.s32 %s148, %s149
        %s151 = smul.addr %s150, 4
        %s152 = scalar_lea.vmem %s2, %s151
      $region28: #{resnet_generator.34} parent=23 // pred_fallthru
        _
    $region24: #{resnet_generator.34} parent=5 // pred_fallthru
      _
    %p153 = scmp.le.s32.totalorder 1, %s9
    %p154 = scmp.lt.s32.totalorder %s9, 3
    %p155 = pnand %p153, %p154
    %p156 = pneg %p155
    // Predicated region
    $region29: #{resnet_generator.34} parent=5 // pred_check
      _
    $region30: #{resnet_generator.34} parent=5 // pred_check_branch
      %158 = sbr.rel (%p155) target = $region32
    $region31: #{resnet_generator.34} parent=5 // pred_region
      %s159 = ssub.s32 %s9, 1
      %p160 = pneg %p42
      %p161 = pneg %p39
      %p162 = pneg %p63
      %p163 = pneg %p60
      %p164 = scmp.lt.s32.totalorder %s18, 1
      %s165 = scalar_select %p164, %s18, 1
      %p166 = scmp.lt.s32.totalorder %s19, 0
      %s167 = scalar_select %p166, %s19, 0
      %s168 = smul.addr %s165, 8
      %s169 = sadd.s32 %s167, %s168
      %s170 = smul.addr %s169, 4
      %s171 = scalar_lea.vmem %s2, %s170
      %p172 = pneg %p91
      %p173 = pneg %p88
      %p174 = pneg %p117
      %p175 = pneg %p114
      %p176 = scmp.lt.s32.totalorder %s18, 1
      %s177 = scalar_select %p176, %s18, 1
      %s178 = smul.addr %s177, 4
      %s179 = smul.addr %s178, 8
      %s180 = scalar_lea.vmem %s3, %s179
      %p181 = scmp.lt.s32.totalorder %s18, 1
      %s182 = scalar_select %p181, %s18, 1
      %p183 = scmp.lt.s32.totalorder %s19, 0
      %s184 = scalar_select %p183, %s19, 0
      %s185 = smul.addr %s182, 8
      %s186 = sadd.s32 %s184, %s185
      %s187 = smul.addr %s186, 4
      %s188 = scalar_lea.vmem %s2, %s187
      %p189 = scmp.lt.s32.totalorder %s18, 1
      %s190 = scalar_select %p189, %s18, 1
      %s191 = smul.addr %s190, 4
      %s192 = smul.addr %s191, 8
      %s193 = scalar_lea.vmem %s3, %s192
      %v195 = vld [vmem:[%s0] sm:$0xf]
      %v196 = vld [vmem:[%s0 + $0x4] sm:$0xf]
      %v197 = vld [vmem:[%s0 + $0x8] sm:$0xf]
      %v198 = vld [vmem:[%s0 + $0xc] sm:$0xf]
      %v199 = vld [vmem:[%s188] sm:$0xf]
      %v200 = vld [vmem:[%s188 + $0x4] sm:$0xf]
      %v201 = vld [vmem:[%s188 + $0x8] sm:$0xf]
      %v202 = vld [vmem:[%s188 + $0xc] sm:$0xf]
      %v203 = vld [vmem:[%s188 + $0x10] sm:$0xf]
      %v204 = vld [vmem:[%s188 + $0x14] sm:$0xf]
      %v205 = vld [vmem:[%s188 + $0x18] sm:$0xf]
      %v206 = vld [vmem:[%s188 + $0x1c] sm:$0xf]
      %v207 = vld [vmem:[%s1] sm:$0xff]
      %v208 = vld [vmem:[%s1 + $0x8] sm:$0xff]
      %v209 = vld [vmem:[%s1 + $0x10] sm:$0xff]
      %v210 = vld [vmem:[%s1 + $0x18] sm:$0xff]
      %212 = vset.pattern.permute.xlu0 0
      %213 = vperm.xlu0 %212, %v207
      %v214 = vpop.permute.xlu0 %213
      %217 = vset.pattern.permute.xlu0 0
      %218 = vperm.xlu0 %217, %v208
      %v219 = vpop.permute.xlu0 %218
      %222 = vset.pattern.permute.xlu0 0
      %223 = vperm.xlu0 %222, %v209
      %v224 = vpop.permute.xlu0 %223
      %227 = vset.pattern.permute.xlu0 0
      %228 = vperm.xlu0 %227, %v210
      %v229 = vpop.permute.xlu0 %228
      %v235 = vunpack.c.l.b16 %v195
      %v236 = vunpack.c.l.b16 %v196
      %v237 = vunpack.c.l.b16 %v197
      %v238 = vunpack.c.l.b16 %v198
      %v239 = vpack.c.b16 %v236, %v235
      %v240 = vpack.c.b16 %v238, %v237
      %v249 = vunpack.c.l.b16 %v199
      %v250 = vunpack.c.l.b16 %v200
      %v251 = vunpack.c.l.b16 %v201
      %v252 = vunpack.c.l.b16 %v202
      %v253 = vunpack.c.l.b16 %v203
      %v254 = vunpack.c.l.b16 %v204
      %v255 = vunpack.c.l.b16 %v205
      %v256 = vunpack.c.l.b16 %v206
      %v257 = vpack.c.b16 %v250, %v249
      %v258 = vpack.c.b16 %v252, %v251
      %v259 = vpack.c.b16 %v254, %v253
      %v260 = vpack.c.b16 %v256, %v255
      %vm265 = vcmask 523264
      %v267 = vsel %vm265, %v239, 0
      %v270 = vsel %vm265, %v240, 0
      %272 = vmatprep.subr.bf16.mxu0 0
      %273 = vmatpush1.bf16.msra.mxu0 0
      %274 = vmatprep.subr.bf16.mxu0 0
      %275 = vmatpush1.bf16.msra.mxu0 0
      %276 = vmatprep.subr.bf16.mxu0 0
      %277 = vmatpush1.bf16.msra.mxu0 0
      %278 = vmatprep.subr.bf16.mxu0 0
      %279 = vmatpush1.bf16.msra.mxu0 0
      %280 = vmatprep.subr.bf16.mxu0 0
      %281 = vmatpush1.bf16.msra.mxu0 %v260
      %282 = vmatprep.subr.bf16.mxu0 0
      %283 = vmatpush1.bf16.msra.mxu0 %v259
      %284 = vmatprep.subr.bf16.mxu0 0
      %285 = vmatpush1.bf16.msra.mxu0 %v258
      %286 = vmatprep.subr.bf16.mxu0 0
      %287 = vmatpush1.bf16.msra.mxu0 %v257
      %288 = vmatprep.subr.bf16.mxu0 0
      %289 = vmatpush2.bf16.msra.mxu0 0
      %290 = vmatprep.subr.bf16.mxu0 0
      %291 = vmatpush2.bf16.msra.mxu0 0
      %292 = vmatprep.subr.bf16.mxu0 0
      %293 = vmatpush2.bf16.msra.mxu0 0
      %294 = vmatprep.subr.bf16.mxu0 0
      %295 = vmatpush2.bf16.msra.mxu0 0
      %296 = vmatprep.subr.bf16.mxu0 0
      %297 = vmatpush2.bf16.msra.mxu0 0
      %298 = vmatprep.subr.bf16.mxu0 0
      %299 = vmatpush2.bf16.msra.mxu0 0
      %300 = vmatprep.subr.bf16.mxu0 0
      %301 = vmatpush2.bf16.msra.mxu0 0
      %302 = vmatprep.subr.bf16.mxu0 0
      %303 = vmatpush2.bf16.msra.mxu0 0
      %304 = vmatprep.mubr.bf16.mxu0 0
      %305 = vmatmul.mubr.bf16.gmra.mxu0 %v267
      %v306 = vpop.f32.mrf.mxu0
      %v307 = vadd.f32 %v214, %v306
      %v308 = vpop.f32.mrf.mxu0
      %v309 = vpop.f32.mrf.mxu0
      %v310 = vadd.f32 %v219, %v309
      %v311 = vpop.f32.mrf.mxu0
      %312 = vmatprep.mubr.bf16.mxu0 0
      %313 = vmatmul.mubr.bf16.gmra.mxu0 %v270
      %v314 = vpop.f32.mrf.mxu0
      %v315 = vadd.f32 %v224, %v314
      %v316 = vpop.f32.mrf.mxu0
      %v317 = vpop.f32.mrf.mxu0
      %v318 = vadd.f32 %v229, %v317
      %v319 = vpop.f32.mrf.mxu0
      %320 = vdwg.mxu0
      %v321 = vsel %vm265, %v307, 0.0
      %322 = vadd.xlane.f32.xlu0 %v321
      %v323 = vpop.xlane.xlu0 %322
      %v324 = vsel %vm265, %v310, 0.0
      %325 = vadd.xlane.f32.xlu0 %v324
      %v326 = vpop.xlane.xlu0 %325
      %v327 = vsel %vm265, %v315, 0.0
      %328 = vadd.xlane.f32.xlu0 %v327
      %v329 = vpop.xlane.xlu0 %328
      %v330 = vsel %vm265, %v318, 0.0
      %331 = vadd.xlane.f32.xlu0 %v330
      %v332 = vpop.xlane.xlu0 %331
      %v333 = vadd.f32 %v323, %v326
      %v334 = vadd.f32 %v333, %v329
      %v335 = vadd.f32 %v334, %v332
      %v336 = vrcp.pop 256.0
      %v337 = vmul.f32 %v335, %v336
      %339 = vset.pattern.permute.xlu0 0
      %340 = vperm.xlu0 %339, %v337
      %v341 = vpop.permute.xlu0 %340
      %v343 = vsub.f32 %v307, %v341
      %v344 = vsub.f32 %v310, %v341
      %v345 = vsub.f32 %v315, %v341
      %v346 = vsub.f32 %v318, %v341
      %v347 = vmul.f32 %v343, %v343
      %v348 = vmul.f32 %v344, %v344
      %v349 = vmul.f32 %v345, %v345
      %v350 = vmul.f32 %v346, %v346
      %v351 = vsel %vm265, %v347, 0.0
      %352 = vadd.xlane.f32.xlu0 %v351
      %v353 = vpop.xlane.xlu0 %352
      %v354 = vsel %vm265, %v348, 0.0
      %355 = vadd.xlane.f32.xlu0 %v354
      %v356 = vpop.xlane.xlu0 %355
      %v357 = vsel %vm265, %v349, 0.0
      %358 = vadd.xlane.f32.xlu0 %v357
      %v359 = vpop.xlane.xlu0 %358
      %v360 = vsel %vm265, %v350, 0.0
      %361 = vadd.xlane.f32.xlu0 %v360
      %v362 = vpop.xlane.xlu0 %361
      %v363 = vadd.f32 %v353, %v356
      %v364 = vadd.f32 %v363, %v359
      %v365 = vadd.f32 %v364, %v362
      %v366 = vmul.f32 %v365, %v336
      %v367 = vadd.f32 %v366, 1e-05
      %v368 = vrsqrt.pop %v367
      %370 = vset.pattern.permute.xlu0 0
      %371 = vperm.xlu0 %370, %v368
      %v372 = vpop.permute.xlu0 %371
      %v374 = vmul.f32 %v343, %v372
      %v375 = vmul.f32 %v344, %v372
      %v376 = vmul.f32 %v345, %v372
      %v377 = vmul.f32 %v346, %v372
      %vm378 = vcmp.gt.f32.partialorder %v374, 0.0
      %vm379 = vcmp.gt.f32.partialorder %v375, 0.0
      %vm380 = vcmp.gt.f32.partialorder %v376, 0.0
      %vm381 = vcmp.gt.f32.partialorder %v377, 0.0
      %v382 = vmul.f32 %v374, 1.442695
      %v383 = vpow.pop %v382
      %v384 = vmul.f32 %v375, 1.442695
      %v385 = vpow.pop %v384
      %v386 = vmul.f32 %v376, 1.442695
      %v387 = vpow.pop %v386
      %v388 = vmul.f32 %v377, 1.442695
      %v389 = vpow.pop %v388
      %v390 = vsub.f32 %v383, 1.0
      %v391 = vsub.f32 %v385, 1.0
      %v392 = vsub.f32 %v387, 1.0
      %v393 = vsub.f32 %v389, 1.0
      %v394 = vmul.f32 %v390, 1.6732632
      %v395 = vmul.f32 %v391, 1.6732632
      %v396 = vmul.f32 %v392, 1.6732632
      %v397 = vmul.f32 %v393, 1.6732632
      %v398 = vsel %vm378, %v374, %v394
      %v399 = vsel %vm379, %v375, %v395
      %v400 = vsel %vm380, %v376, %v396
      %v401 = vsel %vm381, %v377, %v397
      %v402 = vmul.f32 %v398, 1.050701
      %v403 = vmul.f32 %v399, 1.050701
      %v404 = vmul.f32 %v400, 1.050701
      %v405 = vmul.f32 %v401, 1.050701
      %406 = vst.msk [vmem:[%s193] sm:$0xff] %vm265, %v402
      %407 = vst.msk [vmem:[%s193 + $0x8] sm:$0xff] %vm265, %v403
      %408 = vst.msk [vmem:[%s193 + $0x10] sm:$0xff] %vm265, %v404
      %409 = vst.msk [vmem:[%s193 + $0x18] sm:$0xff] %vm265, %v405
      %p410 = scmp.lt.s32.totalorder %s18, 1
      %s411 = scalar_select %p410, %s18, 1
      %s412 = smul.addr %s411, 4
      %s413 = smul.addr %s412, 8
      %s414 = scalar_lea.vmem %s3, %s413
      // Predicated region
      $region33: #{resnet_generator.34} parent=31 // pred_check
        %p415 = pneg %p114
      $region34: #{resnet_generator.34} parent=31 // pred_check_branch
        %417 = sbr.rel (%p415) target = $region36
      $region35: #{resnet_generator.34} parent=31 // pred_region
        _
      $region36: #{resnet_generator.34} parent=31 // pred_fallthru
        _
    $region32: #{resnet_generator.34} parent=5 // pred_fallthru
      _
    %p418 = scmp.le.s32.totalorder 2, %s9
    // Predicated region
    $region37: #{resnet_generator.34} parent=5 // pred_check
      %p419 = pneg %p418
    $region38: #{resnet_generator.34} parent=5 // pred_check_branch
      %421 = sbr.rel (%p419) target = $region40
    $region39: #{resnet_generator.34} parent=5 // pred_region
      %s422 = ssub.s32 %s9, 2
      // Predicated region
      $region41: #{resnet_generator.34} parent=39 // pred_check
        %p423 = pneg %p120
      $region42: #{resnet_generator.34} parent=39 // pred_check_branch
        %425 = sbr.rel (%p423) target = $region44
      $region43: #{resnet_generator.34} parent=39 // pred_region
        %p426 = scmp.lt.s32.totalorder %s20, 1
        %s427 = scalar_select %p426, %s20, 1
        %s428 = smul.addr %s427, 4
        %s429 = smul.addr %s428, 8
        %s430 = scalar_lea.vmem %s3, %s429
      $region44: #{resnet_generator.34} parent=39 // pred_fallthru
        _
    $region40: #{resnet_generator.34} parent=5 // pred_fallthru
      _
  $region6: #{resnet_generator.34} parent=0 // loop_footer
    %s13 = sadd.s32 1, %s9
  $region7: #{resnet_generator.34} parent=0 // loop_footer_branch
    %8 = sbr.rel target = $region3
  $region8: #{resnet_generator.34} parent=0 // loop_exit
    _

// kernel: resnet_generator.35
$region0: #{resnet_generator.35}
  #allocation0 [shape = 'u32[]', space=smem, size = 0x4, offset = 0x4, fixed_abs, tag = 'smem constant byte address 0x4 - core index']
  #allocation1 [shape = 'u32[144,128]{1,0:T(1,128)}', space=vmem, size = 0x12000, scoped, tag = 'internal scratch']
  %s0 = inlined_call_operand.vmem [shape: bf16[3,512], index: 0, kind: input, shape index: {}]
  %s1 = inlined_call_operand.vmem [shape: f32[3,1], index: 1, kind: input, shape index: {}]
  %s2 = inlined_call_operand.vmem [shape: bf16[2,512,225], index: 2, kind: input, shape index: {}]
  %s3 = inlined_call_operand.vmem [shape: f32[2,3,225], index: 3, kind: output, shape index: {}]
  %s4 = sld [smem:[#allocation0]]
  $region45: #{resnet_generator.35} parent=0
    _
  %s6 = ssub.s32 1, %s4
  %s7 = scalar_select 0, %s6, %s4
  loop: start=0, step=1, limit=4
  $region2: #{resnet_generator.35} parent=0 // loop_pre_header
    _
  $region3: #{resnet_generator.35} parent=0 // loop_header
    %s9 = sphi 0, %s13
    %p10 = scmp.ge.s32.totalorder %s9, 4
    %s16 = sphi 0, %s28
    %s17 = sphi 0, %s24
    %s18 = sphi 0, %s16
    %s19 = sphi 0, %s17
    %s20 = sphi 0, %s18
    %s21 = sphi 0, %s19
    %s29 = sphi 0, %s29
    %s31 = sphi 0, %s29
    %s32 = sphi 0, %s31
    %s46 = sphi 0, %s32
    %s50 = sphi 0, %s50
    %s52 = sphi 0, %s50
    %s53 = sphi 0, %s52
    %s67 = sphi 0, %s53
    %s75 = sphi 0, %s77
    %s78 = sphi 0, %s75
    %s79 = sphi 0, %s78
    %s95 = sphi 0, %s79
    %s101 = sphi 0, %s103
    %s104 = sphi 0, %s101
    %s105 = sphi 0, %s104
    %s121 = sphi 0, %s105
  $region4: #{resnet_generator.35} parent=0 // loop_header_branch
    %12 = sbr.rel (%p10) target = $region8
  $region5: #{resnet_generator.35} parent=0 // loop_body
    %s14 = ssub.s32 %s9, 1
    %s15 = ssub.s32 %s9, 2
    %s22 = sadd.s32 1, %s17
    %p23 = scmp.ge.s32.totalorder %s22, 1
    %s24 = scalar_select %p23, 0, %s22
    %s25 = sadd.s32 1, %s16
    %s26 = scalar_select %p23, %s25, %s16
    %p27 = scmp.ge.s32.totalorder %s26, 2
    %s28 = scalar_select %p27, 0, %s26
    %s30 = sadd.s32 %s29, 1
    %p33 = scmp.eq.s32.totalorder %s9, 1
    %p34 = scmp.ne.s32.totalorder %s29, %s31
    %p35 = scmp.eq.s32.totalorder %s9, 0
    %p36 = por %p34, %p35
    %p37 = scmp.ne.s32.totalorder %s29, %s31
    %p38 = scmp.eq.s32.totalorder %s14, 1
    %p39 = por %p37, %p38
    %p40 = scmp.ne.s32.totalorder %s31, %s32
    %p41 = scmp.eq.s32.totalorder %s14, 0
    %p42 = por %p40, %p41
    %p43 = scmp.ne.s32.totalorder %s31, %s32
    %p44 = scmp.eq.s32.totalorder %s15, 1
    %p45 = por %p43, %p44
    %p47 = scmp.ne.s32.totalorder %s32, %s46
    %p48 = scmp.eq.s32.totalorder %s15, 0
    %p49 = por %p47, %p48
    %s51 = sadd.s32 %s50, 1
    %p54 = scmp.eq.s32.totalorder %s9, 1
    %p55 = scmp.ne.s32.totalorder %s50, %s52
    %p56 = scmp.eq.s32.totalorder %s9, 0
    %p57 = por %p55, %p56
    %p58 = scmp.ne.s32.totalorder %s50, %s52
    %p59 = scmp.eq.s32.totalorder %s14, 1
    %p60 = por %p58, %p59
    %p61 = scmp.ne.s32.totalorder %s52, %s53
    %p62 = scmp.eq.s32.totalorder %s14, 0
    %p63 = por %p61, %p62
    %p64 = scmp.ne.s32.totalorder %s52, %s53
    %p65 = scmp.eq.s32.totalorder %s15, 1
    %p66 = por %p64, %p65
    %p68 = scmp.ne.s32.totalorder %s53, %s67
    %p69 = scmp.eq.s32.totalorder %s15, 0
    %p70 = por %p68, %p69
    %s71 = ssub.s32 %s16, %s28
    %s72 = ssub.s32 %s17, %s24
    %s73 = sor.u32 %s71, %s72
    %p74 = scmp.eq.s32.totalorder %s73, 0
    %s76 = sadd.s32 %s75, 1
    %s77 = scalar_select %p74, %s75, %s76
    %p80 = pneg %p74
    %p81 = scmp.eq.s32.totalorder %s9, 1
    %p82 = por %p80, %p81
    %p83 = scmp.ne.s32.totalorder %s75, %s78
    %p84 = scmp.eq.s32.totalorder %s9, 0
    %p85 = por %p83, %p84
    %p86 = scmp.ne.s32.totalorder %s75, %s78
    %p87 = scmp.eq.s32.totalorder %s14, 1
    %p88 = por %p86, %p87
    %p89 = scmp.ne.s32.totalorder %s78, %s79
    %p90 = scmp.eq.s32.totalorder %s14, 0
    %p91 = por %p89, %p90
    %p92 = scmp.ne.s32.totalorder %s78, %s79
    %p93 = scmp.eq.s32.totalorder %s15, 1
    %p94 = por %p92, %p93
    %p96 = scmp.ne.s32.totalorder %s79, %s95
    %p97 = scmp.eq.s32.totalorder %s15, 0
    %p98 = por %p96, %p97
    %s99 = ssub.s32 %s16, %s28
    %p100 = scmp.eq.s32.totalorder %s99, 0
    %s102 = sadd.s32 %s101, 1
    %s103 = scalar_select %p100, %s101, %s102
    %p106 = pneg %p100
    %p107 = scmp.eq.s32.totalorder %s9, 1
    %p108 = por %p106, %p107
    %p109 = scmp.ne.s32.totalorder %s101, %s104
    %p110 = scmp.eq.s32.totalorder %s9, 0
    %p111 = por %p109, %p110
    %p112 = scmp.ne.s32.totalorder %s101, %s104
    %p113 = scmp.eq.s32.totalorder %s14, 1
    %p114 = por %p112, %p113
    %p115 = scmp.ne.s32.totalorder %s104, %s105
    %p116 = scmp.eq.s32.totalorder %s14, 0
    %p117 = por %p115, %p116
    %p118 = scmp.ne.s32.totalorder %s104, %s105
    %p119 = scmp.eq.s32.totalorder %s15, 1
    %p120 = por %p118, %p119
    %p122 = scmp.ne.s32.totalorder %s105, %s121
    %p123 = scmp.eq.s32.totalorder %s15, 0
    %p124 = por %p122, %p123
    %p125 = scmp.le.s32.totalorder 1, %s9
    %p126 = scmp.lt.s32.totalorder %s9, 3
    %p127 = pnand %p125, %p126
    %p128 = pneg %p127
    // Predicated region
    $region9: #{resnet_generator.35} parent=5 // pred_check
      _
    $region10: #{resnet_generator.35} parent=5 // pred_check_branch
      %130 = sbr.rel (%p127) target = $region12
    $region11: #{resnet_generator.35} parent=5 // pred_region
      %s131 = ssub.s32 %s9, 1
      // Predicated region
      $region13: #{resnet_generator.35} parent=11 // pred_check
        %p132 = pneg %p42
      $region14: #{resnet_generator.35} parent=11 // pred_check_branch
        %134 = sbr.rel (%p132) target = $region16
      $region15: #{resnet_generator.35} parent=11 // pred_region
        _
      $region16: #{resnet_generator.35} parent=11 // pred_fallthru
        _
      // Predicated region
      $region17: #{resnet_generator.35} parent=11 // pred_check
        %p135 = pneg %p63
      $region18: #{resnet_generator.35} parent=11 // pred_check_branch
        %137 = sbr.rel (%p135) target = $region20
      $region19: #{resnet_generator.35} parent=11 // pred_region
        _
      $region20: #{resnet_generator.35} parent=11 // pred_fallthru
        _
    $region12: #{resnet_generator.35} parent=5 // pred_fallthru
      _
    %p138 = scmp.lt.s32.totalorder %s9, 2
    // Predicated region
    $region21: #{resnet_generator.35} parent=5 // pred_check
      %p139 = pneg %p138
    $region22: #{resnet_generator.35} parent=5 // pred_check_branch
      %141 = sbr.rel (%p139) target = $region24
    $region23: #{resnet_generator.35} parent=5 // pred_region
      // Predicated region
      $region25: #{resnet_generator.35} parent=23 // pred_check
        %p142 = pneg %p85
      $region26: #{resnet_generator.35} parent=23 // pred_check_branch
        %144 = sbr.rel (%p142) target = $region28
      $region27: #{resnet_generator.35} parent=23 // pred_region
        %s145 = smul.u32 2, %s17
        %p146 = scmp.lt.s32.totalorder %s16, 1
        %s147 = scalar_select %p146, %s16, 1
        %p148 = scmp.lt.s32.totalorder %s145, 1
        %s149 = scalar_select %p148, %s145, 1
        %s150 = smul.addr %s147, 128
        %s151 = sadd.s32 %s149, %s150
        %s152 = smul.addr %s151, 4
        %s153 = scalar_lea.vmem %s2, %s152
        %s154 = smul.u32 2, %s17
      $region28: #{resnet_generator.35} parent=23 // pred_fallthru
        _
    $region24: #{resnet_generator.35} parent=5 // pred_fallthru
      _
    %p155 = scmp.le.s32.totalorder 1, %s9
    %p156 = scmp.lt.s32.totalorder %s9, 3
    %p157 = pnand %p155, %p156
    %p158 = pneg %p157
    // Predicated region
    $region29: #{resnet_generator.35} parent=5 // pred_check
      _
    $region30: #{resnet_generator.35} parent=5 // pred_check_branch
      %160 = sbr.rel (%p157) target = $region32
    $region31: #{resnet_generator.35} parent=5 // pred_region
      %s161 = ssub.s32 %s9, 1
      %p162 = pneg %p42
      %p163 = pneg %p39
      %p164 = pneg %p63
      %p165 = pneg %p60
      %s166 = smul.u32 2, %s19
      %p167 = scmp.lt.s32.totalorder %s18, 1
      %s168 = scalar_select %p167, %s18, 1
      %p169 = scmp.lt.s32.totalorder %s166, 1
      %s170 = scalar_select %p169, %s166, 1
      %s171 = smul.addr %s168, 128
      %s172 = sadd.s32 %s170, %s171
      %s173 = smul.addr %s172, 4
      %s174 = scalar_lea.vmem %s2, %s173
      %p175 = pneg %p91
      %p176 = pneg %p88
      %p177 = pneg %p117
      %p178 = pneg %p114
      %p179 = scmp.lt.s32.totalorder %s18, 1
      %s180 = scalar_select %p179, %s18, 1
      %s181 = smul.addr %s180, 2
      %s182 = smul.addr %s181, 4
      %s183 = scalar_lea.vmem %s3, %s182
      %s184 = smul.u32 2, %s19
      %p185 = scmp.lt.s32.totalorder %s18, 1
      %s186 = scalar_select %p185, %s18, 1
      %p187 = scmp.lt.s32.totalorder %s184, 1
      %s188 = scalar_select %p187, %s184, 1
      %s189 = smul.addr %s186, 128
      %s190 = sadd.s32 %s188, %s189
      %s191 = smul.addr %s190, 4
      %s192 = scalar_lea.vmem %s2, %s191
      %s193 = smul.u32 2, %s19
      %p194 = scmp.lt.s32.totalorder %s18, 1
      %s195 = scalar_select %p194, %s18, 1
      %s196 = smul.addr %s195, 2
      %s197 = smul.addr %s196, 4
      %s198 = scalar_lea.vmem %s3, %s197
      %v199 = vld [vmem:[%s0] sm:$0xff]
      %v200 = vld [vmem:[%s192] sm:$0xff]
      %v201 = vld [vmem:[%s192 + $0x8] sm:$0xff]
      %v202 = vld [vmem:[%s192 + $0x10] sm:$0xff]
      %v203 = vld [vmem:[%s192 + $0x18] sm:$0xff]
      %v204 = vld [vmem:[%s192 + $0x20] sm:$0xff]
      %v205 = vld [vmem:[%s192 + $0x28] sm:$0xff]
      %v206 = vld [vmem:[%s192 + $0x30] sm:$0xff]
      %v207 = vld [vmem:[%s192 + $0x38] sm:$0xff]
      %v208 = vld [vmem:[%s192 + $0x40] sm:$0xff]
      %v209 = vld [vmem:[%s192 + $0x48] sm:$0xff]
      %v210 = vld [vmem:[%s192 + $0x50] sm:$0xff]
      %v211 = vld [vmem:[%s192 + $0x58] sm:$0xff]
      %v212 = vld [vmem:[%s192 + $0x60] sm:$0xff]
      %v213 = vld [vmem:[%s192 + $0x68] sm:$0xff]
      %v214 = vld [vmem:[%s192 + $0x70] sm:$0xff]
      %v215 = vld [vmem:[%s192 + $0x78] sm:$0xff]
      %v216 = vld [vmem:[%s192 + $0x80] sm:$0xff]
      %v217 = vld [vmem:[%s192 + $0x88] sm:$0xff]
      %v218 = vld [vmem:[%s192 + $0x90] sm:$0xff]
      %v219 = vld [vmem:[%s192 + $0x98] sm:$0xff]
      %v220 = vld [vmem:[%s192 + $0xa0] sm:$0xff]
      %v221 = vld [vmem:[%s192 + $0xa8] sm:$0xff]
      %v222 = vld [vmem:[%s192 + $0xb0] sm:$0xff]
      %v223 = vld [vmem:[%s192 + $0xb8] sm:$0xff]
      %v224 = vld [vmem:[%s192 + $0xc0] sm:$0xff]
      %v225 = vld [vmem:[%s192 + $0xc8] sm:$0xff]
      %v226 = vld [vmem:[%s192 + $0xd0] sm:$0xff]
      %v227 = vld [vmem:[%s192 + $0xd8] sm:$0xff]
      %v228 = vld [vmem:[%s192 + $0xe0] sm:$0xff]
      %v229 = vld [vmem:[%s192 + $0xe8] sm:$0xff]
      %v230 = vld [vmem:[%s192 + $0xf0] sm:$0xff]
      %v231 = vld [vmem:[%s192 + $0xf8] sm:$0xff]
      %v232 = vld [vmem:[%s192 + $0x100] sm:$0xff]
      %v233 = vld [vmem:[%s192 + $0x108] sm:$0xff]
      %v234 = vld [vmem:[%s192 + $0x110] sm:$0xff]
      %v235 = vld [vmem:[%s192 + $0x118] sm:$0xff]
      %v236 = vld [vmem:[%s192 + $0x120] sm:$0xff]
      %v237 = vld [vmem:[%s192 + $0x128] sm:$0xff]
      %v238 = vld [vmem:[%s192 + $0x130] sm:$0xff]
      %v239 = vld [vmem:[%s192 + $0x138] sm:$0xff]
      %v240 = vld [vmem:[%s192 + $0x140] sm:$0xff]
      %v241 = vld [vmem:[%s192 + $0x148] sm:$0xff]
      %v242 = vld [vmem:[%s192 + $0x150] sm:$0xff]
      %v243 = vld [vmem:[%s192 + $0x158] sm:$0xff]
      %v244 = vld [vmem:[%s192 + $0x160] sm:$0xff]
      %v245 = vld [vmem:[%s192 + $0x168] sm:$0xff]
      %v246 = vld [vmem:[%s192 + $0x170] sm:$0xff]
      %v247 = vld [vmem:[%s192 + $0x178] sm:$0xff]
      %v248 = vld [vmem:[%s192 + $0x180] sm:$0xff]
      %v249 = vld [vmem:[%s192 + $0x188] sm:$0xff]
      %v250 = vld [vmem:[%s192 + $0x190] sm:$0xff]
      %v251 = vld [vmem:[%s192 + $0x198] sm:$0xff]
      %v252 = vld [vmem:[%s192 + $0x1a0] sm:$0xff]
      %v253 = vld [vmem:[%s192 + $0x1a8] sm:$0xff]
      %v254 = vld [vmem:[%s192 + $0x1b0] sm:$0xff]
      %v255 = vld [vmem:[%s192 + $0x1b8] sm:$0xff]
      %v256 = vld [vmem:[%s192 + $0x1c0] sm:$0xff]
      %v257 = vld [vmem:[%s192 + $0x1c8] sm:$0xff]
      %v258 = vld [vmem:[%s192 + $0x1d0] sm:$0xff]
      %v259 = vld [vmem:[%s192 + $0x1d8] sm:$0xff]
      %v260 = vld [vmem:[%s192 + $0x1e0] sm:$0xff]
      %v261 = vld [vmem:[%s192 + $0x1e8] sm:$0xff]
      %v262 = vld [vmem:[%s192 + $0x1f0] sm:$0xff]
      %v263 = vld [vmem:[%s192 + $0x1f8] sm:$0xff]
      %v264 = vld [vmem:[%s1] sm:$0x7]
      %266 = vset.pattern.permute.xlu0 0
      %267 = vperm.xlu0 %266, %v264
      %v268 = vpop.permute.xlu0 %267
      %v271 = vcombine.high %v199, %v199
      %v273 = vunpack.c.l.s4 1983009808
      %v274 = vunpack.c.0.s8 %v273
      %v275 = vlaneseq
      %v276 = vshrl.u32 %v275, 7
      %v277 = vsub.s32 %v274, %v276
      %v278 = vrot.slane %v199, %v277
      %v280 = vunpack.c.l.s4 1983009808
      %v281 = vunpack.c.0.s8 %v280
      %v282 = vlaneseq
      %v283 = vshrl.u32 %v282, 7
      %v284 = vsub.s32 %v281, %v283
      %v285 = vrot.slane %v271, %v284
      %v286 = vcombine.high %v278, %v278
      %v287 = vcombine.high %v285, %v285
      %v356 = vunpack.c.l.b16 %v200
      %v357 = vunpack.c.h.b16 %v200
      %v358 = vunpack.c.l.b16 %v201
      %v359 = vunpack.c.h.b16 %v201
      %v360 = vunpack.c.l.b16 %v202
      %v361 = vunpack.c.h.b16 %v202
      %v362 = vunpack.c.l.b16 %v203
      %v363 = vunpack.c.h.b16 %v203
      %v364 = vunpack.c.l.b16 %v204
      %v365 = vunpack.c.h.b16 %v204
      %v366 = vunpack.c.l.b16 %v205
      %v367 = vunpack.c.h.b16 %v205
      %v368 = vunpack.c.l.b16 %v206
      %v369 = vunpack.c.h.b16 %v206
      %v370 = vunpack.c.l.b16 %v207
      %v371 = vunpack.c.h.b16 %v207
      %v372 = vunpack.c.l.b16 %v208
      %v373 = vunpack.c.h.b16 %v208
      %v374 = vunpack.c.l.b16 %v209
      %v375 = vunpack.c.h.b16 %v209
      %v376 = vunpack.c.l.b16 %v210
      %v377 = vunpack.c.h.b16 %v210
      %v378 = vunpack.c.l.b16 %v211
      %v379 = vunpack.c.h.b16 %v211
      %v380 = vunpack.c.l.b16 %v212
      %v381 = vunpack.c.h.b16 %v212
      %v382 = vunpack.c.l.b16 %v213
      %v383 = vunpack.c.h.b16 %v213
      %v384 = vunpack.c.l.b16 %v214
      %v385 = vunpack.c.h.b16 %v214
      %v386 = vunpack.c.l.b16 %v215
      %v387 = vunpack.c.h.b16 %v215
      %v388 = vunpack.c.l.b16 %v216
      %v389 = vunpack.c.h.b16 %v216
      %v390 = vunpack.c.l.b16 %v217
      %v391 = vunpack.c.h.b16 %v217
      %v392 = vunpack.c.l.b16 %v218
      %v393 = vunpack.c.h.b16 %v218
      %v394 = vunpack.c.l.b16 %v219
      %v395 = vunpack.c.h.b16 %v219
      %v396 = vunpack.c.l.b16 %v220
      %v397 = vunpack.c.h.b16 %v220
      %v398 = vunpack.c.l.b16 %v221
      %v399 = vunpack.c.h.b16 %v221
      %v400 = vunpack.c.l.b16 %v222
      %v401 = vunpack.c.h.b16 %v222
      %v402 = vunpack.c.l.b16 %v223
      %v403 = vunpack.c.h.b16 %v223
      %v404 = vunpack.c.l.b16 %v224
      %v405 = vunpack.c.h.b16 %v224
      %v406 = vunpack.c.l.b16 %v225
      %v407 = vunpack.c.h.b16 %v225
      %v408 = vunpack.c.l.b16 %v226
      %v409 = vunpack.c.h.b16 %v226
      %v410 = vunpack.c.l.b16 %v227
      %v411 = vunpack.c.h.b16 %v227
      %v412 = vunpack.c.l.b16 %v228
      %v413 = vunpack.c.h.b16 %v228
      %v414 = vunpack.c.l.b16 %v229
      %v415 = vunpack.c.h.b16 %v229
      %v416 = vunpack.c.l.b16 %v230
      %v417 = vunpack.c.h.b16 %v230
      %v418 = vunpack.c.l.b16 %v231
      %v419 = vunpack.c.h.b16 %v231
      %v420 = vunpack.c.l.b16 %v232
      %v421 = vunpack.c.h.b16 %v232
      %v422 = vunpack.c.l.b16 %v233
      %v423 = vunpack.c.h.b16 %v233
      %v424 = vunpack.c.l.b16 %v234
      %v425 = vunpack.c.h.b16 %v234
      %v426 = vunpack.c.l.b16 %v235
      %v427 = vunpack.c.h.b16 %v235
      %v428 = vunpack.c.l.b16 %v236
      %v429 = vunpack.c.h.b16 %v236
      %v430 = vunpack.c.l.b16 %v237
      %v431 = vunpack.c.h.b16 %v237
      %v432 = vunpack.c.l.b16 %v238
      %v433 = vunpack.c.h.b16 %v238
      %v434 = vunpack.c.l.b16 %v239
      %v435 = vunpack.c.h.b16 %v239
      %v436 = vunpack.c.l.b16 %v240
      %v437 = vunpack.c.h.b16 %v240
      %v438 = vunpack.c.l.b16 %v241
      %v439 = vunpack.c.h.b16 %v241
      %v440 = vunpack.c.l.b16 %v242
      %v441 = vunpack.c.h.b16 %v242
      %v442 = vunpack.c.l.b16 %v243
      %v443 = vunpack.c.h.b16 %v243
      %v444 = vunpack.c.l.b16 %v244
      %v445 = vunpack.c.h.b16 %v244
      %v446 = vunpack.c.l.b16 %v245
      %v447 = vunpack.c.h.b16 %v245
      %v448 = vunpack.c.l.b16 %v246
      %v449 = vunpack.c.h.b16 %v246
      %v450 = vunpack.c.l.b16 %v247
      %v451 = vunpack.c.h.b16 %v247
      %v452 = vunpack.c.l.b16 %v248
      %v453 = vunpack.c.h.b16 %v248
      %v454 = vunpack.c.l.b16 %v249
      %v455 = vunpack.c.h.b16 %v249
      %v456 = vunpack.c.l.b16 %v250
      %v457 = vunpack.c.h.b16 %v250
      %v458 = vunpack.c.l.b16 %v251
      %v459 = vunpack.c.h.b16 %v251
      %v460 = vunpack.c.l.b16 %v252
      %v461 = vunpack.c.h.b16 %v252
      %v462 = vunpack.c.l.b16 %v253
      %v463 = vunpack.c.h.b16 %v253
      %v464 = vunpack.c.l.b16 %v254
      %v465 = vunpack.c.h.b16 %v254
      %v466 = vunpack.c.l.b16 %v255
      %v467 = vunpack.c.h.b16 %v255
      %v468 = vunpack.c.l.b16 %v256
      %v469 = vunpack.c.h.b16 %v256
      %v470 = vunpack.c.l.b16 %v257
      %v471 = vunpack.c.h.b16 %v257
      %v472 = vunpack.c.l.b16 %v258
      %v473 = vunpack.c.h.b16 %v258
      %v474 = vunpack.c.l.b16 %v259
      %v475 = vunpack.c.h.b16 %v259
      %v476 = vunpack.c.l.b16 %v260
      %v477 = vunpack.c.h.b16 %v260
      %v478 = vunpack.c.l.b16 %v261
      %v479 = vunpack.c.h.b16 %v261
      %v480 = vunpack.c.l.b16 %v262
      %v481 = vunpack.c.h.b16 %v262
      %v482 = vunpack.c.l.b16 %v263
      %v483 = vunpack.c.h.b16 %v263
      %v484 = vpack.c.b16 %v358, %v356
      %v485 = vpack.c.b16 %v359, %v357
      %v486 = vpack.c.b16 %v362, %v360
      %v487 = vpack.c.b16 %v363, %v361
      %v488 = vpack.c.b16 %v366, %v364
      %v489 = vpack.c.b16 %v367, %v365
      %v490 = vpack.c.b16 %v370, %v368
      %v491 = vpack.c.b16 %v371, %v369
      %v492 = vpack.c.b16 %v374, %v372
      %v493 = vpack.c.b16 %v375, %v373
      %v494 = vpack.c.b16 %v378, %v376
      %v495 = vpack.c.b16 %v379, %v377
      %v496 = vpack.c.b16 %v382, %v380
      %v497 = vpack.c.b16 %v383, %v381
      %v498 = vpack.c.b16 %v386, %v384
      %v499 = vpack.c.b16 %v387, %v385
      %v500 = vpack.c.b16 %v390, %v388
      %v501 = vpack.c.b16 %v391, %v389
      %v502 = vpack.c.b16 %v394, %v392
      %v503 = vpack.c.b16 %v395, %v393
      %v504 = vpack.c.b16 %v398, %v396
      %v505 = vpack.c.b16 %v399, %v397
      %v506 = vpack.c.b16 %v402, %v400
      %v507 = vpack.c.b16 %v403, %v401
      %v508 = vpack.c.b16 %v406, %v404
      %v509 = vpack.c.b16 %v407, %v405
      %v510 = vpack.c.b16 %v410, %v408
      %v511 = vpack.c.b16 %v411, %v409
      %v512 = vpack.c.b16 %v414, %v412
      %v513 = vpack.c.b16 %v415, %v413
      %v514 = vpack.c.b16 %v418, %v416
      %v515 = vpack.c.b16 %v419, %v417
      %v516 = vpack.c.b16 %v422, %v420
      %v517 = vpack.c.b16 %v423, %v421
      %v518 = vpack.c.b16 %v426, %v424
      %v519 = vpack.c.b16 %v427, %v425
      %v520 = vpack.c.b16 %v430, %v428
      %v521 = vpack.c.b16 %v431, %v429
      %v522 = vpack.c.b16 %v434, %v432
      %v523 = vpack.c.b16 %v435, %v433
      %v524 = vpack.c.b16 %v438, %v436
      %v525 = vpack.c.b16 %v439, %v437
      %v526 = vpack.c.b16 %v442, %v440
      %v527 = vpack.c.b16 %v443, %v441
      %v528 = vpack.c.b16 %v446, %v444
      %v529 = vpack.c.b16 %v447, %v445
      %v530 = vpack.c.b16 %v450, %v448
      %v531 = vpack.c.b16 %v451, %v449
      %v532 = vpack.c.b16 %v454, %v452
      %v533 = vpack.c.b16 %v455, %v453
      %v534 = vpack.c.b16 %v458, %v456
      %v535 = vpack.c.b16 %v459, %v457
      %v536 = vpack.c.b16 %v462, %v460
      %v537 = vpack.c.b16 %v463, %v461
      %v538 = vpack.c.b16 %v466, %v464
      %v539 = vpack.c.b16 %v467, %v465
      %v540 = vpack.c.b16 %v470, %v468
      %v541 = vpack.c.b16 %v471, %v469
      %v542 = vpack.c.b16 %v474, %v472
      %v543 = vpack.c.b16 %v475, %v473
      %v544 = vpack.c.b16 %v478, %v476
      %v545 = vpack.c.b16 %v479, %v477
      %v546 = vpack.c.b16 %v482, %v480
      %v547 = vpack.c.b16 %v483, %v481
      %612 = vmatprep.subr.bf16.mxu0 %v499
      %613 = vmatpush1.bf16.msra.mxu0 %v498
      %614 = vmatprep.subr.bf16.mxu0 %v497
      %615 = vmatpush1.bf16.msra.mxu0 %v496
      %616 = vmatprep.subr.bf16.mxu0 %v495
      %617 = vmatpush1.bf16.msra.mxu0 %v494
      %618 = vmatprep.subr.bf16.mxu0 %v493
      %619 = vmatpush1.bf16.msra.mxu0 %v492
      %620 = vmatprep.subr.bf16.mxu0 %v491
      %621 = vmatpush1.bf16.msra.mxu0 %v490
      %622 = vmatprep.subr.bf16.mxu0 %v489
      %623 = vmatpush1.bf16.msra.mxu0 %v488
      %624 = vmatprep.subr.bf16.mxu0 %v487
      %625 = vmatpush1.bf16.msra.mxu0 %v486
      %626 = vmatprep.subr.bf16.mxu0 %v485
      %627 = vmatpush1.bf16.msra.mxu0 %v484
      %628 = vmatprep.subr.bf16.mxu0 %v515
      %629 = vmatpush2.bf16.msra.mxu0 %v514
      %630 = vmatprep.subr.bf16.mxu0 %v513
      %631 = vmatpush2.bf16.msra.mxu0 %v512
      %632 = vmatprep.subr.bf16.mxu0 %v511
      %633 = vmatpush2.bf16.msra.mxu0 %v510
      %634 = vmatprep.subr.bf16.mxu0 %v509
      %635 = vmatpush2.bf16.msra.mxu0 %v508
      %636 = vmatprep.subr.bf16.mxu0 %v507
      %637 = vmatpush2.bf16.msra.mxu0 %v506
      %638 = vmatprep.subr.bf16.mxu0 %v505
      %639 = vmatpush2.bf16.msra.mxu0 %v504
      %640 = vmatprep.subr.bf16.mxu0 %v503
      %641 = vmatpush2.bf16.msra.mxu0 %v502
      %642 = vmatprep.subr.bf16.mxu0 %v501
      %643 = vmatpush2.bf16.msra.mxu0 %v500
      %644 = vmatprep.mubr.bf16.mxu0 %v286
      %645 = vmatmul.mubr.bf16.gmra.mxu0 %v278
      %v646 = vpop.f32.mrf.mxu0
      %v647 = vadd.f32 %v268, %v646
      %v648 = vpop.f32.mrf.mxu0
      %v649 = vadd.f32 %v268, %v648
      %v650 = vpop.f32.mrf.mxu0
      %v651 = vpop.f32.mrf.mxu0
      %652 = vdwg.mxu0
      %653 = vmatprep.subr.bf16.mxu0 %v531
      %654 = vmatpush1.bf16.msra.mxu0 %v530
      %655 = vmatprep.subr.bf16.mxu0 %v529
      %656 = vmatpush1.bf16.msra.mxu0 %v528
      %657 = vmatprep.subr.bf16.mxu0 %v527
      %658 = vmatpush1.bf16.msra.mxu0 %v526
      %659 = vmatprep.subr.bf16.mxu0 %v525
      %660 = vmatpush1.bf16.msra.mxu0 %v524
      %661 = vmatprep.subr.bf16.mxu0 %v523
      %662 = vmatpush1.bf16.msra.mxu0 %v522
      %663 = vmatprep.subr.bf16.mxu0 %v521
      %664 = vmatpush1.bf16.msra.mxu0 %v520
      %665 = vmatprep.subr.bf16.mxu0 %v519
      %666 = vmatpush1.bf16.msra.mxu0 %v518
      %667 = vmatprep.subr.bf16.mxu0 %v517
      %668 = vmatpush1.bf16.msra.mxu0 %v516
      %669 = vmatprep.subr.bf16.mxu0 %v547
      %670 = vmatpush2.bf16.msra.mxu0 %v546
      %671 = vmatprep.subr.bf16.mxu0 %v545
      %672 = vmatpush2.bf16.msra.mxu0 %v544
      %673 = vmatprep.subr.bf16.mxu0 %v543
      %674 = vmatpush2.bf16.msra.mxu0 %v542
      %675 = vmatprep.subr.bf16.mxu0 %v541
      %676 = vmatpush2.bf16.msra.mxu0 %v540
      %677 = vmatprep.subr.bf16.mxu0 %v539
      %678 = vmatpush2.bf16.msra.mxu0 %v538
      %679 = vmatprep.subr.bf16.mxu0 %v537
      %680 = vmatpush2.bf16.msra.mxu0 %v536
      %681 = vmatprep.subr.bf16.mxu0 %v535
      %682 = vmatpush2.bf16.msra.mxu0 %v534
      %683 = vmatprep.subr.bf16.mxu0 %v533
      %684 = vmatpush2.bf16.msra.mxu0 %v532
      %685 = vmatprep.mubr.bf16.mxu0 %v287
      %686 = vmatmul.mubr.bf16.gmra.mxu0 %v285
      %v687 = vpop.f32.mrf.mxu0
      %v688 = vadd.f32 %v647, %v687
      %v689 = vpop.f32.mrf.mxu0
      %v690 = vadd.f32 %v649, %v689
      %v691 = vpop.f32.mrf.mxu0
      %v692 = vpop.f32.mrf.mxu0
      %693 = vdwg.mxu0
      %v694 = vtanh.pop %v688
      %v695 = vtanh.pop %v690
      %v698 = vcombine.low %v694, %v695
      %vm700 = vcmask 1042432
      %vm701 = vcmask 792580
      %vm702 = vmor %vm701, %vm700
      %703 = vst.msk [vmem:[%s198] sm:$0x77] %vm702, %v698
      %p704 = scmp.lt.s32.totalorder %s18, 1
      %s705 = scalar_select %p704, %s18, 1
      %s706 = smul.addr %s705, 2
      %s707 = smul.addr %s706, 4
      %s708 = scalar_lea.vmem %s3, %s707
      // Predicated region
      $region33: #{resnet_generator.35} parent=31 // pred_check
        %p709 = pneg %p114
      $region34: #{resnet_generator.35} parent=31 // pred_check_branch
        %711 = sbr.rel (%p709) target = $region36
      $region35: #{resnet_generator.35} parent=31 // pred_region
        _
      $region36: #{resnet_generator.35} parent=31 // pred_fallthru
        _
    $region32: #{resnet_generator.35} parent=5 // pred_fallthru
      _
    %p712 = scmp.le.s32.totalorder 2, %s9
    // Predicated region
    $region37: #{resnet_generator.35} parent=5 // pred_check
      %p713 = pneg %p712
    $region38: #{resnet_generator.35} parent=5 // pred_check_branch
      %715 = sbr.rel (%p713) target = $region40
    $region39: #{resnet_generator.35} parent=5 // pred_region
      %s716 = ssub.s32 %s9, 2
      // Predicated region
      $region41: #{resnet_generator.35} parent=39 // pred_check
        %p717 = pneg %p120
      $region42: #{resnet_generator.35} parent=39 // pred_check_branch
        %719 = sbr.rel (%p717) target = $region44
      $region43: #{resnet_generator.35} parent=39 // pred_region
        %p720 = scmp.lt.s32.totalorder %s20, 1
        %s721 = scalar_select %p720, %s20, 1
        %s722 = smul.addr %s721, 2
        %s723 = smul.addr %s722, 4
        %s724 = scalar_lea.vmem %s3, %s723
      $region44: #{resnet_generator.35} parent=39 // pred_fallthru
        _
    $region40: #{resnet_generator.35} parent=5 // pred_fallthru
      _
  $region6: #{resnet_generator.35} parent=0 // loop_footer
    %s13 = sadd.s32 1, %s9
  $region7: #{resnet_generator.35} parent=0 // loop_footer_branch
    %8 = sbr.rel target = $region3
  $region8: #{resnet_generator.35} parent=0 // loop_exit
    _

</llo_original>
